<compile_context>
chip_gen: v7x
topology: tpu7x:2x2x1
jax: 0.10.0
libtpu: 0.0.40
codegen_flags: <defaults>
</compile_context>

<pallas_src>
import functools

import jax
import jax.numpy as jnp
from jax.experimental import pallas as pl
from jax.experimental.pallas import tpu as pltpu

LATENT = 100
OUT = 784
LATENT_PAD = 128          # 100 -> 128  (lane aligned)
OUT_PAD = 896             # 784 -> 7*128 (lane aligned)
PAD_DIMS = [(LATENT_PAD, 256), (256, 512), (512, 1024), (1024, OUT_PAD)]
TRUE_DIMS = [(LATENT, 256), (256, 512), (512, 1024), (1024, OUT)]


def _round_up(x, m):
    return (x + m - 1) // m * m


def generator_kernel(x_ref,
                     w1_ref, b1_ref,
                     w2_ref, b2_ref,
                     w3_ref, b3_ref,
                     w4_ref, b4_ref,
                     o_ref):
    # Layers 1-3: bf16 MXU dot with f32 accumulation, then bf16 bias-add +
    # ReLU epilogue (packed bf16 VALU on v6e/v7x; still legal on v5e).
    h = jnp.dot(x_ref[...], w1_ref[...], preferred_element_type=jnp.float32)
    h = jnp.maximum(h.astype(jnp.bfloat16) + b1_ref[...], 0)
    h = jnp.dot(h, w2_ref[...], preferred_element_type=jnp.float32)
    h = jnp.maximum(h.astype(jnp.bfloat16) + b2_ref[...], 0)
    h = jnp.dot(h, w3_ref[...], preferred_element_type=jnp.float32)
    h = jnp.maximum(h.astype(jnp.bfloat16) + b3_ref[...], 0)
    # Layer 4: f32 bias-add + f32 tanh (EUP) for accuracy, store bf16.
    h = jnp.dot(h, w4_ref[...], preferred_element_type=jnp.float32)
    o_ref[...] = jnp.tanh(h + b4_ref[...]).astype(o_ref.dtype)


def _generator_forward_impl(x, params, block_m):
    """x: (B, 100) f32.  params: padded bf16 weights, bf16/f32 biases."""
    B, latent = x.shape
    assert latent == LATENT, latent

    # Batch tile: block_m rows for large batches; otherwise the smallest
    # 16-row-aligned tile covering B (bf16 vreg = [16,128] sublanes x lanes).
    tm = block_m if B >= block_m else _round_up(max(B, 16), 16)
    b_pad = _round_up(B, tm)
    # Keep >= 2 grid steps when the batch allows it so the ("parallel",) grid
    # can shard across v7x's 2 TensorCores (no-op on v5e/v6e).
    if b_pad // tm < 2 and b_pad >= 32:
        tm = _round_up(b_pad // 2, 16)
        b_pad = _round_up(B, tm)

    # Pad batch -> b_pad rows and latent 100 -> 128 lanes (zero rows in w1
    # make the feature padding a numerical no-op).
    x_p = jnp.zeros((b_pad, LATENT_PAD), jnp.bfloat16)
    x_p = x_p.at[:B, :LATENT].set(x.astype(jnp.bfloat16))

    grid = (b_pad // tm,)
    tile_map = lambda i: (i, 0)   # x / output tiles walk the batch
    const_map = lambda i: (0, 0)  # weights & biases stay VMEM-resident

    args = [x_p]
    in_specs = [pl.BlockSpec((tm, LATENT_PAD), tile_map)]
    for li in range(1, 5):
        w = params[f"w{li}"]
        b = params[f"b{li}"]
        args += [w, b]
        # Constant block index -> single-buffer the resident weights/biases
        # instead of the default double-buffering (saves ~3.2 MiB VMEM).
        in_specs += [
            pl.BlockSpec(w.shape, const_map, pipeline_mode=pl.Buffered(1)),
            pl.BlockSpec(b.shape, const_map, pipeline_mode=pl.Buffered(1)),
        ]

    flops = 2 * b_pad * sum(fi * fo for fi, fo in PAD_DIMS)
    bytes_accessed = int(
        sum(a.size * a.dtype.itemsize for a in args) + b_pad * OUT_PAD * 2)

    out = pl.pallas_call(
        generator_kernel,
        out_shape=jax.ShapeDtypeStruct((b_pad, OUT_PAD), jnp.bfloat16),
        grid_spec=pltpu.PrefetchScalarGridSpec(
            num_scalar_prefetch=0,
            grid=grid,
            in_specs=in_specs,
            out_specs=pl.BlockSpec((tm, OUT_PAD), tile_map),
        ),
        compiler_params=pltpu.CompilerParams(
            dimension_semantics=("parallel",),
            vmem_limit_bytes=32 << 20,
        ),
        cost_estimate=pl.CostEstimate(
            flops=flops,
            transcendentals=b_pad * OUT_PAD,
            bytes_accessed=bytes_accessed,
        ),
    )(*args)

    # Strip batch padding and the 784 -> 896 output padding.
    return out[:B, :OUT]


# block_m=256 fills the 256-wide MXU on v6e/v7x; on v5e a 128-row LHS already
# fills the 4x128^2 MXU, so 256 only amortizes per-grid-step overhead.
generator_forward = jax.jit(
    functools.partial(_generator_forward_impl, block_m=256),
    static_argnames="block_m")


def init_params(key):
    """PyTorch nn.Linear default init (uniform +-1/sqrt(fan_in)).

    Returns (kernel_params, ref_params): kernel params are padded (bf16
    weights, bf16 biases for layers 1-3, f32 bias for layer 4); ref params
    are the unpadded f32 tensors for the correctness check.
    """
    kernel_params, ref_params = {}, {}
    for i, ((fin, fout), (fin_p, fout_p)) in enumerate(
            zip(TRUE_DIMS, PAD_DIMS), start=1):
        key, kw, kb = jax.random.split(key, 3)
        bound = 1.0 / (fin ** 0.5)
        w = jax.random.uniform(kw, (fin, fout), jnp.float32, -bound, bound)
        b = jax.random.uniform(kb, (fout,), jnp.float32, -bound, bound)
        ref_params[f"w{i}"] = w
        ref_params[f"b{i}"] = b
        w_p = jnp.zeros((fin_p, fout_p), jnp.float32).at[:fin, :fout].set(w)
        b_p = jnp.zeros((1, fout_p), jnp.float32).at[0, :fout].set(b)
        kernel_params[f"w{i}"] = w_p.astype(jnp.bfloat16)
        kernel_params[f"b{i}"] = b_p if i == 4 else b_p.astype(jnp.bfloat16)
    return kernel_params, ref_params


def reference_forward(x, ref_params):
    """Pure-JAX f32 reference (matches the PyTorch module exactly)."""
    h = jnp.maximum(x @ ref_params["w1"] + ref_params["b1"], 0.0)
    h = jnp.maximum(h @ ref_params["w2"] + ref_params["b2"], 0.0)
    h = jnp.maximum(h @ ref_params["w3"] + ref_params["b3"], 0.0)
    return jnp.tanh(h @ ref_params["w4"] + ref_params["b4"])


if __name__ == "__main__":
    key = jax.random.PRNGKey(0)
    key, kx = jax.random.split(key)

    B = 8
    x = jax.random.normal(kx, (B, LATENT), jnp.float32)
    kernel_params, ref_params = init_params(key)

    out = generator_forward(x, kernel_params)
    out = jax.block_until_ready(out)

    ref = reference_forward(x, ref_params)
    assert out.shape == (B, OUT), out.shape
    # bf16 matmul / epilogue / output path vs f32 reference -> loose tolerance.
    out_f32 = out.astype(jnp.float32)
    assert jnp.allclose(out_f32, ref, atol=5e-2, rtol=5e-2), (
        "mismatch vs reference, max abs diff = "
        f"{float(jnp.max(jnp.abs(out_f32 - ref)))}")

    print("KERNEL_OK")
</pallas_src>

<mosaic_0001>
module attributes {stable_mosaic.version = 11 : i64} {
  func.func @generator_kernel(%arg0: i32, %arg1: memref<16x128xbf16, #tpu.memory_space<vmem>>, %arg2: memref<128x256xbf16, #tpu.memory_space<vmem>>, %arg3: memref<1x256xbf16, #tpu.memory_space<vmem>>, %arg4: memref<256x512xbf16, #tpu.memory_space<vmem>>, %arg5: memref<1x512xbf16, #tpu.memory_space<vmem>>, %arg6: memref<512x1024xbf16, #tpu.memory_space<vmem>>, %arg7: memref<1x1024xbf16, #tpu.memory_space<vmem>>, %arg8: memref<1024x896xbf16, #tpu.memory_space<vmem>>, %arg9: memref<1x896xf32, #tpu.memory_space<vmem>>, %arg10: memref<16x896xbf16, #tpu.memory_space<vmem>>) attributes {dimension_semantics = [#tpu.dimension_semantics<parallel>], iteration_bounds = array<i64: 1>, scalar_prefetch = 0 : i64, scratch_operands = 0 : i64, tpu.core_type = #tpu.core_type<tc>, window_params = [{transform_indices = @transform_0, window_bounds = array<i64: 16, 128>}, {pipeline_mode = #tpu.pipeline_mode<synchronous>, transform_indices = @transform_1, window_bounds = array<i64: 128, 256>}, {pipeline_mode = #tpu.pipeline_mode<synchronous>, transform_indices = @transform_2, window_bounds = array<i64: 1, 256>}, {pipeline_mode = #tpu.pipeline_mode<synchronous>, transform_indices = @transform_3, window_bounds = array<i64: 256, 512>}, {pipeline_mode = #tpu.pipeline_mode<synchronous>, transform_indices = @transform_4, window_bounds = array<i64: 1, 512>}, {pipeline_mode = #tpu.pipeline_mode<synchronous>, transform_indices = @transform_5, window_bounds = array<i64: 512, 1024>}, {pipeline_mode = #tpu.pipeline_mode<synchronous>, transform_indices = @transform_6, window_bounds = array<i64: 1, 1024>}, {pipeline_mode = #tpu.pipeline_mode<synchronous>, transform_indices = @transform_7, window_bounds = array<i64: 1024, 896>}, {pipeline_mode = #tpu.pipeline_mode<synchronous>, transform_indices = @transform_8, window_bounds = array<i64: 1, 896>}, {transform_indices = @transform_9, window_bounds = array<i64: 16, 896>}]} {
    %c0 = arith.constant 0 : index
    %c0_0 = arith.constant 0 : index
    %0 = vector.load %arg1[%c0, %c0_0] : memref<16x128xbf16, #tpu.memory_space<vmem>>, vector<16x128xbf16>
    %c0_1 = arith.constant 0 : index
    %c0_2 = arith.constant 0 : index
    %1 = vector.load %arg2[%c0_1, %c0_2] : memref<128x256xbf16, #tpu.memory_space<vmem>>, vector<128x256xbf16>
    %cst = arith.constant dense<0.000000e+00> : vector<16x256xf32>
    %2 = tpu.matmul %0, %1, %cst {dimension_numbers = #tpu.dot_dimension_numbers<[1], [0], [0], [1], [0, 0, 1, 1], [], []>} : vector<16x128xbf16>, vector<128x256xbf16>, vector<16x256xf32> -> vector<16x256xf32>
    %3 = arith.truncf %2 : vector<16x256xf32> to vector<16x256xbf16>
    %c0_3 = arith.constant 0 : index
    %c0_4 = arith.constant 0 : index
    %4 = vector.load %arg3[%c0_3, %c0_4] : memref<1x256xbf16, #tpu.memory_space<vmem>>, vector<1x256xbf16>
    %5 = vector.broadcast %4 : vector<1x256xbf16> to vector<16x256xbf16>
    %6 = arith.addf %3, %5 : vector<16x256xbf16>
    %cst_5 = arith.constant 0.000000e+00 : bf16
    %7 = vector.broadcast %cst_5 : bf16 to vector<16x256xbf16>
    %8 = arith.maximumf %6, %7 : vector<16x256xbf16>
    %c0_6 = arith.constant 0 : index
    %c0_7 = arith.constant 0 : index
    %9 = vector.load %arg4[%c0_6, %c0_7] : memref<256x512xbf16, #tpu.memory_space<vmem>>, vector<256x512xbf16>
    %cst_8 = arith.constant dense<0.000000e+00> : vector<16x512xf32>
    %10 = tpu.matmul %8, %9, %cst_8 {dimension_numbers = #tpu.dot_dimension_numbers<[1], [0], [0], [1], [0, 0, 1, 1], [], []>} : vector<16x256xbf16>, vector<256x512xbf16>, vector<16x512xf32> -> vector<16x512xf32>
    %11 = arith.truncf %10 : vector<16x512xf32> to vector<16x512xbf16>
    %c0_9 = arith.constant 0 : index
    %c0_10 = arith.constant 0 : index
    %12 = vector.load %arg5[%c0_9, %c0_10] : memref<1x512xbf16, #tpu.memory_space<vmem>>, vector<1x512xbf16>
    %13 = vector.broadcast %12 : vector<1x512xbf16> to vector<16x512xbf16>
    %14 = arith.addf %11, %13 : vector<16x512xbf16>
    %cst_11 = arith.constant 0.000000e+00 : bf16
    %15 = vector.broadcast %cst_11 : bf16 to vector<16x512xbf16>
    %16 = arith.maximumf %14, %15 : vector<16x512xbf16>
    %c0_12 = arith.constant 0 : index
    %c0_13 = arith.constant 0 : index
    %17 = vector.load %arg6[%c0_12, %c0_13] : memref<512x1024xbf16, #tpu.memory_space<vmem>>, vector<512x1024xbf16>
    %cst_14 = arith.constant dense<0.000000e+00> : vector<16x1024xf32>
    %18 = tpu.matmul %16, %17, %cst_14 {dimension_numbers = #tpu.dot_dimension_numbers<[1], [0], [0], [1], [0, 0, 1, 1], [], []>} : vector<16x512xbf16>, vector<512x1024xbf16>, vector<16x1024xf32> -> vector<16x1024xf32>
    %19 = arith.truncf %18 : vector<16x1024xf32> to vector<16x1024xbf16>
    %c0_15 = arith.constant 0 : index
    %c0_16 = arith.constant 0 : index
    %20 = vector.load %arg7[%c0_15, %c0_16] : memref<1x1024xbf16, #tpu.memory_space<vmem>>, vector<1x1024xbf16>
    %21 = vector.broadcast %20 : vector<1x1024xbf16> to vector<16x1024xbf16>
    %22 = arith.addf %19, %21 : vector<16x1024xbf16>
    %cst_17 = arith.constant 0.000000e+00 : bf16
    %23 = vector.broadcast %cst_17 : bf16 to vector<16x1024xbf16>
    %24 = arith.maximumf %22, %23 : vector<16x1024xbf16>
    %c0_18 = arith.constant 0 : index
    %c0_19 = arith.constant 0 : index
    %25 = vector.load %arg8[%c0_18, %c0_19] : memref<1024x896xbf16, #tpu.memory_space<vmem>>, vector<1024x896xbf16>
    %cst_20 = arith.constant dense<0.000000e+00> : vector<16x896xf32>
    %26 = tpu.matmul %24, %25, %cst_20 {dimension_numbers = #tpu.dot_dimension_numbers<[1], [0], [0], [1], [0, 0, 1, 1], [], []>} : vector<16x1024xbf16>, vector<1024x896xbf16>, vector<16x896xf32> -> vector<16x896xf32>
    %c0_21 = arith.constant 0 : index
    %c0_22 = arith.constant 0 : index
    %27 = vector.load %arg9[%c0_21, %c0_22] : memref<1x896xf32, #tpu.memory_space<vmem>>, vector<1x896xf32>
    %28 = vector.broadcast %27 : vector<1x896xf32> to vector<16x896xf32>
    %29 = arith.addf %26, %28 : vector<16x896xf32>
    %30 = math.tanh %29 : vector<16x896xf32>
    %31 = arith.truncf %30 : vector<16x896xf32> to vector<16x896xbf16>
    %c0_23 = arith.constant 0 : index
    %c0_24 = arith.constant 0 : index
    %32 = vector.load %arg10[%c0_23, %c0_24] : memref<16x896xbf16, #tpu.memory_space<vmem>>, vector<16x896xbf16>
    tpu.vector_store %arg10[%c0_23, %c0_24], %31 {strides = array<i32>} : memref<16x896xbf16, #tpu.memory_space<vmem>>, vector<16x896xbf16>,
    return
  }
  func.func @transform_0(%arg0: i32) -> (i32, i32) {
    %c0_i32 = arith.constant 0 : i32
    %c0_i32_0 = arith.constant 0 : i32
    return %arg0, %c0_i32 : i32, i32
  }
  func.func @transform_1(%arg0: i32) -> (i32, i32) {
    %c0_i32 = arith.constant 0 : i32
    %c0_i32_0 = arith.constant 0 : i32
    %c0_i32_1 = arith.constant 0 : i32
    return %c0_i32, %c0_i32_0 : i32, i32
  }
  func.func @transform_2(%arg0: i32) -> (i32, i32) {
    %c0_i32 = arith.constant 0 : i32
    %c0_i32_0 = arith.constant 0 : i32
    %c0_i32_1 = arith.constant 0 : i32
    return %c0_i32, %c0_i32_0 : i32, i32
  }
  func.func @transform_3(%arg0: i32) -> (i32, i32) {
    %c0_i32 = arith.constant 0 : i32
    %c0_i32_0 = arith.constant 0 : i32
    %c0_i32_1 = arith.constant 0 : i32
    return %c0_i32, %c0_i32_0 : i32, i32
  }
  func.func @transform_4(%arg0: i32) -> (i32, i32) {
    %c0_i32 = arith.constant 0 : i32
    %c0_i32_0 = arith.constant 0 : i32
    %c0_i32_1 = arith.constant 0 : i32
    return %c0_i32, %c0_i32_0 : i32, i32
  }
  func.func @transform_5(%arg0: i32) -> (i32, i32) {
    %c0_i32 = arith.constant 0 : i32
    %c0_i32_0 = arith.constant 0 : i32
    %c0_i32_1 = arith.constant 0 : i32
    return %c0_i32, %c0_i32_0 : i32, i32
  }
  func.func @transform_6(%arg0: i32) -> (i32, i32) {
    %c0_i32 = arith.constant 0 : i32
    %c0_i32_0 = arith.constant 0 : i32
    %c0_i32_1 = arith.constant 0 : i32
    return %c0_i32, %c0_i32_0 : i32, i32
  }
  func.func @transform_7(%arg0: i32) -> (i32, i32) {
    %c0_i32 = arith.constant 0 : i32
    %c0_i32_0 = arith.constant 0 : i32
    %c0_i32_1 = arith.constant 0 : i32
    return %c0_i32, %c0_i32_0 : i32, i32
  }
  func.func @transform_8(%arg0: i32) -> (i32, i32) {
    %c0_i32 = arith.constant 0 : i32
    %c0_i32_0 = arith.constant 0 : i32
    %c0_i32_1 = arith.constant 0 : i32
    return %c0_i32, %c0_i32_0 : i32, i32
  }
  func.func @transform_9(%arg0: i32) -> (i32, i32) {
    %c0_i32 = arith.constant 0 : i32
    %c0_i32_0 = arith.constant 0 : i32
    return %arg0, %c0_i32 : i32, i32
  }
}

</mosaic_0001>

<llo_original>
// kernel: _generator_forward_impl.1
$region0: #{_generator_forward_impl.1}
  #allocation0 [shape = 'u32[]', space=smem, size = 0x4, offset = 0x4, fixed_abs, tag = 'smem constant byte address 0x4 - core index']
  #allocation1 [shape = 'u32[144,128]{1,0:T(1,128)}', space=vmem, size = 0x12000, scoped, tag = 'internal scratch']
  %s0 = inlined_call_operand.vmem [shape: bf16[16,128], index: 0, kind: input, shape index: {}]
  %s1 = inlined_call_operand.hbm [shape: bf16[128,256], index: 1, kind: input, shape index: {}]
  %s2 = inlined_call_operand.hbm [shape: bf16[1,256], index: 2, kind: input, shape index: {}]
  %s3 = inlined_call_operand.hbm [shape: bf16[256,512], index: 3, kind: input, shape index: {}]
  %s4 = inlined_call_operand.hbm [shape: bf16[1,512], index: 4, kind: input, shape index: {}]
  %s5 = inlined_call_operand.hbm [shape: bf16[512,1024], index: 5, kind: input, shape index: {}]
  %s6 = inlined_call_operand.hbm [shape: bf16[1,1024], index: 6, kind: input, shape index: {}]
  %s7 = inlined_call_operand.hbm [shape: bf16[1024,896], index: 7, kind: input, shape index: {}]
  %s8 = inlined_call_operand.hbm [shape: f32[1,896], index: 8, kind: input, shape index: {}]
  %s9 = inlined_call_operand.vmem [shape: bf16[16,896], index: 9, kind: output, shape index: {}]
  %s10 = sld [smem:[#allocation0]]
  $region78: #{_generator_forward_impl.1} parent=0
    _
  %s12 = ssub.s32 1, %s10
  %s13 = scalar_select 0, %s12, %s10
  $region1: #{_generator_forward_impl.1} parent=0
    #allocation2 [shape = 'u8[65536]{0}', space=vmem, size = 0x10000, scoped, tag = 'input window, operand 1, single buffered']
    #allocation3 [shape = 's32[1]{0}', space=sflag, size = 0x4, scoped, tag = 'scoped memory for _generator_forward_impl.1']
    #allocation4 [shape = 'u8[1024]{0}', space=vmem, size = 0x400, scoped, tag = 'input window, operand 2, single buffered']
    #allocation5 [shape = 's32[1]{0}', space=sflag, size = 0x4, scoped, tag = 'scoped memory for _generator_forward_impl.1']
    #allocation6 [shape = 'u8[262144]{0}', space=vmem, size = 0x40000, scoped, tag = 'input window, operand 3, single buffered']
    #allocation7 [shape = 'u8[2048]{0}', space=vmem, size = 0x800, scoped, tag = 'input window, operand 4, single buffered']
    #allocation8 [shape = 's32[1]{0}', space=sflag, size = 0x4, scoped, tag = 'scoped memory for _generator_forward_impl.1']
    #allocation9 [shape = 'u8[1048576]{0}', space=vmem, size = 0x100000, scoped, tag = 'input window, operand 5, single buffered']
    #allocation10 [shape = 'u8[4096]{0}', space=vmem, size = 0x1000, scoped, tag = 'input window, operand 6, single buffered']
    #allocation11 [shape = 's32[1]{0}', space=sflag, size = 0x4, scoped, tag = 'scoped memory for _generator_forward_impl.1']
    #allocation12 [shape = 'u8[1835008]{0}', space=vmem, size = 0x1c0000, scoped, tag = 'input window, operand 7, single buffered']
    #allocation13 [shape = 'u8[3584]{0}', space=vmem, size = 0x1000, scoped, tag = 'input window, operand 8, single buffered']
    #allocation14 [shape = 's32[1]{0}', space=sflag, size = 0x4, scoped, tag = 'scoped memory for _generator_forward_impl.1']
    %14 = vsyncpa [#allocation3], 0
    %15 = vsyncpa [#allocation5], 0
    %16 = vsyncpa [#allocation8], 0
    %17 = vsyncpa [#allocation11], 0
    %18 = vsyncpa [#allocation14], 0
    // Predicated region
    $region2: #{_generator_forward_impl.1} parent=1 // pred_check
      _
    $region3: #{_generator_forward_impl.1} parent=1 // pred_check_branch
      %20 = sbr.rel (0) target = $region5
    $region4: #{_generator_forward_impl.1} parent=1 // pred_region
      _
    $region5: #{_generator_forward_impl.1} parent=1 // pred_fallthru
      _
    // Predicated region
    $region6: #{_generator_forward_impl.1} parent=1 // pred_check
      _
    $region7: #{_generator_forward_impl.1} parent=1 // pred_check_branch
      %22 = sbr.rel (0) target = $region9
    $region8: #{_generator_forward_impl.1} parent=1 // pred_region
      %s24 = ssub.s32 2048, 2048
      %25 = vsyncadd [#allocation3], %s24
      %s26 = sshll.u32 [#allocation2], 4
      %s27 = int_to_ptr.vmem [resolvable:$true] %s26
      %32 = dma.hbm_to_vmem [thread:$0]  %s1, 2048, %s27, [#allocation3], 128, 128, 8
    $region9: #{_generator_forward_impl.1} parent=1 // pred_fallthru
      _
    // Predicated region
    $region10: #{_generator_forward_impl.1} parent=1 // pred_check
      _
    $region11: #{_generator_forward_impl.1} parent=1 // pred_check_branch
      %34 = sbr.rel (0) target = $region13
    $region12: #{_generator_forward_impl.1} parent=1 // pred_region
      %s36 = ssub.s32 32, 32
      %37 = vsyncadd [#allocation5], %s36
      %s39 = sshll.u32 [#allocation4], 4
      %s40 = int_to_ptr.vmem [resolvable:$true] %s39
      %42 = dma.hbm_to_vmem [thread:$0]  %s2, 32, %s40, [#allocation5]
    $region13: #{_generator_forward_impl.1} parent=1 // pred_fallthru
      _
    // Predicated region
    $region14: #{_generator_forward_impl.1} parent=1 // pred_check
      _
    $region15: #{_generator_forward_impl.1} parent=1 // pred_check_branch
      %44 = sbr.rel (0) target = $region17
    $region16: #{_generator_forward_impl.1} parent=1 // pred_region
      %s46 = ssub.s32 8192, 8192
      %47 = vsyncadd [#allocation5], %s46
      %s48 = sshll.u32 [#allocation6], 4
      %s49 = int_to_ptr.vmem [resolvable:$true] %s48
      %54 = dma.hbm_to_vmem [thread:$0]  %s3, 8192, %s49, [#allocation5], 256, 256, 16
    $region17: #{_generator_forward_impl.1} parent=1 // pred_fallthru
      _
    // Predicated region
    $region18: #{_generator_forward_impl.1} parent=1 // pred_check
      _
    $region19: #{_generator_forward_impl.1} parent=1 // pred_check_branch
      %56 = sbr.rel (0) target = $region21
    $region20: #{_generator_forward_impl.1} parent=1 // pred_region
      %s58 = ssub.s32 64, 64
      %59 = vsyncadd [#allocation8], %s58
      %s61 = sshll.u32 [#allocation7], 4
      %s62 = int_to_ptr.vmem [resolvable:$true] %s61
      %64 = dma.hbm_to_vmem [thread:$0]  %s4, 64, %s62, [#allocation8]
    $region21: #{_generator_forward_impl.1} parent=1 // pred_fallthru
      _
    // Predicated region
    $region22: #{_generator_forward_impl.1} parent=1 // pred_check
      _
    $region23: #{_generator_forward_impl.1} parent=1 // pred_check_branch
      %66 = sbr.rel (0) target = $region25
    $region24: #{_generator_forward_impl.1} parent=1 // pred_region
      %s68 = ssub.s32 32768, 32768
      %69 = vsyncadd [#allocation8], %s68
      %s70 = sshll.u32 [#allocation9], 4
      %s71 = int_to_ptr.vmem [resolvable:$true] %s70
      %76 = dma.hbm_to_vmem [thread:$0]  %s5, 32768, %s71, [#allocation8], 512, 512, 32
    $region25: #{_generator_forward_impl.1} parent=1 // pred_fallthru
      _
    // Predicated region
    $region26: #{_generator_forward_impl.1} parent=1 // pred_check
      _
    $region27: #{_generator_forward_impl.1} parent=1 // pred_check_branch
      %78 = sbr.rel (0) target = $region29
    $region28: #{_generator_forward_impl.1} parent=1 // pred_region
      %s80 = ssub.s32 128, 128
      %81 = vsyncadd [#allocation11], %s80
      %s83 = sshll.u32 [#allocation10], 4
      %s84 = int_to_ptr.vmem [resolvable:$true] %s83
      %86 = dma.hbm_to_vmem [thread:$0]  %s6, 128, %s84, [#allocation11]
    $region29: #{_generator_forward_impl.1} parent=1 // pred_fallthru
      _
    // Predicated region
    $region30: #{_generator_forward_impl.1} parent=1 // pred_check
      _
    $region31: #{_generator_forward_impl.1} parent=1 // pred_check_branch
      %88 = sbr.rel (0) target = $region33
    $region32: #{_generator_forward_impl.1} parent=1 // pred_region
      %s90 = ssub.s32 57344, 57344
      %91 = vsyncadd [#allocation11], %s90
      %s92 = sshll.u32 [#allocation12], 4
      %s93 = int_to_ptr.vmem [resolvable:$true] %s92
      %98 = dma.hbm_to_vmem [thread:$0]  %s7, 57344, %s93, [#allocation11], 448, 448, 28
    $region33: #{_generator_forward_impl.1} parent=1 // pred_fallthru
      _
    // Predicated region
    $region34: #{_generator_forward_impl.1} parent=1 // pred_check
      _
    $region35: #{_generator_forward_impl.1} parent=1 // pred_check_branch
      %100 = sbr.rel (0) target = $region37
    $region36: #{_generator_forward_impl.1} parent=1 // pred_region
      %s102 = ssub.s32 112, 112
      %103 = vsyncadd [#allocation14], %s102
      %s105 = sshll.u32 [#allocation13], 4
      %s106 = int_to_ptr.vmem [resolvable:$true] %s105
      %108 = dma.hbm_to_vmem [thread:$0]  %s8, 112, %s106, [#allocation14]
    $region37: #{_generator_forward_impl.1} parent=1 // pred_fallthru
      _
    // Predicated region
    $region38: #{_generator_forward_impl.1} parent=1 // pred_check
      _
    $region39: #{_generator_forward_impl.1} parent=1 // pred_check_branch
      %110 = sbr.rel (0) target = $region41
    $region40: #{_generator_forward_impl.1} parent=1 // pred_region
      %111 = dma.done [#allocation3], 2048
    $region41: #{_generator_forward_impl.1} parent=1 // pred_fallthru
      _
    // Predicated region
    $region42: #{_generator_forward_impl.1} parent=1 // pred_check
      _
    $region43: #{_generator_forward_impl.1} parent=1 // pred_check_branch
      %113 = sbr.rel (0) target = $region45
    $region44: #{_generator_forward_impl.1} parent=1 // pred_region
      %114 = dma.done [#allocation5], 32
    $region45: #{_generator_forward_impl.1} parent=1 // pred_fallthru
      _
    // Predicated region
    $region46: #{_generator_forward_impl.1} parent=1 // pred_check
      _
    $region47: #{_generator_forward_impl.1} parent=1 // pred_check_branch
      %116 = sbr.rel (0) target = $region49
    $region48: #{_generator_forward_impl.1} parent=1 // pred_region
      %117 = dma.done [#allocation5], 8192
    $region49: #{_generator_forward_impl.1} parent=1 // pred_fallthru
      _
    // Predicated region
    $region50: #{_generator_forward_impl.1} parent=1 // pred_check
      _
    $region51: #{_generator_forward_impl.1} parent=1 // pred_check_branch
      %119 = sbr.rel (0) target = $region53
    $region52: #{_generator_forward_impl.1} parent=1 // pred_region
      %120 = dma.done [#allocation8], 64
    $region53: #{_generator_forward_impl.1} parent=1 // pred_fallthru
      _
    // Predicated region
    $region54: #{_generator_forward_impl.1} parent=1 // pred_check
      _
    $region55: #{_generator_forward_impl.1} parent=1 // pred_check_branch
      %122 = sbr.rel (0) target = $region57
    $region56: #{_generator_forward_impl.1} parent=1 // pred_region
      %123 = dma.done [#allocation8], 32768
    $region57: #{_generator_forward_impl.1} parent=1 // pred_fallthru
      _
    // Predicated region
    $region58: #{_generator_forward_impl.1} parent=1 // pred_check
      _
    $region59: #{_generator_forward_impl.1} parent=1 // pred_check_branch
      %125 = sbr.rel (0) target = $region61
    $region60: #{_generator_forward_impl.1} parent=1 // pred_region
      %126 = dma.done [#allocation11], 128
    $region61: #{_generator_forward_impl.1} parent=1 // pred_fallthru
      _
    // Predicated region
    $region62: #{_generator_forward_impl.1} parent=1 // pred_check
      _
    $region63: #{_generator_forward_impl.1} parent=1 // pred_check_branch
      %128 = sbr.rel (0) target = $region65
    $region64: #{_generator_forward_impl.1} parent=1 // pred_region
      %129 = dma.done [#allocation11], 57344
    $region65: #{_generator_forward_impl.1} parent=1 // pred_fallthru
      _
    // Predicated region
    $region66: #{_generator_forward_impl.1} parent=1 // pred_check
      _
    $region67: #{_generator_forward_impl.1} parent=1 // pred_check_branch
      %131 = sbr.rel (0) target = $region69
    $region68: #{_generator_forward_impl.1} parent=1 // pred_region
      %132 = dma.done [#allocation14], 112
    $region69: #{_generator_forward_impl.1} parent=1 // pred_fallthru
      _
    %v134 = vld [vmem:[%s0] sm:$0xf]
    %v135 = vld [vmem:[%s0 + $0x4] sm:$0xf]
    %v136 = vld [vmem:[#allocation2] sm:$0xff]
    %v137 = vld [vmem:[#allocation2 + $0x8] sm:$0xff]
    %v138 = vld [vmem:[#allocation2 + $0x10] sm:$0xff]
    %v139 = vld [vmem:[#allocation2 + $0x18] sm:$0xff]
    %v140 = vld [vmem:[#allocation2 + $0x20] sm:$0xff]
    %v141 = vld [vmem:[#allocation2 + $0x28] sm:$0xff]
    %v142 = vld [vmem:[#allocation2 + $0x30] sm:$0xff]
    %v143 = vld [vmem:[#allocation2 + $0x38] sm:$0xff]
    %v144 = vld [vmem:[#allocation2 + $0x40] sm:$0xff]
    %v145 = vld [vmem:[#allocation2 + $0x48] sm:$0xff]
    %v146 = vld [vmem:[#allocation2 + $0x50] sm:$0xff]
    %v147 = vld [vmem:[#allocation2 + $0x58] sm:$0xff]
    %v148 = vld [vmem:[#allocation2 + $0x60] sm:$0xff]
    %v149 = vld [vmem:[#allocation2 + $0x68] sm:$0xff]
    %v150 = vld [vmem:[#allocation2 + $0x70] sm:$0xff]
    %v151 = vld [vmem:[#allocation2 + $0x78] sm:$0xff]
    %v154 = vunpack.c.l.b16 %v134
    %v155 = vunpack.c.l.b16 %v135
    %v156 = vpack.c.b16 %v155, %v154
    %v174 = vunpack.c.l.b16 %v136
    %v175 = vunpack.c.h.b16 %v136
    %v176 = vunpack.c.l.b16 %v137
    %v177 = vunpack.c.h.b16 %v137
    %v178 = vunpack.c.l.b16 %v138
    %v179 = vunpack.c.h.b16 %v138
    %v180 = vunpack.c.l.b16 %v139
    %v181 = vunpack.c.h.b16 %v139
    %v182 = vunpack.c.l.b16 %v140
    %v183 = vunpack.c.h.b16 %v140
    %v184 = vunpack.c.l.b16 %v141
    %v185 = vunpack.c.h.b16 %v141
    %v186 = vunpack.c.l.b16 %v142
    %v187 = vunpack.c.h.b16 %v142
    %v188 = vunpack.c.l.b16 %v143
    %v189 = vunpack.c.h.b16 %v143
    %v190 = vunpack.c.l.b16 %v144
    %v191 = vunpack.c.h.b16 %v144
    %v192 = vunpack.c.l.b16 %v145
    %v193 = vunpack.c.h.b16 %v145
    %v194 = vunpack.c.l.b16 %v146
    %v195 = vunpack.c.h.b16 %v146
    %v196 = vunpack.c.l.b16 %v147
    %v197 = vunpack.c.h.b16 %v147
    %v198 = vunpack.c.l.b16 %v148
    %v199 = vunpack.c.h.b16 %v148
    %v200 = vunpack.c.l.b16 %v149
    %v201 = vunpack.c.h.b16 %v149
    %v202 = vunpack.c.l.b16 %v150
    %v203 = vunpack.c.h.b16 %v150
    %v204 = vunpack.c.l.b16 %v151
    %v205 = vunpack.c.h.b16 %v151
    %v206 = vpack.c.b16 %v176, %v174
    %v207 = vpack.c.b16 %v177, %v175
    %v208 = vpack.c.b16 %v180, %v178
    %v209 = vpack.c.b16 %v181, %v179
    %v210 = vpack.c.b16 %v184, %v182
    %v211 = vpack.c.b16 %v185, %v183
    %v212 = vpack.c.b16 %v188, %v186
    %v213 = vpack.c.b16 %v189, %v187
    %v214 = vpack.c.b16 %v192, %v190
    %v215 = vpack.c.b16 %v193, %v191
    %v216 = vpack.c.b16 %v196, %v194
    %v217 = vpack.c.b16 %v197, %v195
    %v218 = vpack.c.b16 %v200, %v198
    %v219 = vpack.c.b16 %v201, %v199
    %v220 = vpack.c.b16 %v204, %v202
    %v221 = vpack.c.b16 %v205, %v203
    %238 = vmatprep.subr.bf16.mxu0 %v207
    %239 = vmatpush1.bf16.msra.mxu0 %v206
    %240 = vmatprep.subr.bf16.mxu0 %v209
    %241 = vmatpush1.bf16.msra.mxu0 %v208
    %242 = vmatprep.subr.bf16.mxu0 %v211
    %243 = vmatpush1.bf16.msra.mxu0 %v210
    %244 = vmatprep.subr.bf16.mxu0 %v213
    %245 = vmatpush1.bf16.msra.mxu0 %v212
    %246 = vmatprep.subr.bf16.mxu0 %v215
    %247 = vmatpush1.bf16.msra.mxu0 %v214
    %248 = vmatprep.subr.bf16.mxu0 %v217
    %249 = vmatpush1.bf16.msra.mxu0 %v216
    %250 = vmatprep.subr.bf16.mxu0 %v219
    %251 = vmatpush1.bf16.msra.mxu0 %v218
    %252 = vmatprep.subr.bf16.mxu0 %v221
    %253 = vmatpush1.bf16.msra.mxu0 %v220
    %254 = vmatprep.subr.bf16.mxu0 0
    %255 = vmatpush1.bf16.msra.mxu0 0
    %256 = vmatprep.subr.bf16.mxu0 0
    %257 = vmatpush1.bf16.msra.mxu0 0
    %258 = vmatprep.subr.bf16.mxu0 0
    %259 = vmatpush1.bf16.msra.mxu0 0
    %260 = vmatprep.subr.bf16.mxu0 0
    %261 = vmatpush1.bf16.msra.mxu0 0
    %262 = vmatprep.subr.bf16.mxu0 0
    %263 = vmatpush1.bf16.msra.mxu0 0
    %264 = vmatprep.subr.bf16.mxu0 0
    %265 = vmatpush1.bf16.msra.mxu0 0
    %266 = vmatprep.subr.bf16.mxu0 0
    %267 = vmatpush1.bf16.msra.mxu0 0
    %268 = vmatprep.subr.bf16.mxu0 0
    %269 = vmatpush1.bf16.msra.mxu0 0
    %270 = vmatprep.mubr.bf16.mxu0 0
    %271 = vmatmul.mubr.bf16.gmra.mrb[0].mxu0 %v156
    %v272 = vpop.f32.mrb[0].mxu0
    %v273 = vadd.f32 0.0, %v272
    %v274 = vpop.f32.mrb[0].mxu0
    %v275 = vadd.f32 0.0, %v274
    %v276 = vpop.f32.mrb[0].mxu0
    %v277 = vadd.f32 0.0, %v276
    %v278 = vpop.f32.mrb[0].mxu0
    %v279 = vadd.f32 0.0, %v278
    %280 = vdwg.mxu0
    %v281 = vpack.c.bf16 %v277, %v273
    %v282 = vpack.c.bf16 %v279, %v275
    %v283 = vld [vmem:[#allocation4] sm:$0x3]
    %v286 = vunpack.c.l.s4 1966171168
    %v287 = vunpack.c.0.s8 %v286
    %v288 = vlaneseq
    %v289 = vshrl.u32 %v288, 7
    %v290 = vsub.s32 %v287, %v289
    %v291 = vrot.slane %v283, %v290
    %v292 = vcombine.high %v291, %v291
    %v294 = vunpack.c.l.s4 1966171168
    %v295 = vunpack.c.0.s8 %v294
    %v296 = vlaneseq
    %v297 = vshrl.u32 %v296, 7
    %v298 = vsub.s32 %v295, %v297
    %v299 = vrot.slane %v291, %v298
    %v301 = vunpack.c.l.s4 1966171168
    %v302 = vunpack.c.0.s8 %v301
    %v303 = vlaneseq
    %v304 = vshrl.u32 %v303, 7
    %v305 = vsub.s32 %v302, %v304
    %v306 = vrot.slane %v292, %v305
    %v308 = vpack.i.b16 %v299, %v299
    %v310 = vlaneseq
    %v311 = vshrl.u32 %v310, 7
    %v312 = vsub.s32 0, %v311
    %v313 = vrot.slane %v308, %v312
    %v315 = vpack.i.b16 %v306, %v306
    %v317 = vlaneseq
    %v318 = vshrl.u32 %v317, 7
    %v319 = vsub.s32 0, %v318
    %v320 = vrot.slane %v315, %v319
    %v321 = vadd.bf16 %v281, %v313
    %v322 = vadd.bf16 %v282, %v320
    %v323 = vmax.bf16 %v321, 0
    %v324 = vmax.bf16 %v322, 0
    %v325 = vld [vmem:[#allocation6] sm:$0xff]
    %v326 = vld [vmem:[#allocation6 + $0x8] sm:$0xff]
    %v327 = vld [vmem:[#allocation6 + $0x10] sm:$0xff]
    %v328 = vld [vmem:[#allocation6 + $0x18] sm:$0xff]
    %v329 = vld [vmem:[#allocation6 + $0x20] sm:$0xff]
    %v330 = vld [vmem:[#allocation6 + $0x28] sm:$0xff]
    %v331 = vld [vmem:[#allocation6 + $0x30] sm:$0xff]
    %v332 = vld [vmem:[#allocation6 + $0x38] sm:$0xff]
    %v333 = vld [vmem:[#allocation6 + $0x40] sm:$0xff]
    %v334 = vld [vmem:[#allocation6 + $0x48] sm:$0xff]
    %v335 = vld [vmem:[#allocation6 + $0x50] sm:$0xff]
    %v336 = vld [vmem:[#allocation6 + $0x58] sm:$0xff]
    %v337 = vld [vmem:[#allocation6 + $0x60] sm:$0xff]
    %v338 = vld [vmem:[#allocation6 + $0x68] sm:$0xff]
    %v339 = vld [vmem:[#allocation6 + $0x70] sm:$0xff]
    %v340 = vld [vmem:[#allocation6 + $0x78] sm:$0xff]
    %v341 = vld [vmem:[#allocation6 + $0x80] sm:$0xff]
    %v342 = vld [vmem:[#allocation6 + $0x88] sm:$0xff]
    %v343 = vld [vmem:[#allocation6 + $0x90] sm:$0xff]
    %v344 = vld [vmem:[#allocation6 + $0x98] sm:$0xff]
    %v345 = vld [vmem:[#allocation6 + $0xa0] sm:$0xff]
    %v346 = vld [vmem:[#allocation6 + $0xa8] sm:$0xff]
    %v347 = vld [vmem:[#allocation6 + $0xb0] sm:$0xff]
    %v348 = vld [vmem:[#allocation6 + $0xb8] sm:$0xff]
    %v349 = vld [vmem:[#allocation6 + $0xc0] sm:$0xff]
    %v350 = vld [vmem:[#allocation6 + $0xc8] sm:$0xff]
    %v351 = vld [vmem:[#allocation6 + $0xd0] sm:$0xff]
    %v352 = vld [vmem:[#allocation6 + $0xd8] sm:$0xff]
    %v353 = vld [vmem:[#allocation6 + $0xe0] sm:$0xff]
    %v354 = vld [vmem:[#allocation6 + $0xe8] sm:$0xff]
    %v355 = vld [vmem:[#allocation6 + $0xf0] sm:$0xff]
    %v356 = vld [vmem:[#allocation6 + $0xf8] sm:$0xff]
    %v357 = vld [vmem:[#allocation6 + $0x100] sm:$0xff]
    %v358 = vld [vmem:[#allocation6 + $0x108] sm:$0xff]
    %v359 = vld [vmem:[#allocation6 + $0x110] sm:$0xff]
    %v360 = vld [vmem:[#allocation6 + $0x118] sm:$0xff]
    %v361 = vld [vmem:[#allocation6 + $0x120] sm:$0xff]
    %v362 = vld [vmem:[#allocation6 + $0x128] sm:$0xff]
    %v363 = vld [vmem:[#allocation6 + $0x130] sm:$0xff]
    %v364 = vld [vmem:[#allocation6 + $0x138] sm:$0xff]
    %v365 = vld [vmem:[#allocation6 + $0x140] sm:$0xff]
    %v366 = vld [vmem:[#allocation6 + $0x148] sm:$0xff]
    %v367 = vld [vmem:[#allocation6 + $0x150] sm:$0xff]
    %v368 = vld [vmem:[#allocation6 + $0x158] sm:$0xff]
    %v369 = vld [vmem:[#allocation6 + $0x160] sm:$0xff]
    %v370 = vld [vmem:[#allocation6 + $0x168] sm:$0xff]
    %v371 = vld [vmem:[#allocation6 + $0x170] sm:$0xff]
    %v372 = vld [vmem:[#allocation6 + $0x178] sm:$0xff]
    %v373 = vld [vmem:[#allocation6 + $0x180] sm:$0xff]
    %v374 = vld [vmem:[#allocation6 + $0x188] sm:$0xff]
    %v375 = vld [vmem:[#allocation6 + $0x190] sm:$0xff]
    %v376 = vld [vmem:[#allocation6 + $0x198] sm:$0xff]
    %v377 = vld [vmem:[#allocation6 + $0x1a0] sm:$0xff]
    %v378 = vld [vmem:[#allocation6 + $0x1a8] sm:$0xff]
    %v379 = vld [vmem:[#allocation6 + $0x1b0] sm:$0xff]
    %v380 = vld [vmem:[#allocation6 + $0x1b8] sm:$0xff]
    %v381 = vld [vmem:[#allocation6 + $0x1c0] sm:$0xff]
    %v382 = vld [vmem:[#allocation6 + $0x1c8] sm:$0xff]
    %v383 = vld [vmem:[#allocation6 + $0x1d0] sm:$0xff]
    %v384 = vld [vmem:[#allocation6 + $0x1d8] sm:$0xff]
    %v385 = vld [vmem:[#allocation6 + $0x1e0] sm:$0xff]
    %v386 = vld [vmem:[#allocation6 + $0x1e8] sm:$0xff]
    %v387 = vld [vmem:[#allocation6 + $0x1f0] sm:$0xff]
    %v388 = vld [vmem:[#allocation6 + $0x1f8] sm:$0xff]
    %v453 = vunpack.c.l.b16 %v325
    %v454 = vunpack.c.h.b16 %v325
    %v455 = vunpack.c.l.b16 %v326
    %v456 = vunpack.c.h.b16 %v326
    %v457 = vunpack.c.l.b16 %v327
    %v458 = vunpack.c.h.b16 %v327
    %v459 = vunpack.c.l.b16 %v328
    %v460 = vunpack.c.h.b16 %v328
    %v461 = vunpack.c.l.b16 %v329
    %v462 = vunpack.c.h.b16 %v329
    %v463 = vunpack.c.l.b16 %v330
    %v464 = vunpack.c.h.b16 %v330
    %v465 = vunpack.c.l.b16 %v331
    %v466 = vunpack.c.h.b16 %v331
    %v467 = vunpack.c.l.b16 %v332
    %v468 = vunpack.c.h.b16 %v332
    %v469 = vunpack.c.l.b16 %v333
    %v470 = vunpack.c.h.b16 %v333
    %v471 = vunpack.c.l.b16 %v334
    %v472 = vunpack.c.h.b16 %v334
    %v473 = vunpack.c.l.b16 %v335
    %v474 = vunpack.c.h.b16 %v335
    %v475 = vunpack.c.l.b16 %v336
    %v476 = vunpack.c.h.b16 %v336
    %v477 = vunpack.c.l.b16 %v337
    %v478 = vunpack.c.h.b16 %v337
    %v479 = vunpack.c.l.b16 %v338
    %v480 = vunpack.c.h.b16 %v338
    %v481 = vunpack.c.l.b16 %v339
    %v482 = vunpack.c.h.b16 %v339
    %v483 = vunpack.c.l.b16 %v340
    %v484 = vunpack.c.h.b16 %v340
    %v485 = vunpack.c.l.b16 %v341
    %v486 = vunpack.c.h.b16 %v341
    %v487 = vunpack.c.l.b16 %v342
    %v488 = vunpack.c.h.b16 %v342
    %v489 = vunpack.c.l.b16 %v343
    %v490 = vunpack.c.h.b16 %v343
    %v491 = vunpack.c.l.b16 %v344
    %v492 = vunpack.c.h.b16 %v344
    %v493 = vunpack.c.l.b16 %v345
    %v494 = vunpack.c.h.b16 %v345
    %v495 = vunpack.c.l.b16 %v346
    %v496 = vunpack.c.h.b16 %v346
    %v497 = vunpack.c.l.b16 %v347
    %v498 = vunpack.c.h.b16 %v347
    %v499 = vunpack.c.l.b16 %v348
    %v500 = vunpack.c.h.b16 %v348
    %v501 = vunpack.c.l.b16 %v349
    %v502 = vunpack.c.h.b16 %v349
    %v503 = vunpack.c.l.b16 %v350
    %v504 = vunpack.c.h.b16 %v350
    %v505 = vunpack.c.l.b16 %v351
    %v506 = vunpack.c.h.b16 %v351
    %v507 = vunpack.c.l.b16 %v352
    %v508 = vunpack.c.h.b16 %v352
    %v509 = vunpack.c.l.b16 %v353
    %v510 = vunpack.c.h.b16 %v353
    %v511 = vunpack.c.l.b16 %v354
    %v512 = vunpack.c.h.b16 %v354
    %v513 = vunpack.c.l.b16 %v355
    %v514 = vunpack.c.h.b16 %v355
    %v515 = vunpack.c.l.b16 %v356
    %v516 = vunpack.c.h.b16 %v356
    %v517 = vunpack.c.l.b16 %v357
    %v518 = vunpack.c.h.b16 %v357
    %v519 = vunpack.c.l.b16 %v358
    %v520 = vunpack.c.h.b16 %v358
    %v521 = vunpack.c.l.b16 %v359
    %v522 = vunpack.c.h.b16 %v359
    %v523 = vunpack.c.l.b16 %v360
    %v524 = vunpack.c.h.b16 %v360
    %v525 = vunpack.c.l.b16 %v361
    %v526 = vunpack.c.h.b16 %v361
    %v527 = vunpack.c.l.b16 %v362
    %v528 = vunpack.c.h.b16 %v362
    %v529 = vunpack.c.l.b16 %v363
    %v530 = vunpack.c.h.b16 %v363
    %v531 = vunpack.c.l.b16 %v364
    %v532 = vunpack.c.h.b16 %v364
    %v533 = vunpack.c.l.b16 %v365
    %v534 = vunpack.c.h.b16 %v365
    %v535 = vunpack.c.l.b16 %v366
    %v536 = vunpack.c.h.b16 %v366
    %v537 = vunpack.c.l.b16 %v367
    %v538 = vunpack.c.h.b16 %v367
    %v539 = vunpack.c.l.b16 %v368
    %v540 = vunpack.c.h.b16 %v368
    %v541 = vunpack.c.l.b16 %v369
    %v542 = vunpack.c.h.b16 %v369
    %v543 = vunpack.c.l.b16 %v370
    %v544 = vunpack.c.h.b16 %v370
    %v545 = vunpack.c.l.b16 %v371
    %v546 = vunpack.c.h.b16 %v371
    %v547 = vunpack.c.l.b16 %v372
    %v548 = vunpack.c.h.b16 %v372
    %v549 = vunpack.c.l.b16 %v373
    %v550 = vunpack.c.h.b16 %v373
    %v551 = vunpack.c.l.b16 %v374
    %v552 = vunpack.c.h.b16 %v374
    %v553 = vunpack.c.l.b16 %v375
    %v554 = vunpack.c.h.b16 %v375
    %v555 = vunpack.c.l.b16 %v376
    %v556 = vunpack.c.h.b16 %v376
    %v557 = vunpack.c.l.b16 %v377
    %v558 = vunpack.c.h.b16 %v377
    %v559 = vunpack.c.l.b16 %v378
    %v560 = vunpack.c.h.b16 %v378
    %v561 = vunpack.c.l.b16 %v379
    %v562 = vunpack.c.h.b16 %v379
    %v563 = vunpack.c.l.b16 %v380
    %v564 = vunpack.c.h.b16 %v380
    %v565 = vunpack.c.l.b16 %v381
    %v566 = vunpack.c.h.b16 %v381
    %v567 = vunpack.c.l.b16 %v382
    %v568 = vunpack.c.h.b16 %v382
    %v569 = vunpack.c.l.b16 %v383
    %v570 = vunpack.c.h.b16 %v383
    %v571 = vunpack.c.l.b16 %v384
    %v572 = vunpack.c.h.b16 %v384
    %v573 = vunpack.c.l.b16 %v385
    %v574 = vunpack.c.h.b16 %v385
    %v575 = vunpack.c.l.b16 %v386
    %v576 = vunpack.c.h.b16 %v386
    %v577 = vunpack.c.l.b16 %v387
    %v578 = vunpack.c.h.b16 %v387
    %v579 = vunpack.c.l.b16 %v388
    %v580 = vunpack.c.h.b16 %v388
    %v581 = vpack.c.b16 %v457, %v453
    %v582 = vpack.c.b16 %v458, %v454
    %v583 = vpack.c.b16 %v459, %v455
    %v584 = vpack.c.b16 %v460, %v456
    %v585 = vpack.c.b16 %v465, %v461
    %v586 = vpack.c.b16 %v466, %v462
    %v587 = vpack.c.b16 %v467, %v463
    %v588 = vpack.c.b16 %v468, %v464
    %v589 = vpack.c.b16 %v473, %v469
    %v590 = vpack.c.b16 %v474, %v470
    %v591 = vpack.c.b16 %v475, %v471
    %v592 = vpack.c.b16 %v476, %v472
    %v593 = vpack.c.b16 %v481, %v477
    %v594 = vpack.c.b16 %v482, %v478
    %v595 = vpack.c.b16 %v483, %v479
    %v596 = vpack.c.b16 %v484, %v480
    %v597 = vpack.c.b16 %v489, %v485
    %v598 = vpack.c.b16 %v490, %v486
    %v599 = vpack.c.b16 %v491, %v487
    %v600 = vpack.c.b16 %v492, %v488
    %v601 = vpack.c.b16 %v497, %v493
    %v602 = vpack.c.b16 %v498, %v494
    %v603 = vpack.c.b16 %v499, %v495
    %v604 = vpack.c.b16 %v500, %v496
    %v605 = vpack.c.b16 %v505, %v501
    %v606 = vpack.c.b16 %v506, %v502
    %v607 = vpack.c.b16 %v507, %v503
    %v608 = vpack.c.b16 %v508, %v504
    %v609 = vpack.c.b16 %v513, %v509
    %v610 = vpack.c.b16 %v514, %v510
    %v611 = vpack.c.b16 %v515, %v511
    %v612 = vpack.c.b16 %v516, %v512
    %v613 = vpack.c.b16 %v521, %v517
    %v614 = vpack.c.b16 %v522, %v518
    %v615 = vpack.c.b16 %v523, %v519
    %v616 = vpack.c.b16 %v524, %v520
    %v617 = vpack.c.b16 %v529, %v525
    %v618 = vpack.c.b16 %v530, %v526
    %v619 = vpack.c.b16 %v531, %v527
    %v620 = vpack.c.b16 %v532, %v528
    %v621 = vpack.c.b16 %v537, %v533
    %v622 = vpack.c.b16 %v538, %v534
    %v623 = vpack.c.b16 %v539, %v535
    %v624 = vpack.c.b16 %v540, %v536
    %v625 = vpack.c.b16 %v545, %v541
    %v626 = vpack.c.b16 %v546, %v542
    %v627 = vpack.c.b16 %v547, %v543
    %v628 = vpack.c.b16 %v548, %v544
    %v629 = vpack.c.b16 %v553, %v549
    %v630 = vpack.c.b16 %v554, %v550
    %v631 = vpack.c.b16 %v555, %v551
    %v632 = vpack.c.b16 %v556, %v552
    %v633 = vpack.c.b16 %v561, %v557
    %v634 = vpack.c.b16 %v562, %v558
    %v635 = vpack.c.b16 %v563, %v559
    %v636 = vpack.c.b16 %v564, %v560
    %v637 = vpack.c.b16 %v569, %v565
    %v638 = vpack.c.b16 %v570, %v566
    %v639 = vpack.c.b16 %v571, %v567
    %v640 = vpack.c.b16 %v572, %v568
    %v641 = vpack.c.b16 %v577, %v573
    %v642 = vpack.c.b16 %v578, %v574
    %v643 = vpack.c.b16 %v579, %v575
    %v644 = vpack.c.b16 %v580, %v576
    %709 = vmatprep.subr.bf16.mxu0 %v582
    %710 = vmatpush1.bf16.msra.mxu0 %v581
    %711 = vmatprep.subr.bf16.mxu0 %v586
    %712 = vmatpush1.bf16.msra.mxu0 %v585
    %713 = vmatprep.subr.bf16.mxu0 %v590
    %714 = vmatpush1.bf16.msra.mxu0 %v589
    %715 = vmatprep.subr.bf16.mxu0 %v594
    %716 = vmatpush1.bf16.msra.mxu0 %v593
    %717 = vmatprep.subr.bf16.mxu0 %v598
    %718 = vmatpush1.bf16.msra.mxu0 %v597
    %719 = vmatprep.subr.bf16.mxu0 %v602
    %720 = vmatpush1.bf16.msra.mxu0 %v601
    %721 = vmatprep.subr.bf16.mxu0 %v606
    %722 = vmatpush1.bf16.msra.mxu0 %v605
    %723 = vmatprep.subr.bf16.mxu0 %v610
    %724 = vmatpush1.bf16.msra.mxu0 %v609
    %725 = vmatprep.subr.bf16.mxu0 %v614
    %726 = vmatpush1.bf16.msra.mxu0 %v613
    %727 = vmatprep.subr.bf16.mxu0 %v618
    %728 = vmatpush1.bf16.msra.mxu0 %v617
    %729 = vmatprep.subr.bf16.mxu0 %v622
    %730 = vmatpush1.bf16.msra.mxu0 %v621
    %731 = vmatprep.subr.bf16.mxu0 %v626
    %732 = vmatpush1.bf16.msra.mxu0 %v625
    %733 = vmatprep.subr.bf16.mxu0 %v630
    %734 = vmatpush1.bf16.msra.mxu0 %v629
    %735 = vmatprep.subr.bf16.mxu0 %v634
    %736 = vmatpush1.bf16.msra.mxu0 %v633
    %737 = vmatprep.subr.bf16.mxu0 %v638
    %738 = vmatpush1.bf16.msra.mxu0 %v637
    %739 = vmatprep.subr.bf16.mxu0 %v642
    %740 = vmatpush1.bf16.msra.mxu0 %v641
    %741 = vmatprep.mubr.bf16.mxu0 %v324
    %742 = vmatmul.mubr.bf16.gmra.mrb[0].mxu0 %v323
    %v743 = vpop.f32.mrb[0].mxu0
    %v744 = vadd.f32 0.0, %v743
    %v745 = vpop.f32.mrb[0].mxu0
    %v746 = vadd.f32 0.0, %v745
    %v747 = vpop.f32.mrb[0].mxu0
    %v748 = vadd.f32 0.0, %v747
    %v749 = vpop.f32.mrb[0].mxu0
    %v750 = vadd.f32 0.0, %v749
    %751 = vdwg.mxu0
    %752 = vmatprep.subr.bf16.mxu0 %v584
    %753 = vmatpush1.bf16.msra.mxu0 %v583
    %754 = vmatprep.subr.bf16.mxu0 %v588
    %755 = vmatpush1.bf16.msra.mxu0 %v587
    %756 = vmatprep.subr.bf16.mxu0 %v592
    %757 = vmatpush1.bf16.msra.mxu0 %v591
    %758 = vmatprep.subr.bf16.mxu0 %v596
    %759 = vmatpush1.bf16.msra.mxu0 %v595
    %760 = vmatprep.subr.bf16.mxu0 %v600
    %761 = vmatpush1.bf16.msra.mxu0 %v599
    %762 = vmatprep.subr.bf16.mxu0 %v604
    %763 = vmatpush1.bf16.msra.mxu0 %v603
    %764 = vmatprep.subr.bf16.mxu0 %v608
    %765 = vmatpush1.bf16.msra.mxu0 %v607
    %766 = vmatprep.subr.bf16.mxu0 %v612
    %767 = vmatpush1.bf16.msra.mxu0 %v611
    %768 = vmatprep.subr.bf16.mxu0 %v616
    %769 = vmatpush1.bf16.msra.mxu0 %v615
    %770 = vmatprep.subr.bf16.mxu0 %v620
    %771 = vmatpush1.bf16.msra.mxu0 %v619
    %772 = vmatprep.subr.bf16.mxu0 %v624
    %773 = vmatpush1.bf16.msra.mxu0 %v623
    %774 = vmatprep.subr.bf16.mxu0 %v628
    %775 = vmatpush1.bf16.msra.mxu0 %v627
    %776 = vmatprep.subr.bf16.mxu0 %v632
    %777 = vmatpush1.bf16.msra.mxu0 %v631
    %778 = vmatprep.subr.bf16.mxu0 %v636
    %779 = vmatpush1.bf16.msra.mxu0 %v635
    %780 = vmatprep.subr.bf16.mxu0 %v640
    %781 = vmatpush1.bf16.msra.mxu0 %v639
    %782 = vmatprep.subr.bf16.mxu0 %v644
    %783 = vmatpush1.bf16.msra.mxu0 %v643
    %784 = vmatprep.mubr.bf16.mxu0 %v324
    %785 = vmatmul.mubr.bf16.gmra.mrb[0].mxu0 %v323
    %v786 = vpop.f32.mrb[0].mxu0
    %v787 = vadd.f32 0.0, %v786
    %v788 = vpop.f32.mrb[0].mxu0
    %v789 = vadd.f32 0.0, %v788
    %v790 = vpop.f32.mrb[0].mxu0
    %v791 = vadd.f32 0.0, %v790
    %v792 = vpop.f32.mrb[0].mxu0
    %v793 = vadd.f32 0.0, %v792
    %794 = vdwg.mxu0
    %v795 = vpack.c.bf16 %v748, %v744
    %v796 = vpack.c.bf16 %v750, %v746
    %v797 = vpack.c.bf16 %v791, %v787
    %v798 = vpack.c.bf16 %v793, %v789
    %v799 = vld [vmem:[#allocation7] sm:$0xf]
    %v802 = vunpack.c.l.s4 1966171168
    %v803 = vunpack.c.0.s8 %v802
    %v804 = vlaneseq
    %v805 = vshrl.u32 %v804, 7
    %v806 = vsub.s32 %v803, %v805
    %v807 = vrot.slane %v799, %v806
    %v808 = vcombine.high %v807, %v807
    %v810 = vunpack.c.l.s4 1966171168
    %v811 = vunpack.c.0.s8 %v810
    %v812 = vlaneseq
    %v813 = vshrl.u32 %v812, 7
    %v814 = vsub.s32 %v811, %v813
    %v815 = vrot.slane %v807, %v814
    %v817 = vunpack.c.l.s4 1966171168
    %v818 = vunpack.c.0.s8 %v817
    %v819 = vlaneseq
    %v820 = vshrl.u32 %v819, 7
    %v821 = vsub.s32 %v818, %v820
    %v822 = vrot.slane %v808, %v821
    %v823 = vcombine.high %v815, %v815
    %v824 = vcombine.high %v822, %v822
    %v826 = vpack.i.b16 %v815, %v815
    %v828 = vlaneseq
    %v829 = vshrl.u32 %v828, 7
    %v830 = vsub.s32 0, %v829
    %v831 = vrot.slane %v826, %v830
    %v833 = vpack.i.b16 %v822, %v822
    %v835 = vlaneseq
    %v836 = vshrl.u32 %v835, 7
    %v837 = vsub.s32 0, %v836
    %v838 = vrot.slane %v833, %v837
    %v840 = vpack.i.b16 %v823, %v823
    %v842 = vlaneseq
    %v843 = vshrl.u32 %v842, 7
    %v844 = vsub.s32 0, %v843
    %v845 = vrot.slane %v840, %v844
    %v847 = vpack.i.b16 %v824, %v824
    %v849 = vlaneseq
    %v850 = vshrl.u32 %v849, 7
    %v851 = vsub.s32 0, %v850
    %v852 = vrot.slane %v847, %v851
    %v853 = vadd.bf16 %v795, %v831
    %v854 = vadd.bf16 %v796, %v838
    %v855 = vadd.bf16 %v797, %v845
    %v856 = vadd.bf16 %v798, %v852
    %v857 = vmax.bf16 %v853, 0
    %v858 = vmax.bf16 %v854, 0
    %v859 = vmax.bf16 %v855, 0
    %v860 = vmax.bf16 %v856, 0
    %v861 = vld [vmem:[#allocation9] sm:$0xff]
    %v862 = vld [vmem:[#allocation9 + $0x8] sm:$0xff]
    %v863 = vld [vmem:[#allocation9 + $0x10] sm:$0xff]
    %v864 = vld [vmem:[#allocation9 + $0x18] sm:$0xff]
    %v865 = vld [vmem:[#allocation9 + $0x20] sm:$0xff]
    %v866 = vld [vmem:[#allocation9 + $0x28] sm:$0xff]
    %v867 = vld [vmem:[#allocation9 + $0x30] sm:$0xff]
    %v868 = vld [vmem:[#allocation9 + $0x38] sm:$0xff]
    %v869 = vld [vmem:[#allocation9 + $0x40] sm:$0xff]
    %v870 = vld [vmem:[#allocation9 + $0x48] sm:$0xff]
    %v871 = vld [vmem:[#allocation9 + $0x50] sm:$0xff]
    %v872 = vld [vmem:[#allocation9 + $0x58] sm:$0xff]
    %v873 = vld [vmem:[#allocation9 + $0x60] sm:$0xff]
    %v874 = vld [vmem:[#allocation9 + $0x68] sm:$0xff]
    %v875 = vld [vmem:[#allocation9 + $0x70] sm:$0xff]
    %v876 = vld [vmem:[#allocation9 + $0x78] sm:$0xff]
    %v877 = vld [vmem:[#allocation9 + $0x80] sm:$0xff]
    %v878 = vld [vmem:[#allocation9 + $0x88] sm:$0xff]
    %v879 = vld [vmem:[#allocation9 + $0x90] sm:$0xff]
    %v880 = vld [vmem:[#allocation9 + $0x98] sm:$0xff]
    %v881 = vld [vmem:[#allocation9 + $0xa0] sm:$0xff]
    %v882 = vld [vmem:[#allocation9 + $0xa8] sm:$0xff]
    %v883 = vld [vmem:[#allocation9 + $0xb0] sm:$0xff]
    %v884 = vld [vmem:[#allocation9 + $0xb8] sm:$0xff]
    %v885 = vld [vmem:[#allocation9 + $0xc0] sm:$0xff]
    %v886 = vld [vmem:[#allocation9 + $0xc8] sm:$0xff]
    %v887 = vld [vmem:[#allocation9 + $0xd0] sm:$0xff]
    %v888 = vld [vmem:[#allocation9 + $0xd8] sm:$0xff]
    %v889 = vld [vmem:[#allocation9 + $0xe0] sm:$0xff]
    %v890 = vld [vmem:[#allocation9 + $0xe8] sm:$0xff]
    %v891 = vld [vmem:[#allocation9 + $0xf0] sm:$0xff]
    %v892 = vld [vmem:[#allocation9 + $0xf8] sm:$0xff]
    %v893 = vld [vmem:[#allocation9 + $0x100] sm:$0xff]
    %v894 = vld [vmem:[#allocation9 + $0x108] sm:$0xff]
    %v895 = vld [vmem:[#allocation9 + $0x110] sm:$0xff]
    %v896 = vld [vmem:[#allocation9 + $0x118] sm:$0xff]
    %v897 = vld [vmem:[#allocation9 + $0x120] sm:$0xff]
    %v898 = vld [vmem:[#allocation9 + $0x128] sm:$0xff]
    %v899 = vld [vmem:[#allocation9 + $0x130] sm:$0xff]
    %v900 = vld [vmem:[#allocation9 + $0x138] sm:$0xff]
    %v901 = vld [vmem:[#allocation9 + $0x140] sm:$0xff]
    %v902 = vld [vmem:[#allocation9 + $0x148] sm:$0xff]
    %v903 = vld [vmem:[#allocation9 + $0x150] sm:$0xff]
    %v904 = vld [vmem:[#allocation9 + $0x158] sm:$0xff]
    %v905 = vld [vmem:[#allocation9 + $0x160] sm:$0xff]
    %v906 = vld [vmem:[#allocation9 + $0x168] sm:$0xff]
    %v907 = vld [vmem:[#allocation9 + $0x170] sm:$0xff]
    %v908 = vld [vmem:[#allocation9 + $0x178] sm:$0xff]
    %v909 = vld [vmem:[#allocation9 + $0x180] sm:$0xff]
    %v910 = vld [vmem:[#allocation9 + $0x188] sm:$0xff]
    %v911 = vld [vmem:[#allocation9 + $0x190] sm:$0xff]
    %v912 = vld [vmem:[#allocation9 + $0x198] sm:$0xff]
    %v913 = vld [vmem:[#allocation9 + $0x1a0] sm:$0xff]
    %v914 = vld [vmem:[#allocation9 + $0x1a8] sm:$0xff]
    %v915 = vld [vmem:[#allocation9 + $0x1b0] sm:$0xff]
    %v916 = vld [vmem:[#allocation9 + $0x1b8] sm:$0xff]
    %v917 = vld [vmem:[#allocation9 + $0x1c0] sm:$0xff]
    %v918 = vld [vmem:[#allocation9 + $0x1c8] sm:$0xff]
    %v919 = vld [vmem:[#allocation9 + $0x1d0] sm:$0xff]
    %v920 = vld [vmem:[#allocation9 + $0x1d8] sm:$0xff]
    %v921 = vld [vmem:[#allocation9 + $0x1e0] sm:$0xff]
    %v922 = vld [vmem:[#allocation9 + $0x1e8] sm:$0xff]
    %v923 = vld [vmem:[#allocation9 + $0x1f0] sm:$0xff]
    %v924 = vld [vmem:[#allocation9 + $0x1f8] sm:$0xff]
    %v925 = vld [vmem:[#allocation9 + $0x200] sm:$0xff]
    %v926 = vld [vmem:[#allocation9 + $0x208] sm:$0xff]
    %v927 = vld [vmem:[#allocation9 + $0x210] sm:$0xff]
    %v928 = vld [vmem:[#allocation9 + $0x218] sm:$0xff]
    %v929 = vld [vmem:[#allocation9 + $0x220] sm:$0xff]
    %v930 = vld [vmem:[#allocation9 + $0x228] sm:$0xff]
    %v931 = vld [vmem:[#allocation9 + $0x230] sm:$0xff]
    %v932 = vld [vmem:[#allocation9 + $0x238] sm:$0xff]
    %v933 = vld [vmem:[#allocation9 + $0x240] sm:$0xff]
    %v934 = vld [vmem:[#allocation9 + $0x248] sm:$0xff]
    %v935 = vld [vmem:[#allocation9 + $0x250] sm:$0xff]
    %v936 = vld [vmem:[#allocation9 + $0x258] sm:$0xff]
    %v937 = vld [vmem:[#allocation9 + $0x260] sm:$0xff]
    %v938 = vld [vmem:[#allocation9 + $0x268] sm:$0xff]
    %v939 = vld [vmem:[#allocation9 + $0x270] sm:$0xff]
    %v940 = vld [vmem:[#allocation9 + $0x278] sm:$0xff]
    %v941 = vld [vmem:[#allocation9 + $0x280] sm:$0xff]
    %v942 = vld [vmem:[#allocation9 + $0x288] sm:$0xff]
    %v943 = vld [vmem:[#allocation9 + $0x290] sm:$0xff]
    %v944 = vld [vmem:[#allocation9 + $0x298] sm:$0xff]
    %v945 = vld [vmem:[#allocation9 + $0x2a0] sm:$0xff]
    %v946 = vld [vmem:[#allocation9 + $0x2a8] sm:$0xff]
    %v947 = vld [vmem:[#allocation9 + $0x2b0] sm:$0xff]
    %v948 = vld [vmem:[#allocation9 + $0x2b8] sm:$0xff]
    %v949 = vld [vmem:[#allocation9 + $0x2c0] sm:$0xff]
    %v950 = vld [vmem:[#allocation9 + $0x2c8] sm:$0xff]
    %v951 = vld [vmem:[#allocation9 + $0x2d0] sm:$0xff]
    %v952 = vld [vmem:[#allocation9 + $0x2d8] sm:$0xff]
    %v953 = vld [vmem:[#allocation9 + $0x2e0] sm:$0xff]
    %v954 = vld [vmem:[#allocation9 + $0x2e8] sm:$0xff]
    %v955 = vld [vmem:[#allocation9 + $0x2f0] sm:$0xff]
    %v956 = vld [vmem:[#allocation9 + $0x2f8] sm:$0xff]
    %v957 = vld [vmem:[#allocation9 + $0x300] sm:$0xff]
    %v958 = vld [vmem:[#allocation9 + $0x308] sm:$0xff]
    %v959 = vld [vmem:[#allocation9 + $0x310] sm:$0xff]
    %v960 = vld [vmem:[#allocation9 + $0x318] sm:$0xff]
    %v961 = vld [vmem:[#allocation9 + $0x320] sm:$0xff]
    %v962 = vld [vmem:[#allocation9 + $0x328] sm:$0xff]
    %v963 = vld [vmem:[#allocation9 + $0x330] sm:$0xff]
    %v964 = vld [vmem:[#allocation9 + $0x338] sm:$0xff]
    %v965 = vld [vmem:[#allocation9 + $0x340] sm:$0xff]
    %v966 = vld [vmem:[#allocation9 + $0x348] sm:$0xff]
    %v967 = vld [vmem:[#allocation9 + $0x350] sm:$0xff]
    %v968 = vld [vmem:[#allocation9 + $0x358] sm:$0xff]
    %v969 = vld [vmem:[#allocation9 + $0x360] sm:$0xff]
    %v970 = vld [vmem:[#allocation9 + $0x368] sm:$0xff]
    %v971 = vld [vmem:[#allocation9 + $0x370] sm:$0xff]
    %v972 = vld [vmem:[#allocation9 + $0x378] sm:$0xff]
    %v973 = vld [vmem:[#allocation9 + $0x380] sm:$0xff]
    %v974 = vld [vmem:[#allocation9 + $0x388] sm:$0xff]
    %v975 = vld [vmem:[#allocation9 + $0x390] sm:$0xff]
    %v976 = vld [vmem:[#allocation9 + $0x398] sm:$0xff]
    %v977 = vld [vmem:[#allocation9 + $0x3a0] sm:$0xff]
    %v978 = vld [vmem:[#allocation9 + $0x3a8] sm:$0xff]
    %v979 = vld [vmem:[#allocation9 + $0x3b0] sm:$0xff]
    %v980 = vld [vmem:[#allocation9 + $0x3b8] sm:$0xff]
    %v981 = vld [vmem:[#allocation9 + $0x3c0] sm:$0xff]
    %v982 = vld [vmem:[#allocation9 + $0x3c8] sm:$0xff]
    %v983 = vld [vmem:[#allocation9 + $0x3d0] sm:$0xff]
    %v984 = vld [vmem:[#allocation9 + $0x3d8] sm:$0xff]
    %v985 = vld [vmem:[#allocation9 + $0x3e0] sm:$0xff]
    %v986 = vld [vmem:[#allocation9 + $0x3e8] sm:$0xff]
    %v987 = vld [vmem:[#allocation9 + $0x3f0] sm:$0xff]
    %v988 = vld [vmem:[#allocation9 + $0x3f8] sm:$0xff]
    %v989 = vld [vmem:[#allocation9 + $0x400] sm:$0xff]
    %v990 = vld [vmem:[#allocation9 + $0x408] sm:$0xff]
    %v991 = vld [vmem:[#allocation9 + $0x410] sm:$0xff]
    %v992 = vld [vmem:[#allocation9 + $0x418] sm:$0xff]
    %v993 = vld [vmem:[#allocation9 + $0x420] sm:$0xff]
    %v994 = vld [vmem:[#allocation9 + $0x428] sm:$0xff]
    %v995 = vld [vmem:[#allocation9 + $0x430] sm:$0xff]
    %v996 = vld [vmem:[#allocation9 + $0x438] sm:$0xff]
    %v997 = vld [vmem:[#allocation9 + $0x440] sm:$0xff]
    %v998 = vld [vmem:[#allocation9 + $0x448] sm:$0xff]
    %v999 = vld [vmem:[#allocation9 + $0x450] sm:$0xff]
    %v1000 = vld [vmem:[#allocation9 + $0x458] sm:$0xff]
    %v1001 = vld [vmem:[#allocation9 + $0x460] sm:$0xff]
    %v1002 = vld [vmem:[#allocation9 + $0x468] sm:$0xff]
    %v1003 = vld [vmem:[#allocation9 + $0x470] sm:$0xff]
    %v1004 = vld [vmem:[#allocation9 + $0x478] sm:$0xff]
    %v1005 = vld [vmem:[#allocation9 + $0x480] sm:$0xff]
    %v1006 = vld [vmem:[#allocation9 + $0x488] sm:$0xff]
    %v1007 = vld [vmem:[#allocation9 + $0x490] sm:$0xff]
    %v1008 = vld [vmem:[#allocation9 + $0x498] sm:$0xff]
    %v1009 = vld [vmem:[#allocation9 + $0x4a0] sm:$0xff]
    %v1010 = vld [vmem:[#allocation9 + $0x4a8] sm:$0xff]
    %v1011 = vld [vmem:[#allocation9 + $0x4b0] sm:$0xff]
    %v1012 = vld [vmem:[#allocation9 + $0x4b8] sm:$0xff]
    %v1013 = vld [vmem:[#allocation9 + $0x4c0] sm:$0xff]
    %v1014 = vld [vmem:[#allocation9 + $0x4c8] sm:$0xff]
    %v1015 = vld [vmem:[#allocation9 + $0x4d0] sm:$0xff]
    %v1016 = vld [vmem:[#allocation9 + $0x4d8] sm:$0xff]
    %v1017 = vld [vmem:[#allocation9 + $0x4e0] sm:$0xff]
    %v1018 = vld [vmem:[#allocation9 + $0x4e8] sm:$0xff]
    %v1019 = vld [vmem:[#allocation9 + $0x4f0] sm:$0xff]
    %v1020 = vld [vmem:[#allocation9 + $0x4f8] sm:$0xff]
    %v1021 = vld [vmem:[#allocation9 + $0x500] sm:$0xff]
    %v1022 = vld [vmem:[#allocation9 + $0x508] sm:$0xff]
    %v1023 = vld [vmem:[#allocation9 + $0x510] sm:$0xff]
    %v1024 = vld [vmem:[#allocation9 + $0x518] sm:$0xff]
    %v1025 = vld [vmem:[#allocation9 + $0x520] sm:$0xff]
    %v1026 = vld [vmem:[#allocation9 + $0x528] sm:$0xff]
    %v1027 = vld [vmem:[#allocation9 + $0x530] sm:$0xff]
    %v1028 = vld [vmem:[#allocation9 + $0x538] sm:$0xff]
    %v1029 = vld [vmem:[#allocation9 + $0x540] sm:$0xff]
    %v1030 = vld [vmem:[#allocation9 + $0x548] sm:$0xff]
    %v1031 = vld [vmem:[#allocation9 + $0x550] sm:$0xff]
    %v1032 = vld [vmem:[#allocation9 + $0x558] sm:$0xff]
    %v1033 = vld [vmem:[#allocation9 + $0x560] sm:$0xff]
    %v1034 = vld [vmem:[#allocation9 + $0x568] sm:$0xff]
    %v1035 = vld [vmem:[#allocation9 + $0x570] sm:$0xff]
    %v1036 = vld [vmem:[#allocation9 + $0x578] sm:$0xff]
    %v1037 = vld [vmem:[#allocation9 + $0x580] sm:$0xff]
    %v1038 = vld [vmem:[#allocation9 + $0x588] sm:$0xff]
    %v1039 = vld [vmem:[#allocation9 + $0x590] sm:$0xff]
    %v1040 = vld [vmem:[#allocation9 + $0x598] sm:$0xff]
    %v1041 = vld [vmem:[#allocation9 + $0x5a0] sm:$0xff]
    %v1042 = vld [vmem:[#allocation9 + $0x5a8] sm:$0xff]
    %v1043 = vld [vmem:[#allocation9 + $0x5b0] sm:$0xff]
    %v1044 = vld [vmem:[#allocation9 + $0x5b8] sm:$0xff]
    %v1045 = vld [vmem:[#allocation9 + $0x5c0] sm:$0xff]
    %v1046 = vld [vmem:[#allocation9 + $0x5c8] sm:$0xff]
    %v1047 = vld [vmem:[#allocation9 + $0x5d0] sm:$0xff]
    %v1048 = vld [vmem:[#allocation9 + $0x5d8] sm:$0xff]
    %v1049 = vld [vmem:[#allocation9 + $0x5e0] sm:$0xff]
    %v1050 = vld [vmem:[#allocation9 + $0x5e8] sm:$0xff]
    %v1051 = vld [vmem:[#allocation9 + $0x5f0] sm:$0xff]
    %v1052 = vld [vmem:[#allocation9 + $0x5f8] sm:$0xff]
    %v1053 = vld [vmem:[#allocation9 + $0x600] sm:$0xff]
    %v1054 = vld [vmem:[#allocation9 + $0x608] sm:$0xff]
    %v1055 = vld [vmem:[#allocation9 + $0x610] sm:$0xff]
    %v1056 = vld [vmem:[#allocation9 + $0x618] sm:$0xff]
    %v1057 = vld [vmem:[#allocation9 + $0x620] sm:$0xff]
    %v1058 = vld [vmem:[#allocation9 + $0x628] sm:$0xff]
    %v1059 = vld [vmem:[#allocation9 + $0x630] sm:$0xff]
    %v1060 = vld [vmem:[#allocation9 + $0x638] sm:$0xff]
    %v1061 = vld [vmem:[#allocation9 + $0x640] sm:$0xff]
    %v1062 = vld [vmem:[#allocation9 + $0x648] sm:$0xff]
    %v1063 = vld [vmem:[#allocation9 + $0x650] sm:$0xff]
    %v1064 = vld [vmem:[#allocation9 + $0x658] sm:$0xff]
    %v1065 = vld [vmem:[#allocation9 + $0x660] sm:$0xff]
    %v1066 = vld [vmem:[#allocation9 + $0x668] sm:$0xff]
    %v1067 = vld [vmem:[#allocation9 + $0x670] sm:$0xff]
    %v1068 = vld [vmem:[#allocation9 + $0x678] sm:$0xff]
    %v1069 = vld [vmem:[#allocation9 + $0x680] sm:$0xff]
    %v1070 = vld [vmem:[#allocation9 + $0x688] sm:$0xff]
    %v1071 = vld [vmem:[#allocation9 + $0x690] sm:$0xff]
    %v1072 = vld [vmem:[#allocation9 + $0x698] sm:$0xff]
    %v1073 = vld [vmem:[#allocation9 + $0x6a0] sm:$0xff]
    %v1074 = vld [vmem:[#allocation9 + $0x6a8] sm:$0xff]
    %v1075 = vld [vmem:[#allocation9 + $0x6b0] sm:$0xff]
    %v1076 = vld [vmem:[#allocation9 + $0x6b8] sm:$0xff]
    %v1077 = vld [vmem:[#allocation9 + $0x6c0] sm:$0xff]
    %v1078 = vld [vmem:[#allocation9 + $0x6c8] sm:$0xff]
    %v1079 = vld [vmem:[#allocation9 + $0x6d0] sm:$0xff]
    %v1080 = vld [vmem:[#allocation9 + $0x6d8] sm:$0xff]
    %v1081 = vld [vmem:[#allocation9 + $0x6e0] sm:$0xff]
    %v1082 = vld [vmem:[#allocation9 + $0x6e8] sm:$0xff]
    %v1083 = vld [vmem:[#allocation9 + $0x6f0] sm:$0xff]
    %v1084 = vld [vmem:[#allocation9 + $0x6f8] sm:$0xff]
    %v1085 = vld [vmem:[#allocation9 + $0x700] sm:$0xff]
    %v1086 = vld [vmem:[#allocation9 + $0x708] sm:$0xff]
    %v1087 = vld [vmem:[#allocation9 + $0x710] sm:$0xff]
    %v1088 = vld [vmem:[#allocation9 + $0x718] sm:$0xff]
    %v1089 = vld [vmem:[#allocation9 + $0x720] sm:$0xff]
    %v1090 = vld [vmem:[#allocation9 + $0x728] sm:$0xff]
    %v1091 = vld [vmem:[#allocation9 + $0x730] sm:$0xff]
    %v1092 = vld [vmem:[#allocation9 + $0x738] sm:$0xff]
    %v1093 = vld [vmem:[#allocation9 + $0x740] sm:$0xff]
    %v1094 = vld [vmem:[#allocation9 + $0x748] sm:$0xff]
    %v1095 = vld [vmem:[#allocation9 + $0x750] sm:$0xff]
    %v1096 = vld [vmem:[#allocation9 + $0x758] sm:$0xff]
    %v1097 = vld [vmem:[#allocation9 + $0x760] sm:$0xff]
    %v1098 = vld [vmem:[#allocation9 + $0x768] sm:$0xff]
    %v1099 = vld [vmem:[#allocation9 + $0x770] sm:$0xff]
    %v1100 = vld [vmem:[#allocation9 + $0x778] sm:$0xff]
    %v1101 = vld [vmem:[#allocation9 + $0x780] sm:$0xff]
    %v1102 = vld [vmem:[#allocation9 + $0x788] sm:$0xff]
    %v1103 = vld [vmem:[#allocation9 + $0x790] sm:$0xff]
    %v1104 = vld [vmem:[#allocation9 + $0x798] sm:$0xff]
    %v1105 = vld [vmem:[#allocation9 + $0x7a0] sm:$0xff]
    %v1106 = vld [vmem:[#allocation9 + $0x7a8] sm:$0xff]
    %v1107 = vld [vmem:[#allocation9 + $0x7b0] sm:$0xff]
    %v1108 = vld [vmem:[#allocation9 + $0x7b8] sm:$0xff]
    %v1109 = vld [vmem:[#allocation9 + $0x7c0] sm:$0xff]
    %v1110 = vld [vmem:[#allocation9 + $0x7c8] sm:$0xff]
    %v1111 = vld [vmem:[#allocation9 + $0x7d0] sm:$0xff]
    %v1112 = vld [vmem:[#allocation9 + $0x7d8] sm:$0xff]
    %v1113 = vld [vmem:[#allocation9 + $0x7e0] sm:$0xff]
    %v1114 = vld [vmem:[#allocation9 + $0x7e8] sm:$0xff]
    %v1115 = vld [vmem:[#allocation9 + $0x7f0] sm:$0xff]
    %v1116 = vld [vmem:[#allocation9 + $0x7f8] sm:$0xff]
    %v1373 = vunpack.c.l.b16 %v861
    %v1374 = vunpack.c.h.b16 %v861
    %v1375 = vunpack.c.l.b16 %v862
    %v1376 = vunpack.c.h.b16 %v862
    %v1377 = vunpack.c.l.b16 %v863
    %v1378 = vunpack.c.h.b16 %v863
    %v1379 = vunpack.c.l.b16 %v864
    %v1380 = vunpack.c.h.b16 %v864
    %v1381 = vunpack.c.l.b16 %v865
    %v1382 = vunpack.c.h.b16 %v865
    %v1383 = vunpack.c.l.b16 %v866
    %v1384 = vunpack.c.h.b16 %v866
    %v1385 = vunpack.c.l.b16 %v867
    %v1386 = vunpack.c.h.b16 %v867
    %v1387 = vunpack.c.l.b16 %v868
    %v1388 = vunpack.c.h.b16 %v868
    %v1389 = vunpack.c.l.b16 %v869
    %v1390 = vunpack.c.h.b16 %v869
    %v1391 = vunpack.c.l.b16 %v870
    %v1392 = vunpack.c.h.b16 %v870
    %v1393 = vunpack.c.l.b16 %v871
    %v1394 = vunpack.c.h.b16 %v871
    %v1395 = vunpack.c.l.b16 %v872
    %v1396 = vunpack.c.h.b16 %v872
    %v1397 = vunpack.c.l.b16 %v873
    %v1398 = vunpack.c.h.b16 %v873
    %v1399 = vunpack.c.l.b16 %v874
    %v1400 = vunpack.c.h.b16 %v874
    %v1401 = vunpack.c.l.b16 %v875
    %v1402 = vunpack.c.h.b16 %v875
    %v1403 = vunpack.c.l.b16 %v876
    %v1404 = vunpack.c.h.b16 %v876
    %v1405 = vunpack.c.l.b16 %v877
    %v1406 = vunpack.c.h.b16 %v877
    %v1407 = vunpack.c.l.b16 %v878
    %v1408 = vunpack.c.h.b16 %v878
    %v1409 = vunpack.c.l.b16 %v879
    %v1410 = vunpack.c.h.b16 %v879
    %v1411 = vunpack.c.l.b16 %v880
    %v1412 = vunpack.c.h.b16 %v880
    %v1413 = vunpack.c.l.b16 %v881
    %v1414 = vunpack.c.h.b16 %v881
    %v1415 = vunpack.c.l.b16 %v882
    %v1416 = vunpack.c.h.b16 %v882
    %v1417 = vunpack.c.l.b16 %v883
    %v1418 = vunpack.c.h.b16 %v883
    %v1419 = vunpack.c.l.b16 %v884
    %v1420 = vunpack.c.h.b16 %v884
    %v1421 = vunpack.c.l.b16 %v885
    %v1422 = vunpack.c.h.b16 %v885
    %v1423 = vunpack.c.l.b16 %v886
    %v1424 = vunpack.c.h.b16 %v886
    %v1425 = vunpack.c.l.b16 %v887
    %v1426 = vunpack.c.h.b16 %v887
    %v1427 = vunpack.c.l.b16 %v888
    %v1428 = vunpack.c.h.b16 %v888
    %v1429 = vunpack.c.l.b16 %v889
    %v1430 = vunpack.c.h.b16 %v889
    %v1431 = vunpack.c.l.b16 %v890
    %v1432 = vunpack.c.h.b16 %v890
    %v1433 = vunpack.c.l.b16 %v891
    %v1434 = vunpack.c.h.b16 %v891
    %v1435 = vunpack.c.l.b16 %v892
    %v1436 = vunpack.c.h.b16 %v892
    %v1437 = vunpack.c.l.b16 %v893
    %v1438 = vunpack.c.h.b16 %v893
    %v1439 = vunpack.c.l.b16 %v894
    %v1440 = vunpack.c.h.b16 %v894
    %v1441 = vunpack.c.l.b16 %v895
    %v1442 = vunpack.c.h.b16 %v895
    %v1443 = vunpack.c.l.b16 %v896
    %v1444 = vunpack.c.h.b16 %v896
    %v1445 = vunpack.c.l.b16 %v897
    %v1446 = vunpack.c.h.b16 %v897
    %v1447 = vunpack.c.l.b16 %v898
    %v1448 = vunpack.c.h.b16 %v898
    %v1449 = vunpack.c.l.b16 %v899
    %v1450 = vunpack.c.h.b16 %v899
    %v1451 = vunpack.c.l.b16 %v900
    %v1452 = vunpack.c.h.b16 %v900
    %v1453 = vunpack.c.l.b16 %v901
    %v1454 = vunpack.c.h.b16 %v901
    %v1455 = vunpack.c.l.b16 %v902
    %v1456 = vunpack.c.h.b16 %v902
    %v1457 = vunpack.c.l.b16 %v903
    %v1458 = vunpack.c.h.b16 %v903
    %v1459 = vunpack.c.l.b16 %v904
    %v1460 = vunpack.c.h.b16 %v904
    %v1461 = vunpack.c.l.b16 %v905
    %v1462 = vunpack.c.h.b16 %v905
    %v1463 = vunpack.c.l.b16 %v906
    %v1464 = vunpack.c.h.b16 %v906
    %v1465 = vunpack.c.l.b16 %v907
    %v1466 = vunpack.c.h.b16 %v907
    %v1467 = vunpack.c.l.b16 %v908
    %v1468 = vunpack.c.h.b16 %v908
    %v1469 = vunpack.c.l.b16 %v909
    %v1470 = vunpack.c.h.b16 %v909
    %v1471 = vunpack.c.l.b16 %v910
    %v1472 = vunpack.c.h.b16 %v910
    %v1473 = vunpack.c.l.b16 %v911
    %v1474 = vunpack.c.h.b16 %v911
    %v1475 = vunpack.c.l.b16 %v912
    %v1476 = vunpack.c.h.b16 %v912
    %v1477 = vunpack.c.l.b16 %v913
    %v1478 = vunpack.c.h.b16 %v913
    %v1479 = vunpack.c.l.b16 %v914
    %v1480 = vunpack.c.h.b16 %v914
    %v1481 = vunpack.c.l.b16 %v915
    %v1482 = vunpack.c.h.b16 %v915
    %v1483 = vunpack.c.l.b16 %v916
    %v1484 = vunpack.c.h.b16 %v916
    %v1485 = vunpack.c.l.b16 %v917
    %v1486 = vunpack.c.h.b16 %v917
    %v1487 = vunpack.c.l.b16 %v918
    %v1488 = vunpack.c.h.b16 %v918
    %v1489 = vunpack.c.l.b16 %v919
    %v1490 = vunpack.c.h.b16 %v919
    %v1491 = vunpack.c.l.b16 %v920
    %v1492 = vunpack.c.h.b16 %v920
    %v1493 = vunpack.c.l.b16 %v921
    %v1494 = vunpack.c.h.b16 %v921
    %v1495 = vunpack.c.l.b16 %v922
    %v1496 = vunpack.c.h.b16 %v922
    %v1497 = vunpack.c.l.b16 %v923
    %v1498 = vunpack.c.h.b16 %v923
    %v1499 = vunpack.c.l.b16 %v924
    %v1500 = vunpack.c.h.b16 %v924
    %v1501 = vunpack.c.l.b16 %v925
    %v1502 = vunpack.c.h.b16 %v925
    %v1503 = vunpack.c.l.b16 %v926
    %v1504 = vunpack.c.h.b16 %v926
    %v1505 = vunpack.c.l.b16 %v927
    %v1506 = vunpack.c.h.b16 %v927
    %v1507 = vunpack.c.l.b16 %v928
    %v1508 = vunpack.c.h.b16 %v928
    %v1509 = vunpack.c.l.b16 %v929
    %v1510 = vunpack.c.h.b16 %v929
    %v1511 = vunpack.c.l.b16 %v930
    %v1512 = vunpack.c.h.b16 %v930
    %v1513 = vunpack.c.l.b16 %v931
    %v1514 = vunpack.c.h.b16 %v931
    %v1515 = vunpack.c.l.b16 %v932
    %v1516 = vunpack.c.h.b16 %v932
    %v1517 = vunpack.c.l.b16 %v933
    %v1518 = vunpack.c.h.b16 %v933
    %v1519 = vunpack.c.l.b16 %v934
    %v1520 = vunpack.c.h.b16 %v934
    %v1521 = vunpack.c.l.b16 %v935
    %v1522 = vunpack.c.h.b16 %v935
    %v1523 = vunpack.c.l.b16 %v936
    %v1524 = vunpack.c.h.b16 %v936
    %v1525 = vunpack.c.l.b16 %v937
    %v1526 = vunpack.c.h.b16 %v937
    %v1527 = vunpack.c.l.b16 %v938
    %v1528 = vunpack.c.h.b16 %v938
    %v1529 = vunpack.c.l.b16 %v939
    %v1530 = vunpack.c.h.b16 %v939
    %v1531 = vunpack.c.l.b16 %v940
    %v1532 = vunpack.c.h.b16 %v940
    %v1533 = vunpack.c.l.b16 %v941
    %v1534 = vunpack.c.h.b16 %v941
    %v1535 = vunpack.c.l.b16 %v942
    %v1536 = vunpack.c.h.b16 %v942
    %v1537 = vunpack.c.l.b16 %v943
    %v1538 = vunpack.c.h.b16 %v943
    %v1539 = vunpack.c.l.b16 %v944
    %v1540 = vunpack.c.h.b16 %v944
    %v1541 = vunpack.c.l.b16 %v945
    %v1542 = vunpack.c.h.b16 %v945
    %v1543 = vunpack.c.l.b16 %v946
    %v1544 = vunpack.c.h.b16 %v946
    %v1545 = vunpack.c.l.b16 %v947
    %v1546 = vunpack.c.h.b16 %v947
    %v1547 = vunpack.c.l.b16 %v948
    %v1548 = vunpack.c.h.b16 %v948
    %v1549 = vunpack.c.l.b16 %v949
    %v1550 = vunpack.c.h.b16 %v949
    %v1551 = vunpack.c.l.b16 %v950
    %v1552 = vunpack.c.h.b16 %v950
    %v1553 = vunpack.c.l.b16 %v951
    %v1554 = vunpack.c.h.b16 %v951
    %v1555 = vunpack.c.l.b16 %v952
    %v1556 = vunpack.c.h.b16 %v952
    %v1557 = vunpack.c.l.b16 %v953
    %v1558 = vunpack.c.h.b16 %v953
    %v1559 = vunpack.c.l.b16 %v954
    %v1560 = vunpack.c.h.b16 %v954
    %v1561 = vunpack.c.l.b16 %v955
    %v1562 = vunpack.c.h.b16 %v955
    %v1563 = vunpack.c.l.b16 %v956
    %v1564 = vunpack.c.h.b16 %v956
    %v1565 = vunpack.c.l.b16 %v957
    %v1566 = vunpack.c.h.b16 %v957
    %v1567 = vunpack.c.l.b16 %v958
    %v1568 = vunpack.c.h.b16 %v958
    %v1569 = vunpack.c.l.b16 %v959
    %v1570 = vunpack.c.h.b16 %v959
    %v1571 = vunpack.c.l.b16 %v960
    %v1572 = vunpack.c.h.b16 %v960
    %v1573 = vunpack.c.l.b16 %v961
    %v1574 = vunpack.c.h.b16 %v961
    %v1575 = vunpack.c.l.b16 %v962
    %v1576 = vunpack.c.h.b16 %v962
    %v1577 = vunpack.c.l.b16 %v963
    %v1578 = vunpack.c.h.b16 %v963
    %v1579 = vunpack.c.l.b16 %v964
    %v1580 = vunpack.c.h.b16 %v964
    %v1581 = vunpack.c.l.b16 %v965
    %v1582 = vunpack.c.h.b16 %v965
    %v1583 = vunpack.c.l.b16 %v966
    %v1584 = vunpack.c.h.b16 %v966
    %v1585 = vunpack.c.l.b16 %v967
    %v1586 = vunpack.c.h.b16 %v967
    %v1587 = vunpack.c.l.b16 %v968
    %v1588 = vunpack.c.h.b16 %v968
    %v1589 = vunpack.c.l.b16 %v969
    %v1590 = vunpack.c.h.b16 %v969
    %v1591 = vunpack.c.l.b16 %v970
    %v1592 = vunpack.c.h.b16 %v970
    %v1593 = vunpack.c.l.b16 %v971
    %v1594 = vunpack.c.h.b16 %v971
    %v1595 = vunpack.c.l.b16 %v972
    %v1596 = vunpack.c.h.b16 %v972
    %v1597 = vunpack.c.l.b16 %v973
    %v1598 = vunpack.c.h.b16 %v973
    %v1599 = vunpack.c.l.b16 %v974
    %v1600 = vunpack.c.h.b16 %v974
    %v1601 = vunpack.c.l.b16 %v975
    %v1602 = vunpack.c.h.b16 %v975
    %v1603 = vunpack.c.l.b16 %v976
    %v1604 = vunpack.c.h.b16 %v976
    %v1605 = vunpack.c.l.b16 %v977
    %v1606 = vunpack.c.h.b16 %v977
    %v1607 = vunpack.c.l.b16 %v978
    %v1608 = vunpack.c.h.b16 %v978
    %v1609 = vunpack.c.l.b16 %v979
    %v1610 = vunpack.c.h.b16 %v979
    %v1611 = vunpack.c.l.b16 %v980
    %v1612 = vunpack.c.h.b16 %v980
    %v1613 = vunpack.c.l.b16 %v981
    %v1614 = vunpack.c.h.b16 %v981
    %v1615 = vunpack.c.l.b16 %v982
    %v1616 = vunpack.c.h.b16 %v982
    %v1617 = vunpack.c.l.b16 %v983
    %v1618 = vunpack.c.h.b16 %v983
    %v1619 = vunpack.c.l.b16 %v984
    %v1620 = vunpack.c.h.b16 %v984
    %v1621 = vunpack.c.l.b16 %v985
    %v1622 = vunpack.c.h.b16 %v985
    %v1623 = vunpack.c.l.b16 %v986
    %v1624 = vunpack.c.h.b16 %v986
    %v1625 = vunpack.c.l.b16 %v987
    %v1626 = vunpack.c.h.b16 %v987
    %v1627 = vunpack.c.l.b16 %v988
    %v1628 = vunpack.c.h.b16 %v988
    %v1629 = vunpack.c.l.b16 %v989
    %v1630 = vunpack.c.h.b16 %v989
    %v1631 = vunpack.c.l.b16 %v990
    %v1632 = vunpack.c.h.b16 %v990
    %v1633 = vunpack.c.l.b16 %v991
    %v1634 = vunpack.c.h.b16 %v991
    %v1635 = vunpack.c.l.b16 %v992
    %v1636 = vunpack.c.h.b16 %v992
    %v1637 = vunpack.c.l.b16 %v993
    %v1638 = vunpack.c.h.b16 %v993
    %v1639 = vunpack.c.l.b16 %v994
    %v1640 = vunpack.c.h.b16 %v994
    %v1641 = vunpack.c.l.b16 %v995
    %v1642 = vunpack.c.h.b16 %v995
    %v1643 = vunpack.c.l.b16 %v996
    %v1644 = vunpack.c.h.b16 %v996
    %v1645 = vunpack.c.l.b16 %v997
    %v1646 = vunpack.c.h.b16 %v997
    %v1647 = vunpack.c.l.b16 %v998
    %v1648 = vunpack.c.h.b16 %v998
    %v1649 = vunpack.c.l.b16 %v999
    %v1650 = vunpack.c.h.b16 %v999
    %v1651 = vunpack.c.l.b16 %v1000
    %v1652 = vunpack.c.h.b16 %v1000
    %v1653 = vunpack.c.l.b16 %v1001
    %v1654 = vunpack.c.h.b16 %v1001
    %v1655 = vunpack.c.l.b16 %v1002
    %v1656 = vunpack.c.h.b16 %v1002
    %v1657 = vunpack.c.l.b16 %v1003
    %v1658 = vunpack.c.h.b16 %v1003
    %v1659 = vunpack.c.l.b16 %v1004
    %v1660 = vunpack.c.h.b16 %v1004
    %v1661 = vunpack.c.l.b16 %v1005
    %v1662 = vunpack.c.h.b16 %v1005
    %v1663 = vunpack.c.l.b16 %v1006
    %v1664 = vunpack.c.h.b16 %v1006
    %v1665 = vunpack.c.l.b16 %v1007
    %v1666 = vunpack.c.h.b16 %v1007
    %v1667 = vunpack.c.l.b16 %v1008
    %v1668 = vunpack.c.h.b16 %v1008
    %v1669 = vunpack.c.l.b16 %v1009
    %v1670 = vunpack.c.h.b16 %v1009
    %v1671 = vunpack.c.l.b16 %v1010
    %v1672 = vunpack.c.h.b16 %v1010
    %v1673 = vunpack.c.l.b16 %v1011
    %v1674 = vunpack.c.h.b16 %v1011
    %v1675 = vunpack.c.l.b16 %v1012
    %v1676 = vunpack.c.h.b16 %v1012
    %v1677 = vunpack.c.l.b16 %v1013
    %v1678 = vunpack.c.h.b16 %v1013
    %v1679 = vunpack.c.l.b16 %v1014
    %v1680 = vunpack.c.h.b16 %v1014
    %v1681 = vunpack.c.l.b16 %v1015
    %v1682 = vunpack.c.h.b16 %v1015
    %v1683 = vunpack.c.l.b16 %v1016
    %v1684 = vunpack.c.h.b16 %v1016
    %v1685 = vunpack.c.l.b16 %v1017
    %v1686 = vunpack.c.h.b16 %v1017
    %v1687 = vunpack.c.l.b16 %v1018
    %v1688 = vunpack.c.h.b16 %v1018
    %v1689 = vunpack.c.l.b16 %v1019
    %v1690 = vunpack.c.h.b16 %v1019
    %v1691 = vunpack.c.l.b16 %v1020
    %v1692 = vunpack.c.h.b16 %v1020
    %v1693 = vunpack.c.l.b16 %v1021
    %v1694 = vunpack.c.h.b16 %v1021
    %v1695 = vunpack.c.l.b16 %v1022
    %v1696 = vunpack.c.h.b16 %v1022
    %v1697 = vunpack.c.l.b16 %v1023
    %v1698 = vunpack.c.h.b16 %v1023
    %v1699 = vunpack.c.l.b16 %v1024
    %v1700 = vunpack.c.h.b16 %v1024
    %v1701 = vunpack.c.l.b16 %v1025
    %v1702 = vunpack.c.h.b16 %v1025
    %v1703 = vunpack.c.l.b16 %v1026
    %v1704 = vunpack.c.h.b16 %v1026
    %v1705 = vunpack.c.l.b16 %v1027
    %v1706 = vunpack.c.h.b16 %v1027
    %v1707 = vunpack.c.l.b16 %v1028
    %v1708 = vunpack.c.h.b16 %v1028
    %v1709 = vunpack.c.l.b16 %v1029
    %v1710 = vunpack.c.h.b16 %v1029
    %v1711 = vunpack.c.l.b16 %v1030
    %v1712 = vunpack.c.h.b16 %v1030
    %v1713 = vunpack.c.l.b16 %v1031
    %v1714 = vunpack.c.h.b16 %v1031
    %v1715 = vunpack.c.l.b16 %v1032
    %v1716 = vunpack.c.h.b16 %v1032
    %v1717 = vunpack.c.l.b16 %v1033
    %v1718 = vunpack.c.h.b16 %v1033
    %v1719 = vunpack.c.l.b16 %v1034
    %v1720 = vunpack.c.h.b16 %v1034
    %v1721 = vunpack.c.l.b16 %v1035
    %v1722 = vunpack.c.h.b16 %v1035
    %v1723 = vunpack.c.l.b16 %v1036
    %v1724 = vunpack.c.h.b16 %v1036
    %v1725 = vunpack.c.l.b16 %v1037
    %v1726 = vunpack.c.h.b16 %v1037
    %v1727 = vunpack.c.l.b16 %v1038
    %v1728 = vunpack.c.h.b16 %v1038
    %v1729 = vunpack.c.l.b16 %v1039
    %v1730 = vunpack.c.h.b16 %v1039
    %v1731 = vunpack.c.l.b16 %v1040
    %v1732 = vunpack.c.h.b16 %v1040
    %v1733 = vunpack.c.l.b16 %v1041
    %v1734 = vunpack.c.h.b16 %v1041
    %v1735 = vunpack.c.l.b16 %v1042
    %v1736 = vunpack.c.h.b16 %v1042
    %v1737 = vunpack.c.l.b16 %v1043
    %v1738 = vunpack.c.h.b16 %v1043
    %v1739 = vunpack.c.l.b16 %v1044
    %v1740 = vunpack.c.h.b16 %v1044
    %v1741 = vunpack.c.l.b16 %v1045
    %v1742 = vunpack.c.h.b16 %v1045
    %v1743 = vunpack.c.l.b16 %v1046
    %v1744 = vunpack.c.h.b16 %v1046
    %v1745 = vunpack.c.l.b16 %v1047
    %v1746 = vunpack.c.h.b16 %v1047
    %v1747 = vunpack.c.l.b16 %v1048
    %v1748 = vunpack.c.h.b16 %v1048
    %v1749 = vunpack.c.l.b16 %v1049
    %v1750 = vunpack.c.h.b16 %v1049
    %v1751 = vunpack.c.l.b16 %v1050
    %v1752 = vunpack.c.h.b16 %v1050
    %v1753 = vunpack.c.l.b16 %v1051
    %v1754 = vunpack.c.h.b16 %v1051
    %v1755 = vunpack.c.l.b16 %v1052
    %v1756 = vunpack.c.h.b16 %v1052
    %v1757 = vunpack.c.l.b16 %v1053
    %v1758 = vunpack.c.h.b16 %v1053
    %v1759 = vunpack.c.l.b16 %v1054
    %v1760 = vunpack.c.h.b16 %v1054
    %v1761 = vunpack.c.l.b16 %v1055
    %v1762 = vunpack.c.h.b16 %v1055
    %v1763 = vunpack.c.l.b16 %v1056
    %v1764 = vunpack.c.h.b16 %v1056
    %v1765 = vunpack.c.l.b16 %v1057
    %v1766 = vunpack.c.h.b16 %v1057
    %v1767 = vunpack.c.l.b16 %v1058
    %v1768 = vunpack.c.h.b16 %v1058
    %v1769 = vunpack.c.l.b16 %v1059
    %v1770 = vunpack.c.h.b16 %v1059
    %v1771 = vunpack.c.l.b16 %v1060
    %v1772 = vunpack.c.h.b16 %v1060
    %v1773 = vunpack.c.l.b16 %v1061
    %v1774 = vunpack.c.h.b16 %v1061
    %v1775 = vunpack.c.l.b16 %v1062
    %v1776 = vunpack.c.h.b16 %v1062
    %v1777 = vunpack.c.l.b16 %v1063
    %v1778 = vunpack.c.h.b16 %v1063
    %v1779 = vunpack.c.l.b16 %v1064
    %v1780 = vunpack.c.h.b16 %v1064
    %v1781 = vunpack.c.l.b16 %v1065
    %v1782 = vunpack.c.h.b16 %v1065
    %v1783 = vunpack.c.l.b16 %v1066
    %v1784 = vunpack.c.h.b16 %v1066
    %v1785 = vunpack.c.l.b16 %v1067
    %v1786 = vunpack.c.h.b16 %v1067
    %v1787 = vunpack.c.l.b16 %v1068
    %v1788 = vunpack.c.h.b16 %v1068
    %v1789 = vunpack.c.l.b16 %v1069
    %v1790 = vunpack.c.h.b16 %v1069
    %v1791 = vunpack.c.l.b16 %v1070
    %v1792 = vunpack.c.h.b16 %v1070
    %v1793 = vunpack.c.l.b16 %v1071
    %v1794 = vunpack.c.h.b16 %v1071
    %v1795 = vunpack.c.l.b16 %v1072
    %v1796 = vunpack.c.h.b16 %v1072
    %v1797 = vunpack.c.l.b16 %v1073
    %v1798 = vunpack.c.h.b16 %v1073
    %v1799 = vunpack.c.l.b16 %v1074
    %v1800 = vunpack.c.h.b16 %v1074
    %v1801 = vunpack.c.l.b16 %v1075
    %v1802 = vunpack.c.h.b16 %v1075
    %v1803 = vunpack.c.l.b16 %v1076
    %v1804 = vunpack.c.h.b16 %v1076
    %v1805 = vunpack.c.l.b16 %v1077
    %v1806 = vunpack.c.h.b16 %v1077
    %v1807 = vunpack.c.l.b16 %v1078
    %v1808 = vunpack.c.h.b16 %v1078
    %v1809 = vunpack.c.l.b16 %v1079
    %v1810 = vunpack.c.h.b16 %v1079
    %v1811 = vunpack.c.l.b16 %v1080
    %v1812 = vunpack.c.h.b16 %v1080
    %v1813 = vunpack.c.l.b16 %v1081
    %v1814 = vunpack.c.h.b16 %v1081
    %v1815 = vunpack.c.l.b16 %v1082
    %v1816 = vunpack.c.h.b16 %v1082
    %v1817 = vunpack.c.l.b16 %v1083
    %v1818 = vunpack.c.h.b16 %v1083
    %v1819 = vunpack.c.l.b16 %v1084
    %v1820 = vunpack.c.h.b16 %v1084
    %v1821 = vunpack.c.l.b16 %v1085
    %v1822 = vunpack.c.h.b16 %v1085
    %v1823 = vunpack.c.l.b16 %v1086
    %v1824 = vunpack.c.h.b16 %v1086
    %v1825 = vunpack.c.l.b16 %v1087
    %v1826 = vunpack.c.h.b16 %v1087
    %v1827 = vunpack.c.l.b16 %v1088
    %v1828 = vunpack.c.h.b16 %v1088
    %v1829 = vunpack.c.l.b16 %v1089
    %v1830 = vunpack.c.h.b16 %v1089
    %v1831 = vunpack.c.l.b16 %v1090
    %v1832 = vunpack.c.h.b16 %v1090
    %v1833 = vunpack.c.l.b16 %v1091
    %v1834 = vunpack.c.h.b16 %v1091
    %v1835 = vunpack.c.l.b16 %v1092
    %v1836 = vunpack.c.h.b16 %v1092
    %v1837 = vunpack.c.l.b16 %v1093
    %v1838 = vunpack.c.h.b16 %v1093
    %v1839 = vunpack.c.l.b16 %v1094
    %v1840 = vunpack.c.h.b16 %v1094
    %v1841 = vunpack.c.l.b16 %v1095
    %v1842 = vunpack.c.h.b16 %v1095
    %v1843 = vunpack.c.l.b16 %v1096
    %v1844 = vunpack.c.h.b16 %v1096
    %v1845 = vunpack.c.l.b16 %v1097
    %v1846 = vunpack.c.h.b16 %v1097
    %v1847 = vunpack.c.l.b16 %v1098
    %v1848 = vunpack.c.h.b16 %v1098
    %v1849 = vunpack.c.l.b16 %v1099
    %v1850 = vunpack.c.h.b16 %v1099
    %v1851 = vunpack.c.l.b16 %v1100
    %v1852 = vunpack.c.h.b16 %v1100
    %v1853 = vunpack.c.l.b16 %v1101
    %v1854 = vunpack.c.h.b16 %v1101
    %v1855 = vunpack.c.l.b16 %v1102
    %v1856 = vunpack.c.h.b16 %v1102
    %v1857 = vunpack.c.l.b16 %v1103
    %v1858 = vunpack.c.h.b16 %v1103
    %v1859 = vunpack.c.l.b16 %v1104
    %v1860 = vunpack.c.h.b16 %v1104
    %v1861 = vunpack.c.l.b16 %v1105
    %v1862 = vunpack.c.h.b16 %v1105
    %v1863 = vunpack.c.l.b16 %v1106
    %v1864 = vunpack.c.h.b16 %v1106
    %v1865 = vunpack.c.l.b16 %v1107
    %v1866 = vunpack.c.h.b16 %v1107
    %v1867 = vunpack.c.l.b16 %v1108
    %v1868 = vunpack.c.h.b16 %v1108
    %v1869 = vunpack.c.l.b16 %v1109
    %v1870 = vunpack.c.h.b16 %v1109
    %v1871 = vunpack.c.l.b16 %v1110
    %v1872 = vunpack.c.h.b16 %v1110
    %v1873 = vunpack.c.l.b16 %v1111
    %v1874 = vunpack.c.h.b16 %v1111
    %v1875 = vunpack.c.l.b16 %v1112
    %v1876 = vunpack.c.h.b16 %v1112
    %v1877 = vunpack.c.l.b16 %v1113
    %v1878 = vunpack.c.h.b16 %v1113
    %v1879 = vunpack.c.l.b16 %v1114
    %v1880 = vunpack.c.h.b16 %v1114
    %v1881 = vunpack.c.l.b16 %v1115
    %v1882 = vunpack.c.h.b16 %v1115
    %v1883 = vunpack.c.l.b16 %v1116
    %v1884 = vunpack.c.h.b16 %v1116
    %v1885 = vpack.c.b16 %v1381, %v1373
    %v1886 = vpack.c.b16 %v1382, %v1374
    %v1887 = vpack.c.b16 %v1383, %v1375
    %v1888 = vpack.c.b16 %v1384, %v1376
    %v1889 = vpack.c.b16 %v1385, %v1377
    %v1890 = vpack.c.b16 %v1386, %v1378
    %v1891 = vpack.c.b16 %v1387, %v1379
    %v1892 = vpack.c.b16 %v1388, %v1380
    %v1893 = vpack.c.b16 %v1397, %v1389
    %v1894 = vpack.c.b16 %v1398, %v1390
    %v1895 = vpack.c.b16 %v1399, %v1391
    %v1896 = vpack.c.b16 %v1400, %v1392
    %v1897 = vpack.c.b16 %v1401, %v1393
    %v1898 = vpack.c.b16 %v1402, %v1394
    %v1899 = vpack.c.b16 %v1403, %v1395
    %v1900 = vpack.c.b16 %v1404, %v1396
    %v1901 = vpack.c.b16 %v1413, %v1405
    %v1902 = vpack.c.b16 %v1414, %v1406
    %v1903 = vpack.c.b16 %v1415, %v1407
    %v1904 = vpack.c.b16 %v1416, %v1408
    %v1905 = vpack.c.b16 %v1417, %v1409
    %v1906 = vpack.c.b16 %v1418, %v1410
    %v1907 = vpack.c.b16 %v1419, %v1411
    %v1908 = vpack.c.b16 %v1420, %v1412
    %v1909 = vpack.c.b16 %v1429, %v1421
    %v1910 = vpack.c.b16 %v1430, %v1422
    %v1911 = vpack.c.b16 %v1431, %v1423
    %v1912 = vpack.c.b16 %v1432, %v1424
    %v1913 = vpack.c.b16 %v1433, %v1425
    %v1914 = vpack.c.b16 %v1434, %v1426
    %v1915 = vpack.c.b16 %v1435, %v1427
    %v1916 = vpack.c.b16 %v1436, %v1428
    %v1917 = vpack.c.b16 %v1445, %v1437
    %v1918 = vpack.c.b16 %v1446, %v1438
    %v1919 = vpack.c.b16 %v1447, %v1439
    %v1920 = vpack.c.b16 %v1448, %v1440
    %v1921 = vpack.c.b16 %v1449, %v1441
    %v1922 = vpack.c.b16 %v1450, %v1442
    %v1923 = vpack.c.b16 %v1451, %v1443
    %v1924 = vpack.c.b16 %v1452, %v1444
    %v1925 = vpack.c.b16 %v1461, %v1453
    %v1926 = vpack.c.b16 %v1462, %v1454
    %v1927 = vpack.c.b16 %v1463, %v1455
    %v1928 = vpack.c.b16 %v1464, %v1456
    %v1929 = vpack.c.b16 %v1465, %v1457
    %v1930 = vpack.c.b16 %v1466, %v1458
    %v1931 = vpack.c.b16 %v1467, %v1459
    %v1932 = vpack.c.b16 %v1468, %v1460
    %v1933 = vpack.c.b16 %v1477, %v1469
    %v1934 = vpack.c.b16 %v1478, %v1470
    %v1935 = vpack.c.b16 %v1479, %v1471
    %v1936 = vpack.c.b16 %v1480, %v1472
    %v1937 = vpack.c.b16 %v1481, %v1473
    %v1938 = vpack.c.b16 %v1482, %v1474
    %v1939 = vpack.c.b16 %v1483, %v1475
    %v1940 = vpack.c.b16 %v1484, %v1476
    %v1941 = vpack.c.b16 %v1493, %v1485
    %v1942 = vpack.c.b16 %v1494, %v1486
    %v1943 = vpack.c.b16 %v1495, %v1487
    %v1944 = vpack.c.b16 %v1496, %v1488
    %v1945 = vpack.c.b16 %v1497, %v1489
    %v1946 = vpack.c.b16 %v1498, %v1490
    %v1947 = vpack.c.b16 %v1499, %v1491
    %v1948 = vpack.c.b16 %v1500, %v1492
    %v1949 = vpack.c.b16 %v1509, %v1501
    %v1950 = vpack.c.b16 %v1510, %v1502
    %v1951 = vpack.c.b16 %v1511, %v1503
    %v1952 = vpack.c.b16 %v1512, %v1504
    %v1953 = vpack.c.b16 %v1513, %v1505
    %v1954 = vpack.c.b16 %v1514, %v1506
    %v1955 = vpack.c.b16 %v1515, %v1507
    %v1956 = vpack.c.b16 %v1516, %v1508
    %v1957 = vpack.c.b16 %v1525, %v1517
    %v1958 = vpack.c.b16 %v1526, %v1518
    %v1959 = vpack.c.b16 %v1527, %v1519
    %v1960 = vpack.c.b16 %v1528, %v1520
    %v1961 = vpack.c.b16 %v1529, %v1521
    %v1962 = vpack.c.b16 %v1530, %v1522
    %v1963 = vpack.c.b16 %v1531, %v1523
    %v1964 = vpack.c.b16 %v1532, %v1524
    %v1965 = vpack.c.b16 %v1541, %v1533
    %v1966 = vpack.c.b16 %v1542, %v1534
    %v1967 = vpack.c.b16 %v1543, %v1535
    %v1968 = vpack.c.b16 %v1544, %v1536
    %v1969 = vpack.c.b16 %v1545, %v1537
    %v1970 = vpack.c.b16 %v1546, %v1538
    %v1971 = vpack.c.b16 %v1547, %v1539
    %v1972 = vpack.c.b16 %v1548, %v1540
    %v1973 = vpack.c.b16 %v1557, %v1549
    %v1974 = vpack.c.b16 %v1558, %v1550
    %v1975 = vpack.c.b16 %v1559, %v1551
    %v1976 = vpack.c.b16 %v1560, %v1552
    %v1977 = vpack.c.b16 %v1561, %v1553
    %v1978 = vpack.c.b16 %v1562, %v1554
    %v1979 = vpack.c.b16 %v1563, %v1555
    %v1980 = vpack.c.b16 %v1564, %v1556
    %v1981 = vpack.c.b16 %v1573, %v1565
    %v1982 = vpack.c.b16 %v1574, %v1566
    %v1983 = vpack.c.b16 %v1575, %v1567
    %v1984 = vpack.c.b16 %v1576, %v1568
    %v1985 = vpack.c.b16 %v1577, %v1569
    %v1986 = vpack.c.b16 %v1578, %v1570
    %v1987 = vpack.c.b16 %v1579, %v1571
    %v1988 = vpack.c.b16 %v1580, %v1572
    %v1989 = vpack.c.b16 %v1589, %v1581
    %v1990 = vpack.c.b16 %v1590, %v1582
    %v1991 = vpack.c.b16 %v1591, %v1583
    %v1992 = vpack.c.b16 %v1592, %v1584
    %v1993 = vpack.c.b16 %v1593, %v1585
    %v1994 = vpack.c.b16 %v1594, %v1586
    %v1995 = vpack.c.b16 %v1595, %v1587
    %v1996 = vpack.c.b16 %v1596, %v1588
    %v1997 = vpack.c.b16 %v1605, %v1597
    %v1998 = vpack.c.b16 %v1606, %v1598
    %v1999 = vpack.c.b16 %v1607, %v1599
    %v2000 = vpack.c.b16 %v1608, %v1600
    %v2001 = vpack.c.b16 %v1609, %v1601
    %v2002 = vpack.c.b16 %v1610, %v1602
    %v2003 = vpack.c.b16 %v1611, %v1603
    %v2004 = vpack.c.b16 %v1612, %v1604
    %v2005 = vpack.c.b16 %v1621, %v1613
    %v2006 = vpack.c.b16 %v1622, %v1614
    %v2007 = vpack.c.b16 %v1623, %v1615
    %v2008 = vpack.c.b16 %v1624, %v1616
    %v2009 = vpack.c.b16 %v1625, %v1617
    %v2010 = vpack.c.b16 %v1626, %v1618
    %v2011 = vpack.c.b16 %v1627, %v1619
    %v2012 = vpack.c.b16 %v1628, %v1620
    %v2013 = vpack.c.b16 %v1637, %v1629
    %v2014 = vpack.c.b16 %v1638, %v1630
    %v2015 = vpack.c.b16 %v1639, %v1631
    %v2016 = vpack.c.b16 %v1640, %v1632
    %v2017 = vpack.c.b16 %v1641, %v1633
    %v2018 = vpack.c.b16 %v1642, %v1634
    %v2019 = vpack.c.b16 %v1643, %v1635
    %v2020 = vpack.c.b16 %v1644, %v1636
    %v2021 = vpack.c.b16 %v1653, %v1645
    %v2022 = vpack.c.b16 %v1654, %v1646
    %v2023 = vpack.c.b16 %v1655, %v1647
    %v2024 = vpack.c.b16 %v1656, %v1648
    %v2025 = vpack.c.b16 %v1657, %v1649
    %v2026 = vpack.c.b16 %v1658, %v1650
    %v2027 = vpack.c.b16 %v1659, %v1651
    %v2028 = vpack.c.b16 %v1660, %v1652
    %v2029 = vpack.c.b16 %v1669, %v1661
    %v2030 = vpack.c.b16 %v1670, %v1662
    %v2031 = vpack.c.b16 %v1671, %v1663
    %v2032 = vpack.c.b16 %v1672, %v1664
    %v2033 = vpack.c.b16 %v1673, %v1665
    %v2034 = vpack.c.b16 %v1674, %v1666
    %v2035 = vpack.c.b16 %v1675, %v1667
    %v2036 = vpack.c.b16 %v1676, %v1668
    %v2037 = vpack.c.b16 %v1685, %v1677
    %v2038 = vpack.c.b16 %v1686, %v1678
    %v2039 = vpack.c.b16 %v1687, %v1679
    %v2040 = vpack.c.b16 %v1688, %v1680
    %v2041 = vpack.c.b16 %v1689, %v1681
    %v2042 = vpack.c.b16 %v1690, %v1682
    %v2043 = vpack.c.b16 %v1691, %v1683
    %v2044 = vpack.c.b16 %v1692, %v1684
    %v2045 = vpack.c.b16 %v1701, %v1693
    %v2046 = vpack.c.b16 %v1702, %v1694
    %v2047 = vpack.c.b16 %v1703, %v1695
    %v2048 = vpack.c.b16 %v1704, %v1696
    %v2049 = vpack.c.b16 %v1705, %v1697
    %v2050 = vpack.c.b16 %v1706, %v1698
    %v2051 = vpack.c.b16 %v1707, %v1699
    %v2052 = vpack.c.b16 %v1708, %v1700
    %v2053 = vpack.c.b16 %v1717, %v1709
    %v2054 = vpack.c.b16 %v1718, %v1710
    %v2055 = vpack.c.b16 %v1719, %v1711
    %v2056 = vpack.c.b16 %v1720, %v1712
    %v2057 = vpack.c.b16 %v1721, %v1713
    %v2058 = vpack.c.b16 %v1722, %v1714
    %v2059 = vpack.c.b16 %v1723, %v1715
    %v2060 = vpack.c.b16 %v1724, %v1716
    %v2061 = vpack.c.b16 %v1733, %v1725
    %v2062 = vpack.c.b16 %v1734, %v1726
    %v2063 = vpack.c.b16 %v1735, %v1727
    %v2064 = vpack.c.b16 %v1736, %v1728
    %v2065 = vpack.c.b16 %v1737, %v1729
    %v2066 = vpack.c.b16 %v1738, %v1730
    %v2067 = vpack.c.b16 %v1739, %v1731
    %v2068 = vpack.c.b16 %v1740, %v1732
    %v2069 = vpack.c.b16 %v1749, %v1741
    %v2070 = vpack.c.b16 %v1750, %v1742
    %v2071 = vpack.c.b16 %v1751, %v1743
    %v2072 = vpack.c.b16 %v1752, %v1744
    %v2073 = vpack.c.b16 %v1753, %v1745
    %v2074 = vpack.c.b16 %v1754, %v1746
    %v2075 = vpack.c.b16 %v1755, %v1747
    %v2076 = vpack.c.b16 %v1756, %v1748
    %v2077 = vpack.c.b16 %v1765, %v1757
    %v2078 = vpack.c.b16 %v1766, %v1758
    %v2079 = vpack.c.b16 %v1767, %v1759
    %v2080 = vpack.c.b16 %v1768, %v1760
    %v2081 = vpack.c.b16 %v1769, %v1761
    %v2082 = vpack.c.b16 %v1770, %v1762
    %v2083 = vpack.c.b16 %v1771, %v1763
    %v2084 = vpack.c.b16 %v1772, %v1764
    %v2085 = vpack.c.b16 %v1781, %v1773
    %v2086 = vpack.c.b16 %v1782, %v1774
    %v2087 = vpack.c.b16 %v1783, %v1775
    %v2088 = vpack.c.b16 %v1784, %v1776
    %v2089 = vpack.c.b16 %v1785, %v1777
    %v2090 = vpack.c.b16 %v1786, %v1778
    %v2091 = vpack.c.b16 %v1787, %v1779
    %v2092 = vpack.c.b16 %v1788, %v1780
    %v2093 = vpack.c.b16 %v1797, %v1789
    %v2094 = vpack.c.b16 %v1798, %v1790
    %v2095 = vpack.c.b16 %v1799, %v1791
    %v2096 = vpack.c.b16 %v1800, %v1792
    %v2097 = vpack.c.b16 %v1801, %v1793
    %v2098 = vpack.c.b16 %v1802, %v1794
    %v2099 = vpack.c.b16 %v1803, %v1795
    %v2100 = vpack.c.b16 %v1804, %v1796
    %v2101 = vpack.c.b16 %v1813, %v1805
    %v2102 = vpack.c.b16 %v1814, %v1806
    %v2103 = vpack.c.b16 %v1815, %v1807
    %v2104 = vpack.c.b16 %v1816, %v1808
    %v2105 = vpack.c.b16 %v1817, %v1809
    %v2106 = vpack.c.b16 %v1818, %v1810
    %v2107 = vpack.c.b16 %v1819, %v1811
    %v2108 = vpack.c.b16 %v1820, %v1812
    %v2109 = vpack.c.b16 %v1829, %v1821
    %v2110 = vpack.c.b16 %v1830, %v1822
    %v2111 = vpack.c.b16 %v1831, %v1823
    %v2112 = vpack.c.b16 %v1832, %v1824
    %v2113 = vpack.c.b16 %v1833, %v1825
    %v2114 = vpack.c.b16 %v1834, %v1826
    %v2115 = vpack.c.b16 %v1835, %v1827
    %v2116 = vpack.c.b16 %v1836, %v1828
    %v2117 = vpack.c.b16 %v1845, %v1837
    %v2118 = vpack.c.b16 %v1846, %v1838
    %v2119 = vpack.c.b16 %v1847, %v1839
    %v2120 = vpack.c.b16 %v1848, %v1840
    %v2121 = vpack.c.b16 %v1849, %v1841
    %v2122 = vpack.c.b16 %v1850, %v1842
    %v2123 = vpack.c.b16 %v1851, %v1843
    %v2124 = vpack.c.b16 %v1852, %v1844
    %v2125 = vpack.c.b16 %v1861, %v1853
    %v2126 = vpack.c.b16 %v1862, %v1854
    %v2127 = vpack.c.b16 %v1863, %v1855
    %v2128 = vpack.c.b16 %v1864, %v1856
    %v2129 = vpack.c.b16 %v1865, %v1857
    %v2130 = vpack.c.b16 %v1866, %v1858
    %v2131 = vpack.c.b16 %v1867, %v1859
    %v2132 = vpack.c.b16 %v1868, %v1860
    %v2133 = vpack.c.b16 %v1877, %v1869
    %v2134 = vpack.c.b16 %v1878, %v1870
    %v2135 = vpack.c.b16 %v1879, %v1871
    %v2136 = vpack.c.b16 %v1880, %v1872
    %v2137 = vpack.c.b16 %v1881, %v1873
    %v2138 = vpack.c.b16 %v1882, %v1874
    %v2139 = vpack.c.b16 %v1883, %v1875
    %v2140 = vpack.c.b16 %v1884, %v1876
    %2397 = vmatprep.subr.bf16.mxu0 %v1886
    %2398 = vmatpush1.bf16.msra.mxu0 %v1885
    %2399 = vmatprep.subr.bf16.mxu0 %v1894
    %2400 = vmatpush1.bf16.msra.mxu0 %v1893
    %2401 = vmatprep.subr.bf16.mxu0 %v1902
    %2402 = vmatpush1.bf16.msra.mxu0 %v1901
    %2403 = vmatprep.subr.bf16.mxu0 %v1910
    %2404 = vmatpush1.bf16.msra.mxu0 %v1909
    %2405 = vmatprep.subr.bf16.mxu0 %v1918
    %2406 = vmatpush1.bf16.msra.mxu0 %v1917
    %2407 = vmatprep.subr.bf16.mxu0 %v1926
    %2408 = vmatpush1.bf16.msra.mxu0 %v1925
    %2409 = vmatprep.subr.bf16.mxu0 %v1934
    %2410 = vmatpush1.bf16.msra.mxu0 %v1933
    %2411 = vmatprep.subr.bf16.mxu0 %v1942
    %2412 = vmatpush1.bf16.msra.mxu0 %v1941
    %2413 = vmatprep.subr.bf16.mxu0 %v1950
    %2414 = vmatpush1.bf16.msra.mxu0 %v1949
    %2415 = vmatprep.subr.bf16.mxu0 %v1958
    %2416 = vmatpush1.bf16.msra.mxu0 %v1957
    %2417 = vmatprep.subr.bf16.mxu0 %v1966
    %2418 = vmatpush1.bf16.msra.mxu0 %v1965
    %2419 = vmatprep.subr.bf16.mxu0 %v1974
    %2420 = vmatpush1.bf16.msra.mxu0 %v1973
    %2421 = vmatprep.subr.bf16.mxu0 %v1982
    %2422 = vmatpush1.bf16.msra.mxu0 %v1981
    %2423 = vmatprep.subr.bf16.mxu0 %v1990
    %2424 = vmatpush1.bf16.msra.mxu0 %v1989
    %2425 = vmatprep.subr.bf16.mxu0 %v1998
    %2426 = vmatpush1.bf16.msra.mxu0 %v1997
    %2427 = vmatprep.subr.bf16.mxu0 %v2006
    %2428 = vmatpush1.bf16.msra.mxu0 %v2005
    %2429 = vmatprep.mubr.bf16.mxu0 %v858
    %2430 = vmatmul.mubr.bf16.gmra.mrb[0].mxu0 %v857
    %v2431 = vpop.f32.mrb[0].mxu0
    %v2432 = vadd.f32 0.0, %v2431
    %v2433 = vpop.f32.mrb[0].mxu0
    %v2434 = vadd.f32 0.0, %v2433
    %v2435 = vpop.f32.mrb[0].mxu0
    %v2436 = vadd.f32 0.0, %v2435
    %v2437 = vpop.f32.mrb[0].mxu0
    %v2438 = vadd.f32 0.0, %v2437
    %2439 = vdwg.mxu0
    %2440 = vmatprep.subr.bf16.mxu0 %v2014
    %2441 = vmatpush1.bf16.msra.mxu0 %v2013
    %2442 = vmatprep.subr.bf16.mxu0 %v2022
    %2443 = vmatpush1.bf16.msra.mxu0 %v2021
    %2444 = vmatprep.subr.bf16.mxu0 %v2030
    %2445 = vmatpush1.bf16.msra.mxu0 %v2029
    %2446 = vmatprep.subr.bf16.mxu0 %v2038
    %2447 = vmatpush1.bf16.msra.mxu0 %v2037
    %2448 = vmatprep.subr.bf16.mxu0 %v2046
    %2449 = vmatpush1.bf16.msra.mxu0 %v2045
    %2450 = vmatprep.subr.bf16.mxu0 %v2054
    %2451 = vmatpush1.bf16.msra.mxu0 %v2053
    %2452 = vmatprep.subr.bf16.mxu0 %v2062
    %2453 = vmatpush1.bf16.msra.mxu0 %v2061
    %2454 = vmatprep.subr.bf16.mxu0 %v2070
    %2455 = vmatpush1.bf16.msra.mxu0 %v2069
    %2456 = vmatprep.subr.bf16.mxu0 %v2078
    %2457 = vmatpush1.bf16.msra.mxu0 %v2077
    %2458 = vmatprep.subr.bf16.mxu0 %v2086
    %2459 = vmatpush1.bf16.msra.mxu0 %v2085
    %2460 = vmatprep.subr.bf16.mxu0 %v2094
    %2461 = vmatpush1.bf16.msra.mxu0 %v2093
    %2462 = vmatprep.subr.bf16.mxu0 %v2102
    %2463 = vmatpush1.bf16.msra.mxu0 %v2101
    %2464 = vmatprep.subr.bf16.mxu0 %v2110
    %2465 = vmatpush1.bf16.msra.mxu0 %v2109
    %2466 = vmatprep.subr.bf16.mxu0 %v2118
    %2467 = vmatpush1.bf16.msra.mxu0 %v2117
    %2468 = vmatprep.subr.bf16.mxu0 %v2126
    %2469 = vmatpush1.bf16.msra.mxu0 %v2125
    %2470 = vmatprep.subr.bf16.mxu0 %v2134
    %2471 = vmatpush1.bf16.msra.mxu0 %v2133
    %2472 = vmatprep.mubr.bf16.mxu0 %v860
    %2473 = vmatmul.mubr.bf16.gmra.mrb[0].mxu0 %v859
    %v2474 = vpop.f32.mrb[0].mxu0
    %v2475 = vadd.f32 %v2432, %v2474
    %v2476 = vpop.f32.mrb[0].mxu0
    %v2477 = vadd.f32 %v2434, %v2476
    %v2478 = vpop.f32.mrb[0].mxu0
    %v2479 = vadd.f32 %v2436, %v2478
    %v2480 = vpop.f32.mrb[0].mxu0
    %v2481 = vadd.f32 %v2438, %v2480
    %2482 = vdwg.mxu0
    %2483 = vmatprep.subr.bf16.mxu0 %v1888
    %2484 = vmatpush1.bf16.msra.mxu0 %v1887
    %2485 = vmatprep.subr.bf16.mxu0 %v1896
    %2486 = vmatpush1.bf16.msra.mxu0 %v1895
    %2487 = vmatprep.subr.bf16.mxu0 %v1904
    %2488 = vmatpush1.bf16.msra.mxu0 %v1903
    %2489 = vmatprep.subr.bf16.mxu0 %v1912
    %2490 = vmatpush1.bf16.msra.mxu0 %v1911
    %2491 = vmatprep.subr.bf16.mxu0 %v1920
    %2492 = vmatpush1.bf16.msra.mxu0 %v1919
    %2493 = vmatprep.subr.bf16.mxu0 %v1928
    %2494 = vmatpush1.bf16.msra.mxu0 %v1927
    %2495 = vmatprep.subr.bf16.mxu0 %v1936
    %2496 = vmatpush1.bf16.msra.mxu0 %v1935
    %2497 = vmatprep.subr.bf16.mxu0 %v1944
    %2498 = vmatpush1.bf16.msra.mxu0 %v1943
    %2499 = vmatprep.subr.bf16.mxu0 %v1952
    %2500 = vmatpush1.bf16.msra.mxu0 %v1951
    %2501 = vmatprep.subr.bf16.mxu0 %v1960
    %2502 = vmatpush1.bf16.msra.mxu0 %v1959
    %2503 = vmatprep.subr.bf16.mxu0 %v1968
    %2504 = vmatpush1.bf16.msra.mxu0 %v1967
    %2505 = vmatprep.subr.bf16.mxu0 %v1976
    %2506 = vmatpush1.bf16.msra.mxu0 %v1975
    %2507 = vmatprep.subr.bf16.mxu0 %v1984
    %2508 = vmatpush1.bf16.msra.mxu0 %v1983
    %2509 = vmatprep.subr.bf16.mxu0 %v1992
    %2510 = vmatpush1.bf16.msra.mxu0 %v1991
    %2511 = vmatprep.subr.bf16.mxu0 %v2000
    %2512 = vmatpush1.bf16.msra.mxu0 %v1999
    %2513 = vmatprep.subr.bf16.mxu0 %v2008
    %2514 = vmatpush1.bf16.msra.mxu0 %v2007
    %2515 = vmatprep.mubr.bf16.mxu0 %v858
    %2516 = vmatmul.mubr.bf16.gmra.mrb[0].mxu0 %v857
    %v2517 = vpop.f32.mrb[0].mxu0
    %v2518 = vadd.f32 0.0, %v2517
    %v2519 = vpop.f32.mrb[0].mxu0
    %v2520 = vadd.f32 0.0, %v2519
    %v2521 = vpop.f32.mrb[0].mxu0
    %v2522 = vadd.f32 0.0, %v2521
    %v2523 = vpop.f32.mrb[0].mxu0
    %v2524 = vadd.f32 0.0, %v2523
    %2525 = vdwg.mxu0
    %2526 = vmatprep.subr.bf16.mxu0 %v2016
    %2527 = vmatpush1.bf16.msra.mxu0 %v2015
    %2528 = vmatprep.subr.bf16.mxu0 %v2024
    %2529 = vmatpush1.bf16.msra.mxu0 %v2023
    %2530 = vmatprep.subr.bf16.mxu0 %v2032
    %2531 = vmatpush1.bf16.msra.mxu0 %v2031
    %2532 = vmatprep.subr.bf16.mxu0 %v2040
    %2533 = vmatpush1.bf16.msra.mxu0 %v2039
    %2534 = vmatprep.subr.bf16.mxu0 %v2048
    %2535 = vmatpush1.bf16.msra.mxu0 %v2047
    %2536 = vmatprep.subr.bf16.mxu0 %v2056
    %2537 = vmatpush1.bf16.msra.mxu0 %v2055
    %2538 = vmatprep.subr.bf16.mxu0 %v2064
    %2539 = vmatpush1.bf16.msra.mxu0 %v2063
    %2540 = vmatprep.subr.bf16.mxu0 %v2072
    %2541 = vmatpush1.bf16.msra.mxu0 %v2071
    %2542 = vmatprep.subr.bf16.mxu0 %v2080
    %2543 = vmatpush1.bf16.msra.mxu0 %v2079
    %2544 = vmatprep.subr.bf16.mxu0 %v2088
    %2545 = vmatpush1.bf16.msra.mxu0 %v2087
    %2546 = vmatprep.subr.bf16.mxu0 %v2096
    %2547 = vmatpush1.bf16.msra.mxu0 %v2095
    %2548 = vmatprep.subr.bf16.mxu0 %v2104
    %2549 = vmatpush1.bf16.msra.mxu0 %v2103
    %2550 = vmatprep.subr.bf16.mxu0 %v2112
    %2551 = vmatpush1.bf16.msra.mxu0 %v2111
    %2552 = vmatprep.subr.bf16.mxu0 %v2120
    %2553 = vmatpush1.bf16.msra.mxu0 %v2119
    %2554 = vmatprep.subr.bf16.mxu0 %v2128
    %2555 = vmatpush1.bf16.msra.mxu0 %v2127
    %2556 = vmatprep.subr.bf16.mxu0 %v2136
    %2557 = vmatpush1.bf16.msra.mxu0 %v2135
    %2558 = vmatprep.mubr.bf16.mxu0 %v860
    %2559 = vmatmul.mubr.bf16.gmra.mrb[0].mxu0 %v859
    %v2560 = vpop.f32.mrb[0].mxu0
    %v2561 = vadd.f32 %v2518, %v2560
    %v2562 = vpop.f32.mrb[0].mxu0
    %v2563 = vadd.f32 %v2520, %v2562
    %v2564 = vpop.f32.mrb[0].mxu0
    %v2565 = vadd.f32 %v2522, %v2564
    %v2566 = vpop.f32.mrb[0].mxu0
    %v2567 = vadd.f32 %v2524, %v2566
    %2568 = vdwg.mxu0
    %2569 = vmatprep.subr.bf16.mxu0 %v1890
    %2570 = vmatpush1.bf16.msra.mxu0 %v1889
    %2571 = vmatprep.subr.bf16.mxu0 %v1898
    %2572 = vmatpush1.bf16.msra.mxu0 %v1897
    %2573 = vmatprep.subr.bf16.mxu0 %v1906
    %2574 = vmatpush1.bf16.msra.mxu0 %v1905
    %2575 = vmatprep.subr.bf16.mxu0 %v1914
    %2576 = vmatpush1.bf16.msra.mxu0 %v1913
    %2577 = vmatprep.subr.bf16.mxu0 %v1922
    %2578 = vmatpush1.bf16.msra.mxu0 %v1921
    %2579 = vmatprep.subr.bf16.mxu0 %v1930
    %2580 = vmatpush1.bf16.msra.mxu0 %v1929
    %2581 = vmatprep.subr.bf16.mxu0 %v1938
    %2582 = vmatpush1.bf16.msra.mxu0 %v1937
    %2583 = vmatprep.subr.bf16.mxu0 %v1946
    %2584 = vmatpush1.bf16.msra.mxu0 %v1945
    %2585 = vmatprep.subr.bf16.mxu0 %v1954
    %2586 = vmatpush1.bf16.msra.mxu0 %v1953
    %2587 = vmatprep.subr.bf16.mxu0 %v1962
    %2588 = vmatpush1.bf16.msra.mxu0 %v1961
    %2589 = vmatprep.subr.bf16.mxu0 %v1970
    %2590 = vmatpush1.bf16.msra.mxu0 %v1969
    %2591 = vmatprep.subr.bf16.mxu0 %v1978
    %2592 = vmatpush1.bf16.msra.mxu0 %v1977
    %2593 = vmatprep.subr.bf16.mxu0 %v1986
    %2594 = vmatpush1.bf16.msra.mxu0 %v1985
    %2595 = vmatprep.subr.bf16.mxu0 %v1994
    %2596 = vmatpush1.bf16.msra.mxu0 %v1993
    %2597 = vmatprep.subr.bf16.mxu0 %v2002
    %2598 = vmatpush1.bf16.msra.mxu0 %v2001
    %2599 = vmatprep.subr.bf16.mxu0 %v2010
    %2600 = vmatpush1.bf16.msra.mxu0 %v2009
    %2601 = vmatprep.mubr.bf16.mxu0 %v858
    %2602 = vmatmul.mubr.bf16.gmra.mrb[0].mxu0 %v857
    %v2603 = vpop.f32.mrb[0].mxu0
    %v2604 = vadd.f32 0.0, %v2603
    %v2605 = vpop.f32.mrb[0].mxu0
    %v2606 = vadd.f32 0.0, %v2605
    %v2607 = vpop.f32.mrb[0].mxu0
    %v2608 = vadd.f32 0.0, %v2607
    %v2609 = vpop.f32.mrb[0].mxu0
    %v2610 = vadd.f32 0.0, %v2609
    %2611 = vdwg.mxu0
    %2612 = vmatprep.subr.bf16.mxu0 %v2018
    %2613 = vmatpush1.bf16.msra.mxu0 %v2017
    %2614 = vmatprep.subr.bf16.mxu0 %v2026
    %2615 = vmatpush1.bf16.msra.mxu0 %v2025
    %2616 = vmatprep.subr.bf16.mxu0 %v2034
    %2617 = vmatpush1.bf16.msra.mxu0 %v2033
    %2618 = vmatprep.subr.bf16.mxu0 %v2042
    %2619 = vmatpush1.bf16.msra.mxu0 %v2041
    %2620 = vmatprep.subr.bf16.mxu0 %v2050
    %2621 = vmatpush1.bf16.msra.mxu0 %v2049
    %2622 = vmatprep.subr.bf16.mxu0 %v2058
    %2623 = vmatpush1.bf16.msra.mxu0 %v2057
    %2624 = vmatprep.subr.bf16.mxu0 %v2066
    %2625 = vmatpush1.bf16.msra.mxu0 %v2065
    %2626 = vmatprep.subr.bf16.mxu0 %v2074
    %2627 = vmatpush1.bf16.msra.mxu0 %v2073
    %2628 = vmatprep.subr.bf16.mxu0 %v2082
    %2629 = vmatpush1.bf16.msra.mxu0 %v2081
    %2630 = vmatprep.subr.bf16.mxu0 %v2090
    %2631 = vmatpush1.bf16.msra.mxu0 %v2089
    %2632 = vmatprep.subr.bf16.mxu0 %v2098
    %2633 = vmatpush1.bf16.msra.mxu0 %v2097
    %2634 = vmatprep.subr.bf16.mxu0 %v2106
    %2635 = vmatpush1.bf16.msra.mxu0 %v2105
    %2636 = vmatprep.subr.bf16.mxu0 %v2114
    %2637 = vmatpush1.bf16.msra.mxu0 %v2113
    %2638 = vmatprep.subr.bf16.mxu0 %v2122
    %2639 = vmatpush1.bf16.msra.mxu0 %v2121
    %2640 = vmatprep.subr.bf16.mxu0 %v2130
    %2641 = vmatpush1.bf16.msra.mxu0 %v2129
    %2642 = vmatprep.subr.bf16.mxu0 %v2138
    %2643 = vmatpush1.bf16.msra.mxu0 %v2137
    %2644 = vmatprep.mubr.bf16.mxu0 %v860
    %2645 = vmatmul.mubr.bf16.gmra.mrb[0].mxu0 %v859
    %v2646 = vpop.f32.mrb[0].mxu0
    %v2647 = vadd.f32 %v2604, %v2646
    %v2648 = vpop.f32.mrb[0].mxu0
    %v2649 = vadd.f32 %v2606, %v2648
    %v2650 = vpop.f32.mrb[0].mxu0
    %v2651 = vadd.f32 %v2608, %v2650
    %v2652 = vpop.f32.mrb[0].mxu0
    %v2653 = vadd.f32 %v2610, %v2652
    %2654 = vdwg.mxu0
    %2655 = vmatprep.subr.bf16.mxu0 %v1892
    %2656 = vmatpush1.bf16.msra.mxu0 %v1891
    %2657 = vmatprep.subr.bf16.mxu0 %v1900
    %2658 = vmatpush1.bf16.msra.mxu0 %v1899
    %2659 = vmatprep.subr.bf16.mxu0 %v1908
    %2660 = vmatpush1.bf16.msra.mxu0 %v1907
    %2661 = vmatprep.subr.bf16.mxu0 %v1916
    %2662 = vmatpush1.bf16.msra.mxu0 %v1915
    %2663 = vmatprep.subr.bf16.mxu0 %v1924
    %2664 = vmatpush1.bf16.msra.mxu0 %v1923
    %2665 = vmatprep.subr.bf16.mxu0 %v1932
    %2666 = vmatpush1.bf16.msra.mxu0 %v1931
    %2667 = vmatprep.subr.bf16.mxu0 %v1940
    %2668 = vmatpush1.bf16.msra.mxu0 %v1939
    %2669 = vmatprep.subr.bf16.mxu0 %v1948
    %2670 = vmatpush1.bf16.msra.mxu0 %v1947
    %2671 = vmatprep.subr.bf16.mxu0 %v1956
    %2672 = vmatpush1.bf16.msra.mxu0 %v1955
    %2673 = vmatprep.subr.bf16.mxu0 %v1964
    %2674 = vmatpush1.bf16.msra.mxu0 %v1963
    %2675 = vmatprep.subr.bf16.mxu0 %v1972
    %2676 = vmatpush1.bf16.msra.mxu0 %v1971
    %2677 = vmatprep.subr.bf16.mxu0 %v1980
    %2678 = vmatpush1.bf16.msra.mxu0 %v1979
    %2679 = vmatprep.subr.bf16.mxu0 %v1988
    %2680 = vmatpush1.bf16.msra.mxu0 %v1987
    %2681 = vmatprep.subr.bf16.mxu0 %v1996
    %2682 = vmatpush1.bf16.msra.mxu0 %v1995
    %2683 = vmatprep.subr.bf16.mxu0 %v2004
    %2684 = vmatpush1.bf16.msra.mxu0 %v2003
    %2685 = vmatprep.subr.bf16.mxu0 %v2012
    %2686 = vmatpush1.bf16.msra.mxu0 %v2011
    %2687 = vmatprep.mubr.bf16.mxu0 %v858
    %2688 = vmatmul.mubr.bf16.gmra.mrb[0].mxu0 %v857
    %v2689 = vpop.f32.mrb[0].mxu0
    %v2690 = vadd.f32 0.0, %v2689
    %v2691 = vpop.f32.mrb[0].mxu0
    %v2692 = vadd.f32 0.0, %v2691
    %v2693 = vpop.f32.mrb[0].mxu0
    %v2694 = vadd.f32 0.0, %v2693
    %v2695 = vpop.f32.mrb[0].mxu0
    %v2696 = vadd.f32 0.0, %v2695
    %2697 = vdwg.mxu0
    %2698 = vmatprep.subr.bf16.mxu0 %v2020
    %2699 = vmatpush1.bf16.msra.mxu0 %v2019
    %2700 = vmatprep.subr.bf16.mxu0 %v2028
    %2701 = vmatpush1.bf16.msra.mxu0 %v2027
    %2702 = vmatprep.subr.bf16.mxu0 %v2036
    %2703 = vmatpush1.bf16.msra.mxu0 %v2035
    %2704 = vmatprep.subr.bf16.mxu0 %v2044
    %2705 = vmatpush1.bf16.msra.mxu0 %v2043
    %2706 = vmatprep.subr.bf16.mxu0 %v2052
    %2707 = vmatpush1.bf16.msra.mxu0 %v2051
    %2708 = vmatprep.subr.bf16.mxu0 %v2060
    %2709 = vmatpush1.bf16.msra.mxu0 %v2059
    %2710 = vmatprep.subr.bf16.mxu0 %v2068
    %2711 = vmatpush1.bf16.msra.mxu0 %v2067
    %2712 = vmatprep.subr.bf16.mxu0 %v2076
    %2713 = vmatpush1.bf16.msra.mxu0 %v2075
    %2714 = vmatprep.subr.bf16.mxu0 %v2084
    %2715 = vmatpush1.bf16.msra.mxu0 %v2083
    %2716 = vmatprep.subr.bf16.mxu0 %v2092
    %2717 = vmatpush1.bf16.msra.mxu0 %v2091
    %2718 = vmatprep.subr.bf16.mxu0 %v2100
    %2719 = vmatpush1.bf16.msra.mxu0 %v2099
    %2720 = vmatprep.subr.bf16.mxu0 %v2108
    %2721 = vmatpush1.bf16.msra.mxu0 %v2107
    %2722 = vmatprep.subr.bf16.mxu0 %v2116
    %2723 = vmatpush1.bf16.msra.mxu0 %v2115
    %2724 = vmatprep.subr.bf16.mxu0 %v2124
    %2725 = vmatpush1.bf16.msra.mxu0 %v2123
    %2726 = vmatprep.subr.bf16.mxu0 %v2132
    %2727 = vmatpush1.bf16.msra.mxu0 %v2131
    %2728 = vmatprep.subr.bf16.mxu0 %v2140
    %2729 = vmatpush1.bf16.msra.mxu0 %v2139
    %2730 = vmatprep.mubr.bf16.mxu0 %v860
    %2731 = vmatmul.mubr.bf16.gmra.mrb[0].mxu0 %v859
    %v2732 = vpop.f32.mrb[0].mxu0
    %v2733 = vadd.f32 %v2690, %v2732
    %v2734 = vpop.f32.mrb[0].mxu0
    %v2735 = vadd.f32 %v2692, %v2734
    %v2736 = vpop.f32.mrb[0].mxu0
    %v2737 = vadd.f32 %v2694, %v2736
    %v2738 = vpop.f32.mrb[0].mxu0
    %v2739 = vadd.f32 %v2696, %v2738
    %2740 = vdwg.mxu0
    %v2741 = vpack.c.bf16 %v2479, %v2475
    %v2742 = vpack.c.bf16 %v2481, %v2477
    %v2743 = vpack.c.bf16 %v2565, %v2561
    %v2744 = vpack.c.bf16 %v2567, %v2563
    %v2745 = vpack.c.bf16 %v2651, %v2647
    %v2746 = vpack.c.bf16 %v2653, %v2649
    %v2747 = vpack.c.bf16 %v2737, %v2733
    %v2748 = vpack.c.bf16 %v2739, %v2735
    %v2749 = vld [vmem:[#allocation10] sm:$0xff]
    %v2751 = vcombine.high %v2749, %v2749
    %v2753 = vunpack.c.l.s4 1966171168
    %v2754 = vunpack.c.0.s8 %v2753
    %v2755 = vlaneseq
    %v2756 = vshrl.u32 %v2755, 7
    %v2757 = vsub.s32 %v2754, %v2756
    %v2758 = vrot.slane %v2749, %v2757
    %v2760 = vunpack.c.l.s4 1966171168
    %v2761 = vunpack.c.0.s8 %v2760
    %v2762 = vlaneseq
    %v2763 = vshrl.u32 %v2762, 7
    %v2764 = vsub.s32 %v2761, %v2763
    %v2765 = vrot.slane %v2751, %v2764
    %v2766 = vcombine.high %v2758, %v2758
    %v2767 = vcombine.high %v2765, %v2765
    %v2769 = vunpack.c.l.s4 1966171168
    %v2770 = vunpack.c.0.s8 %v2769
    %v2771 = vlaneseq
    %v2772 = vshrl.u32 %v2771, 7
    %v2773 = vsub.s32 %v2770, %v2772
    %v2774 = vrot.slane %v2758, %v2773
    %v2776 = vunpack.c.l.s4 1966171168
    %v2777 = vunpack.c.0.s8 %v2776
    %v2778 = vlaneseq
    %v2779 = vshrl.u32 %v2778, 7
    %v2780 = vsub.s32 %v2777, %v2779
    %v2781 = vrot.slane %v2765, %v2780
    %v2783 = vunpack.c.l.s4 1966171168
    %v2784 = vunpack.c.0.s8 %v2783
    %v2785 = vlaneseq
    %v2786 = vshrl.u32 %v2785, 7
    %v2787 = vsub.s32 %v2784, %v2786
    %v2788 = vrot.slane %v2766, %v2787
    %v2790 = vunpack.c.l.s4 1966171168
    %v2791 = vunpack.c.0.s8 %v2790
    %v2792 = vlaneseq
    %v2793 = vshrl.u32 %v2792, 7
    %v2794 = vsub.s32 %v2791, %v2793
    %v2795 = vrot.slane %v2767, %v2794
    %v2796 = vcombine.high %v2774, %v2774
    %v2797 = vcombine.high %v2781, %v2781
    %v2798 = vcombine.high %v2788, %v2788
    %v2799 = vcombine.high %v2795, %v2795
    %v2801 = vpack.i.b16 %v2774, %v2774
    %v2803 = vlaneseq
    %v2804 = vshrl.u32 %v2803, 7
    %v2805 = vsub.s32 0, %v2804
    %v2806 = vrot.slane %v2801, %v2805
    %v2808 = vpack.i.b16 %v2788, %v2788
    %v2810 = vlaneseq
    %v2811 = vshrl.u32 %v2810, 7
    %v2812 = vsub.s32 0, %v2811
    %v2813 = vrot.slane %v2808, %v2812
    %v2815 = vpack.i.b16 %v2796, %v2796
    %v2817 = vlaneseq
    %v2818 = vshrl.u32 %v2817, 7
    %v2819 = vsub.s32 0, %v2818
    %v2820 = vrot.slane %v2815, %v2819
    %v2822 = vpack.i.b16 %v2798, %v2798
    %v2824 = vlaneseq
    %v2825 = vshrl.u32 %v2824, 7
    %v2826 = vsub.s32 0, %v2825
    %v2827 = vrot.slane %v2822, %v2826
    %v2829 = vpack.i.b16 %v2781, %v2781
    %v2831 = vlaneseq
    %v2832 = vshrl.u32 %v2831, 7
    %v2833 = vsub.s32 0, %v2832
    %v2834 = vrot.slane %v2829, %v2833
    %v2836 = vpack.i.b16 %v2795, %v2795
    %v2838 = vlaneseq
    %v2839 = vshrl.u32 %v2838, 7
    %v2840 = vsub.s32 0, %v2839
    %v2841 = vrot.slane %v2836, %v2840
    %v2843 = vpack.i.b16 %v2797, %v2797
    %v2845 = vlaneseq
    %v2846 = vshrl.u32 %v2845, 7
    %v2847 = vsub.s32 0, %v2846
    %v2848 = vrot.slane %v2843, %v2847
    %v2850 = vpack.i.b16 %v2799, %v2799
    %v2852 = vlaneseq
    %v2853 = vshrl.u32 %v2852, 7
    %v2854 = vsub.s32 0, %v2853
    %v2855 = vrot.slane %v2850, %v2854
    %v2856 = vadd.bf16 %v2741, %v2806
    %v2857 = vadd.bf16 %v2742, %v2813
    %v2858 = vadd.bf16 %v2743, %v2820
    %v2859 = vadd.bf16 %v2744, %v2827
    %v2860 = vadd.bf16 %v2745, %v2834
    %v2861 = vadd.bf16 %v2746, %v2841
    %v2862 = vadd.bf16 %v2747, %v2848
    %v2863 = vadd.bf16 %v2748, %v2855
    %v2864 = vmax.bf16 %v2856, 0
    %v2865 = vmax.bf16 %v2857, 0
    %v2866 = vmax.bf16 %v2858, 0
    %v2867 = vmax.bf16 %v2859, 0
    %v2868 = vmax.bf16 %v2860, 0
    %v2869 = vmax.bf16 %v2861, 0
    %v2870 = vmax.bf16 %v2862, 0
    %v2871 = vmax.bf16 %v2863, 0
    %v2872 = vld [vmem:[#allocation12] sm:$0xff]
    %v2873 = vld [vmem:[#allocation12 + $0x8] sm:$0xff]
    %v2874 = vld [vmem:[#allocation12 + $0x10] sm:$0xff]
    %v2875 = vld [vmem:[#allocation12 + $0x18] sm:$0xf]
    %v2876 = vld [vmem:[#allocation12 + $0x1c] sm:$0xff]
    %v2877 = vld [vmem:[#allocation12 + $0x24] sm:$0xff]
    %v2878 = vld [vmem:[#allocation12 + $0x2c] sm:$0xff]
    %v2879 = vld [vmem:[#allocation12 + $0x34] sm:$0xf]
    %v2880 = vld [vmem:[#allocation12 + $0x38] sm:$0xff]
    %v2881 = vld [vmem:[#allocation12 + $0x40] sm:$0xff]
    %v2882 = vld [vmem:[#allocation12 + $0x48] sm:$0xff]
    %v2883 = vld [vmem:[#allocation12 + $0x50] sm:$0xf]
    %v2884 = vld [vmem:[#allocation12 + $0x54] sm:$0xff]
    %v2885 = vld [vmem:[#allocation12 + $0x5c] sm:$0xff]
    %v2886 = vld [vmem:[#allocation12 + $0x64] sm:$0xff]
    %v2887 = vld [vmem:[#allocation12 + $0x6c] sm:$0xf]
    %v2888 = vld [vmem:[#allocation12 + $0x70] sm:$0xff]
    %v2889 = vld [vmem:[#allocation12 + $0x78] sm:$0xff]
    %v2890 = vld [vmem:[#allocation12 + $0x80] sm:$0xff]
    %v2891 = vld [vmem:[#allocation12 + $0x88] sm:$0xf]
    %v2892 = vld [vmem:[#allocation12 + $0x8c] sm:$0xff]
    %v2893 = vld [vmem:[#allocation12 + $0x94] sm:$0xff]
    %v2894 = vld [vmem:[#allocation12 + $0x9c] sm:$0xff]
    %v2895 = vld [vmem:[#allocation12 + $0xa4] sm:$0xf]
    %v2896 = vld [vmem:[#allocation12 + $0xa8] sm:$0xff]
    %v2897 = vld [vmem:[#allocation12 + $0xb0] sm:$0xff]
    %v2898 = vld [vmem:[#allocation12 + $0xb8] sm:$0xff]
    %v2899 = vld [vmem:[#allocation12 + $0xc0] sm:$0xf]
    %v2900 = vld [vmem:[#allocation12 + $0xc4] sm:$0xff]
    %v2901 = vld [vmem:[#allocation12 + $0xcc] sm:$0xff]
    %v2902 = vld [vmem:[#allocation12 + $0xd4] sm:$0xff]
    %v2903 = vld [vmem:[#allocation12 + $0xdc] sm:$0xf]
    %v2904 = vld [vmem:[#allocation12 + $0xe0] sm:$0xff]
    %v2905 = vld [vmem:[#allocation12 + $0xe8] sm:$0xff]
    %v2906 = vld [vmem:[#allocation12 + $0xf0] sm:$0xff]
    %v2907 = vld [vmem:[#allocation12 + $0xf8] sm:$0xf]
    %v2908 = vld [vmem:[#allocation12 + $0xfc] sm:$0xff]
    %v2909 = vld [vmem:[#allocation12 + $0x104] sm:$0xff]
    %v2910 = vld [vmem:[#allocation12 + $0x10c] sm:$0xff]
    %v2911 = vld [vmem:[#allocation12 + $0x114] sm:$0xf]
    %v2912 = vld [vmem:[#allocation12 + $0x118] sm:$0xff]
    %v2913 = vld [vmem:[#allocation12 + $0x120] sm:$0xff]
    %v2914 = vld [vmem:[#allocation12 + $0x128] sm:$0xff]
    %v2915 = vld [vmem:[#allocation12 + $0x130] sm:$0xf]
    %v2916 = vld [vmem:[#allocation12 + $0x134] sm:$0xff]
    %v2917 = vld [vmem:[#allocation12 + $0x13c] sm:$0xff]
    %v2918 = vld [vmem:[#allocation12 + $0x144] sm:$0xff]
    %v2919 = vld [vmem:[#allocation12 + $0x14c] sm:$0xf]
    %v2920 = vld [vmem:[#allocation12 + $0x150] sm:$0xff]
    %v2921 = vld [vmem:[#allocation12 + $0x158] sm:$0xff]
    %v2922 = vld [vmem:[#allocation12 + $0x160] sm:$0xff]
    %v2923 = vld [vmem:[#allocation12 + $0x168] sm:$0xf]
    %v2924 = vld [vmem:[#allocation12 + $0x16c] sm:$0xff]
    %v2925 = vld [vmem:[#allocation12 + $0x174] sm:$0xff]
    %v2926 = vld [vmem:[#allocation12 + $0x17c] sm:$0xff]
    %v2927 = vld [vmem:[#allocation12 + $0x184] sm:$0xf]
    %v2928 = vld [vmem:[#allocation12 + $0x188] sm:$0xff]
    %v2929 = vld [vmem:[#allocation12 + $0x190] sm:$0xff]
    %v2930 = vld [vmem:[#allocation12 + $0x198] sm:$0xff]
    %v2931 = vld [vmem:[#allocation12 + $0x1a0] sm:$0xf]
    %v2932 = vld [vmem:[#allocation12 + $0x1a4] sm:$0xff]
    %v2933 = vld [vmem:[#allocation12 + $0x1ac] sm:$0xff]
    %v2934 = vld [vmem:[#allocation12 + $0x1b4] sm:$0xff]
    %v2935 = vld [vmem:[#allocation12 + $0x1bc] sm:$0xf]
    %v2936 = vld [vmem:[#allocation12 + $0x1c0] sm:$0xff]
    %v2937 = vld [vmem:[#allocation12 + $0x1c8] sm:$0xff]
    %v2938 = vld [vmem:[#allocation12 + $0x1d0] sm:$0xff]
    %v2939 = vld [vmem:[#allocation12 + $0x1d8] sm:$0xf]
    %v2940 = vld [vmem:[#allocation12 + $0x1dc] sm:$0xff]
    %v2941 = vld [vmem:[#allocation12 + $0x1e4] sm:$0xff]
    %v2942 = vld [vmem:[#allocation12 + $0x1ec] sm:$0xff]
    %v2943 = vld [vmem:[#allocation12 + $0x1f4] sm:$0xf]
    %v2944 = vld [vmem:[#allocation12 + $0x1f8] sm:$0xff]
    %v2945 = vld [vmem:[#allocation12 + $0x200] sm:$0xff]
    %v2946 = vld [vmem:[#allocation12 + $0x208] sm:$0xff]
    %v2947 = vld [vmem:[#allocation12 + $0x210] sm:$0xf]
    %v2948 = vld [vmem:[#allocation12 + $0x214] sm:$0xff]
    %v2949 = vld [vmem:[#allocation12 + $0x21c] sm:$0xff]
    %v2950 = vld [vmem:[#allocation12 + $0x224] sm:$0xff]
    %v2951 = vld [vmem:[#allocation12 + $0x22c] sm:$0xf]
    %v2952 = vld [vmem:[#allocation12 + $0x230] sm:$0xff]
    %v2953 = vld [vmem:[#allocation12 + $0x238] sm:$0xff]
    %v2954 = vld [vmem:[#allocation12 + $0x240] sm:$0xff]
    %v2955 = vld [vmem:[#allocation12 + $0x248] sm:$0xf]
    %v2956 = vld [vmem:[#allocation12 + $0x24c] sm:$0xff]
    %v2957 = vld [vmem:[#allocation12 + $0x254] sm:$0xff]
    %v2958 = vld [vmem:[#allocation12 + $0x25c] sm:$0xff]
    %v2959 = vld [vmem:[#allocation12 + $0x264] sm:$0xf]
    %v2960 = vld [vmem:[#allocation12 + $0x268] sm:$0xff]
    %v2961 = vld [vmem:[#allocation12 + $0x270] sm:$0xff]
    %v2962 = vld [vmem:[#allocation12 + $0x278] sm:$0xff]
    %v2963 = vld [vmem:[#allocation12 + $0x280] sm:$0xf]
    %v2964 = vld [vmem:[#allocation12 + $0x284] sm:$0xff]
    %v2965 = vld [vmem:[#allocation12 + $0x28c] sm:$0xff]
    %v2966 = vld [vmem:[#allocation12 + $0x294] sm:$0xff]
    %v2967 = vld [vmem:[#allocation12 + $0x29c] sm:$0xf]
    %v2968 = vld [vmem:[#allocation12 + $0x2a0] sm:$0xff]
    %v2969 = vld [vmem:[#allocation12 + $0x2a8] sm:$0xff]
    %v2970 = vld [vmem:[#allocation12 + $0x2b0] sm:$0xff]
    %v2971 = vld [vmem:[#allocation12 + $0x2b8] sm:$0xf]
    %v2972 = vld [vmem:[#allocation12 + $0x2bc] sm:$0xff]
    %v2973 = vld [vmem:[#allocation12 + $0x2c4] sm:$0xff]
    %v2974 = vld [vmem:[#allocation12 + $0x2cc] sm:$0xff]
    %v2975 = vld [vmem:[#allocation12 + $0x2d4] sm:$0xf]
    %v2976 = vld [vmem:[#allocation12 + $0x2d8] sm:$0xff]
    %v2977 = vld [vmem:[#allocation12 + $0x2e0] sm:$0xff]
    %v2978 = vld [vmem:[#allocation12 + $0x2e8] sm:$0xff]
    %v2979 = vld [vmem:[#allocation12 + $0x2f0] sm:$0xf]
    %v2980 = vld [vmem:[#allocation12 + $0x2f4] sm:$0xff]
    %v2981 = vld [vmem:[#allocation12 + $0x2fc] sm:$0xff]
    %v2982 = vld [vmem:[#allocation12 + $0x304] sm:$0xff]
    %v2983 = vld [vmem:[#allocation12 + $0x30c] sm:$0xf]
    %v2984 = vld [vmem:[#allocation12 + $0x310] sm:$0xff]
    %v2985 = vld [vmem:[#allocation12 + $0x318] sm:$0xff]
    %v2986 = vld [vmem:[#allocation12 + $0x320] sm:$0xff]
    %v2987 = vld [vmem:[#allocation12 + $0x328] sm:$0xf]
    %v2988 = vld [vmem:[#allocation12 + $0x32c] sm:$0xff]
    %v2989 = vld [vmem:[#allocation12 + $0x334] sm:$0xff]
    %v2990 = vld [vmem:[#allocation12 + $0x33c] sm:$0xff]
    %v2991 = vld [vmem:[#allocation12 + $0x344] sm:$0xf]
    %v2992 = vld [vmem:[#allocation12 + $0x348] sm:$0xff]
    %v2993 = vld [vmem:[#allocation12 + $0x350] sm:$0xff]
    %v2994 = vld [vmem:[#allocation12 + $0x358] sm:$0xff]
    %v2995 = vld [vmem:[#allocation12 + $0x360] sm:$0xf]
    %v2996 = vld [vmem:[#allocation12 + $0x364] sm:$0xff]
    %v2997 = vld [vmem:[#allocation12 + $0x36c] sm:$0xff]
    %v2998 = vld [vmem:[#allocation12 + $0x374] sm:$0xff]
    %v2999 = vld [vmem:[#allocation12 + $0x37c] sm:$0xf]
    %v3000 = vld [vmem:[#allocation12 + $0x380] sm:$0xff]
    %v3001 = vld [vmem:[#allocation12 + $0x388] sm:$0xff]
    %v3002 = vld [vmem:[#allocation12 + $0x390] sm:$0xff]
    %v3003 = vld [vmem:[#allocation12 + $0x398] sm:$0xf]
    %v3004 = vld [vmem:[#allocation12 + $0x39c] sm:$0xff]
    %v3005 = vld [vmem:[#allocation12 + $0x3a4] sm:$0xff]
    %v3006 = vld [vmem:[#allocation12 + $0x3ac] sm:$0xff]
    %v3007 = vld [vmem:[#allocation12 + $0x3b4] sm:$0xf]
    %v3008 = vld [vmem:[#allocation12 + $0x3b8] sm:$0xff]
    %v3009 = vld [vmem:[#allocation12 + $0x3c0] sm:$0xff]
    %v3010 = vld [vmem:[#allocation12 + $0x3c8] sm:$0xff]
    %v3011 = vld [vmem:[#allocation12 + $0x3d0] sm:$0xf]
    %v3012 = vld [vmem:[#allocation12 + $0x3d4] sm:$0xff]
    %v3013 = vld [vmem:[#allocation12 + $0x3dc] sm:$0xff]
    %v3014 = vld [vmem:[#allocation12 + $0x3e4] sm:$0xff]
    %v3015 = vld [vmem:[#allocation12 + $0x3ec] sm:$0xf]
    %v3016 = vld [vmem:[#allocation12 + $0x3f0] sm:$0xff]
    %v3017 = vld [vmem:[#allocation12 + $0x3f8] sm:$0xff]
    %v3018 = vld [vmem:[#allocation12 + $0x400] sm:$0xff]
    %v3019 = vld [vmem:[#allocation12 + $0x408] sm:$0xf]
    %v3020 = vld [vmem:[#allocation12 + $0x40c] sm:$0xff]
    %v3021 = vld [vmem:[#allocation12 + $0x414] sm:$0xff]
    %v3022 = vld [vmem:[#allocation12 + $0x41c] sm:$0xff]
    %v3023 = vld [vmem:[#allocation12 + $0x424] sm:$0xf]
    %v3024 = vld [vmem:[#allocation12 + $0x428] sm:$0xff]
    %v3025 = vld [vmem:[#allocation12 + $0x430] sm:$0xff]
    %v3026 = vld [vmem:[#allocation12 + $0x438] sm:$0xff]
    %v3027 = vld [vmem:[#allocation12 + $0x440] sm:$0xf]
    %v3028 = vld [vmem:[#allocation12 + $0x444] sm:$0xff]
    %v3029 = vld [vmem:[#allocation12 + $0x44c] sm:$0xff]
    %v3030 = vld [vmem:[#allocation12 + $0x454] sm:$0xff]
    %v3031 = vld [vmem:[#allocation12 + $0x45c] sm:$0xf]
    %v3032 = vld [vmem:[#allocation12 + $0x460] sm:$0xff]
    %v3033 = vld [vmem:[#allocation12 + $0x468] sm:$0xff]
    %v3034 = vld [vmem:[#allocation12 + $0x470] sm:$0xff]
    %v3035 = vld [vmem:[#allocation12 + $0x478] sm:$0xf]
    %v3036 = vld [vmem:[#allocation12 + $0x47c] sm:$0xff]
    %v3037 = vld [vmem:[#allocation12 + $0x484] sm:$0xff]
    %v3038 = vld [vmem:[#allocation12 + $0x48c] sm:$0xff]
    %v3039 = vld [vmem:[#allocation12 + $0x494] sm:$0xf]
    %v3040 = vld [vmem:[#allocation12 + $0x498] sm:$0xff]
    %v3041 = vld [vmem:[#allocation12 + $0x4a0] sm:$0xff]
    %v3042 = vld [vmem:[#allocation12 + $0x4a8] sm:$0xff]
    %v3043 = vld [vmem:[#allocation12 + $0x4b0] sm:$0xf]
    %v3044 = vld [vmem:[#allocation12 + $0x4b4] sm:$0xff]
    %v3045 = vld [vmem:[#allocation12 + $0x4bc] sm:$0xff]
    %v3046 = vld [vmem:[#allocation12 + $0x4c4] sm:$0xff]
    %v3047 = vld [vmem:[#allocation12 + $0x4cc] sm:$0xf]
    %v3048 = vld [vmem:[#allocation12 + $0x4d0] sm:$0xff]
    %v3049 = vld [vmem:[#allocation12 + $0x4d8] sm:$0xff]
    %v3050 = vld [vmem:[#allocation12 + $0x4e0] sm:$0xff]
    %v3051 = vld [vmem:[#allocation12 + $0x4e8] sm:$0xf]
    %v3052 = vld [vmem:[#allocation12 + $0x4ec] sm:$0xff]
    %v3053 = vld [vmem:[#allocation12 + $0x4f4] sm:$0xff]
    %v3054 = vld [vmem:[#allocation12 + $0x4fc] sm:$0xff]
    %v3055 = vld [vmem:[#allocation12 + $0x504] sm:$0xf]
    %v3056 = vld [vmem:[#allocation12 + $0x508] sm:$0xff]
    %v3057 = vld [vmem:[#allocation12 + $0x510] sm:$0xff]
    %v3058 = vld [vmem:[#allocation12 + $0x518] sm:$0xff]
    %v3059 = vld [vmem:[#allocation12 + $0x520] sm:$0xf]
    %v3060 = vld [vmem:[#allocation12 + $0x524] sm:$0xff]
    %v3061 = vld [vmem:[#allocation12 + $0x52c] sm:$0xff]
    %v3062 = vld [vmem:[#allocation12 + $0x534] sm:$0xff]
    %v3063 = vld [vmem:[#allocation12 + $0x53c] sm:$0xf]
    %v3064 = vld [vmem:[#allocation12 + $0x540] sm:$0xff]
    %v3065 = vld [vmem:[#allocation12 + $0x548] sm:$0xff]
    %v3066 = vld [vmem:[#allocation12 + $0x550] sm:$0xff]
    %v3067 = vld [vmem:[#allocation12 + $0x558] sm:$0xf]
    %v3068 = vld [vmem:[#allocation12 + $0x55c] sm:$0xff]
    %v3069 = vld [vmem:[#allocation12 + $0x564] sm:$0xff]
    %v3070 = vld [vmem:[#allocation12 + $0x56c] sm:$0xff]
    %v3071 = vld [vmem:[#allocation12 + $0x574] sm:$0xf]
    %v3072 = vld [vmem:[#allocation12 + $0x578] sm:$0xff]
    %v3073 = vld [vmem:[#allocation12 + $0x580] sm:$0xff]
    %v3074 = vld [vmem:[#allocation12 + $0x588] sm:$0xff]
    %v3075 = vld [vmem:[#allocation12 + $0x590] sm:$0xf]
    %v3076 = vld [vmem:[#allocation12 + $0x594] sm:$0xff]
    %v3077 = vld [vmem:[#allocation12 + $0x59c] sm:$0xff]
    %v3078 = vld [vmem:[#allocation12 + $0x5a4] sm:$0xff]
    %v3079 = vld [vmem:[#allocation12 + $0x5ac] sm:$0xf]
    %v3080 = vld [vmem:[#allocation12 + $0x5b0] sm:$0xff]
    %v3081 = vld [vmem:[#allocation12 + $0x5b8] sm:$0xff]
    %v3082 = vld [vmem:[#allocation12 + $0x5c0] sm:$0xff]
    %v3083 = vld [vmem:[#allocation12 + $0x5c8] sm:$0xf]
    %v3084 = vld [vmem:[#allocation12 + $0x5cc] sm:$0xff]
    %v3085 = vld [vmem:[#allocation12 + $0x5d4] sm:$0xff]
    %v3086 = vld [vmem:[#allocation12 + $0x5dc] sm:$0xff]
    %v3087 = vld [vmem:[#allocation12 + $0x5e4] sm:$0xf]
    %v3088 = vld [vmem:[#allocation12 + $0x5e8] sm:$0xff]
    %v3089 = vld [vmem:[#allocation12 + $0x5f0] sm:$0xff]
    %v3090 = vld [vmem:[#allocation12 + $0x5f8] sm:$0xff]
    %v3091 = vld [vmem:[#allocation12 + $0x600] sm:$0xf]
    %v3092 = vld [vmem:[#allocation12 + $0x604] sm:$0xff]
    %v3093 = vld [vmem:[#allocation12 + $0x60c] sm:$0xff]
    %v3094 = vld [vmem:[#allocation12 + $0x614] sm:$0xff]
    %v3095 = vld [vmem:[#allocation12 + $0x61c] sm:$0xf]
    %v3096 = vld [vmem:[#allocation12 + $0x620] sm:$0xff]
    %v3097 = vld [vmem:[#allocation12 + $0x628] sm:$0xff]
    %v3098 = vld [vmem:[#allocation12 + $0x630] sm:$0xff]
    %v3099 = vld [vmem:[#allocation12 + $0x638] sm:$0xf]
    %v3100 = vld [vmem:[#allocation12 + $0x63c] sm:$0xff]
    %v3101 = vld [vmem:[#allocation12 + $0x644] sm:$0xff]
    %v3102 = vld [vmem:[#allocation12 + $0x64c] sm:$0xff]
    %v3103 = vld [vmem:[#allocation12 + $0x654] sm:$0xf]
    %v3104 = vld [vmem:[#allocation12 + $0x658] sm:$0xff]
    %v3105 = vld [vmem:[#allocation12 + $0x660] sm:$0xff]
    %v3106 = vld [vmem:[#allocation12 + $0x668] sm:$0xff]
    %v3107 = vld [vmem:[#allocation12 + $0x670] sm:$0xf]
    %v3108 = vld [vmem:[#allocation12 + $0x674] sm:$0xff]
    %v3109 = vld [vmem:[#allocation12 + $0x67c] sm:$0xff]
    %v3110 = vld [vmem:[#allocation12 + $0x684] sm:$0xff]
    %v3111 = vld [vmem:[#allocation12 + $0x68c] sm:$0xf]
    %v3112 = vld [vmem:[#allocation12 + $0x690] sm:$0xff]
    %v3113 = vld [vmem:[#allocation12 + $0x698] sm:$0xff]
    %v3114 = vld [vmem:[#allocation12 + $0x6a0] sm:$0xff]
    %v3115 = vld [vmem:[#allocation12 + $0x6a8] sm:$0xf]
    %v3116 = vld [vmem:[#allocation12 + $0x6ac] sm:$0xff]
    %v3117 = vld [vmem:[#allocation12 + $0x6b4] sm:$0xff]
    %v3118 = vld [vmem:[#allocation12 + $0x6bc] sm:$0xff]
    %v3119 = vld [vmem:[#allocation12 + $0x6c4] sm:$0xf]
    %v3120 = vld [vmem:[#allocation12 + $0x6c8] sm:$0xff]
    %v3121 = vld [vmem:[#allocation12 + $0x6d0] sm:$0xff]
    %v3122 = vld [vmem:[#allocation12 + $0x6d8] sm:$0xff]
    %v3123 = vld [vmem:[#allocation12 + $0x6e0] sm:$0xf]
    %v3124 = vld [vmem:[#allocation12 + $0x6e4] sm:$0xff]
    %v3125 = vld [vmem:[#allocation12 + $0x6ec] sm:$0xff]
    %v3126 = vld [vmem:[#allocation12 + $0x6f4] sm:$0xff]
    %v3127 = vld [vmem:[#allocation12 + $0x6fc] sm:$0xf]
    %v3128 = vld [vmem:[#allocation12 + $0x700] sm:$0xff]
    %v3129 = vld [vmem:[#allocation12 + $0x708] sm:$0xff]
    %v3130 = vld [vmem:[#allocation12 + $0x710] sm:$0xff]
    %v3131 = vld [vmem:[#allocation12 + $0x718] sm:$0xf]
    %v3132 = vld [vmem:[#allocation12 + $0x71c] sm:$0xff]
    %v3133 = vld [vmem:[#allocation12 + $0x724] sm:$0xff]
    %v3134 = vld [vmem:[#allocation12 + $0x72c] sm:$0xff]
    %v3135 = vld [vmem:[#allocation12 + $0x734] sm:$0xf]
    %v3136 = vld [vmem:[#allocation12 + $0x738] sm:$0xff]
    %v3137 = vld [vmem:[#allocation12 + $0x740] sm:$0xff]
    %v3138 = vld [vmem:[#allocation12 + $0x748] sm:$0xff]
    %v3139 = vld [vmem:[#allocation12 + $0x750] sm:$0xf]
    %v3140 = vld [vmem:[#allocation12 + $0x754] sm:$0xff]
    %v3141 = vld [vmem:[#allocation12 + $0x75c] sm:$0xff]
    %v3142 = vld [vmem:[#allocation12 + $0x764] sm:$0xff]
    %v3143 = vld [vmem:[#allocation12 + $0x76c] sm:$0xf]
    %v3144 = vld [vmem:[#allocation12 + $0x770] sm:$0xff]
    %v3145 = vld [vmem:[#allocation12 + $0x778] sm:$0xff]
    %v3146 = vld [vmem:[#allocation12 + $0x780] sm:$0xff]
    %v3147 = vld [vmem:[#allocation12 + $0x788] sm:$0xf]
    %v3148 = vld [vmem:[#allocation12 + $0x78c] sm:$0xff]
    %v3149 = vld [vmem:[#allocation12 + $0x794] sm:$0xff]
    %v3150 = vld [vmem:[#allocation12 + $0x79c] sm:$0xff]
    %v3151 = vld [vmem:[#allocation12 + $0x7a4] sm:$0xf]
    %v3152 = vld [vmem:[#allocation12 + $0x7a8] sm:$0xff]
    %v3153 = vld [vmem:[#allocation12 + $0x7b0] sm:$0xff]
    %v3154 = vld [vmem:[#allocation12 + $0x7b8] sm:$0xff]
    %v3155 = vld [vmem:[#allocation12 + $0x7c0] sm:$0xf]
    %v3156 = vld [vmem:[#allocation12 + $0x7c4] sm:$0xff]
    %v3157 = vld [vmem:[#allocation12 + $0x7cc] sm:$0xff]
    %v3158 = vld [vmem:[#allocation12 + $0x7d4] sm:$0xff]
    %v3159 = vld [vmem:[#allocation12 + $0x7dc] sm:$0xf]
    %v3160 = vld [vmem:[#allocation12 + $0x7e0] sm:$0xff]
    %v3161 = vld [vmem:[#allocation12 + $0x7e8] sm:$0xff]
    %v3162 = vld [vmem:[#allocation12 + $0x7f0] sm:$0xff]
    %v3163 = vld [vmem:[#allocation12 + $0x7f8] sm:$0xf]
    %v3164 = vld [vmem:[#allocation12 + $0x7fc] sm:$0xff]
    %v3165 = vld [vmem:[#allocation12 + $0x804] sm:$0xff]
    %v3166 = vld [vmem:[#allocation12 + $0x80c] sm:$0xff]
    %v3167 = vld [vmem:[#allocation12 + $0x814] sm:$0xf]
    %v3168 = vld [vmem:[#allocation12 + $0x818] sm:$0xff]
    %v3169 = vld [vmem:[#allocation12 + $0x820] sm:$0xff]
    %v3170 = vld [vmem:[#allocation12 + $0x828] sm:$0xff]
    %v3171 = vld [vmem:[#allocation12 + $0x830] sm:$0xf]
    %v3172 = vld [vmem:[#allocation12 + $0x834] sm:$0xff]
    %v3173 = vld [vmem:[#allocation12 + $0x83c] sm:$0xff]
    %v3174 = vld [vmem:[#allocation12 + $0x844] sm:$0xff]
    %v3175 = vld [vmem:[#allocation12 + $0x84c] sm:$0xf]
    %v3176 = vld [vmem:[#allocation12 + $0x850] sm:$0xff]
    %v3177 = vld [vmem:[#allocation12 + $0x858] sm:$0xff]
    %v3178 = vld [vmem:[#allocation12 + $0x860] sm:$0xff]
    %v3179 = vld [vmem:[#allocation12 + $0x868] sm:$0xf]
    %v3180 = vld [vmem:[#allocation12 + $0x86c] sm:$0xff]
    %v3181 = vld [vmem:[#allocation12 + $0x874] sm:$0xff]
    %v3182 = vld [vmem:[#allocation12 + $0x87c] sm:$0xff]
    %v3183 = vld [vmem:[#allocation12 + $0x884] sm:$0xf]
    %v3184 = vld [vmem:[#allocation12 + $0x888] sm:$0xff]
    %v3185 = vld [vmem:[#allocation12 + $0x890] sm:$0xff]
    %v3186 = vld [vmem:[#allocation12 + $0x898] sm:$0xff]
    %v3187 = vld [vmem:[#allocation12 + $0x8a0] sm:$0xf]
    %v3188 = vld [vmem:[#allocation12 + $0x8a4] sm:$0xff]
    %v3189 = vld [vmem:[#allocation12 + $0x8ac] sm:$0xff]
    %v3190 = vld [vmem:[#allocation12 + $0x8b4] sm:$0xff]
    %v3191 = vld [vmem:[#allocation12 + $0x8bc] sm:$0xf]
    %v3192 = vld [vmem:[#allocation12 + $0x8c0] sm:$0xff]
    %v3193 = vld [vmem:[#allocation12 + $0x8c8] sm:$0xff]
    %v3194 = vld [vmem:[#allocation12 + $0x8d0] sm:$0xff]
    %v3195 = vld [vmem:[#allocation12 + $0x8d8] sm:$0xf]
    %v3196 = vld [vmem:[#allocation12 + $0x8dc] sm:$0xff]
    %v3197 = vld [vmem:[#allocation12 + $0x8e4] sm:$0xff]
    %v3198 = vld [vmem:[#allocation12 + $0x8ec] sm:$0xff]
    %v3199 = vld [vmem:[#allocation12 + $0x8f4] sm:$0xf]
    %v3200 = vld [vmem:[#allocation12 + $0x8f8] sm:$0xff]
    %v3201 = vld [vmem:[#allocation12 + $0x900] sm:$0xff]
    %v3202 = vld [vmem:[#allocation12 + $0x908] sm:$0xff]
    %v3203 = vld [vmem:[#allocation12 + $0x910] sm:$0xf]
    %v3204 = vld [vmem:[#allocation12 + $0x914] sm:$0xff]
    %v3205 = vld [vmem:[#allocation12 + $0x91c] sm:$0xff]
    %v3206 = vld [vmem:[#allocation12 + $0x924] sm:$0xff]
    %v3207 = vld [vmem:[#allocation12 + $0x92c] sm:$0xf]
    %v3208 = vld [vmem:[#allocation12 + $0x930] sm:$0xff]
    %v3209 = vld [vmem:[#allocation12 + $0x938] sm:$0xff]
    %v3210 = vld [vmem:[#allocation12 + $0x940] sm:$0xff]
    %v3211 = vld [vmem:[#allocation12 + $0x948] sm:$0xf]
    %v3212 = vld [vmem:[#allocation12 + $0x94c] sm:$0xff]
    %v3213 = vld [vmem:[#allocation12 + $0x954] sm:$0xff]
    %v3214 = vld [vmem:[#allocation12 + $0x95c] sm:$0xff]
    %v3215 = vld [vmem:[#allocation12 + $0x964] sm:$0xf]
    %v3216 = vld [vmem:[#allocation12 + $0x968] sm:$0xff]
    %v3217 = vld [vmem:[#allocation12 + $0x970] sm:$0xff]
    %v3218 = vld [vmem:[#allocation12 + $0x978] sm:$0xff]
    %v3219 = vld [vmem:[#allocation12 + $0x980] sm:$0xf]
    %v3220 = vld [vmem:[#allocation12 + $0x984] sm:$0xff]
    %v3221 = vld [vmem:[#allocation12 + $0x98c] sm:$0xff]
    %v3222 = vld [vmem:[#allocation12 + $0x994] sm:$0xff]
    %v3223 = vld [vmem:[#allocation12 + $0x99c] sm:$0xf]
    %v3224 = vld [vmem:[#allocation12 + $0x9a0] sm:$0xff]
    %v3225 = vld [vmem:[#allocation12 + $0x9a8] sm:$0xff]
    %v3226 = vld [vmem:[#allocation12 + $0x9b0] sm:$0xff]
    %v3227 = vld [vmem:[#allocation12 + $0x9b8] sm:$0xf]
    %v3228 = vld [vmem:[#allocation12 + $0x9bc] sm:$0xff]
    %v3229 = vld [vmem:[#allocation12 + $0x9c4] sm:$0xff]
    %v3230 = vld [vmem:[#allocation12 + $0x9cc] sm:$0xff]
    %v3231 = vld [vmem:[#allocation12 + $0x9d4] sm:$0xf]
    %v3232 = vld [vmem:[#allocation12 + $0x9d8] sm:$0xff]
    %v3233 = vld [vmem:[#allocation12 + $0x9e0] sm:$0xff]
    %v3234 = vld [vmem:[#allocation12 + $0x9e8] sm:$0xff]
    %v3235 = vld [vmem:[#allocation12 + $0x9f0] sm:$0xf]
    %v3236 = vld [vmem:[#allocation12 + $0x9f4] sm:$0xff]
    %v3237 = vld [vmem:[#allocation12 + $0x9fc] sm:$0xff]
    %v3238 = vld [vmem:[#allocation12 + $0xa04] sm:$0xff]
    %v3239 = vld [vmem:[#allocation12 + $0xa0c] sm:$0xf]
    %v3240 = vld [vmem:[#allocation12 + $0xa10] sm:$0xff]
    %v3241 = vld [vmem:[#allocation12 + $0xa18] sm:$0xff]
    %v3242 = vld [vmem:[#allocation12 + $0xa20] sm:$0xff]
    %v3243 = vld [vmem:[#allocation12 + $0xa28] sm:$0xf]
    %v3244 = vld [vmem:[#allocation12 + $0xa2c] sm:$0xff]
    %v3245 = vld [vmem:[#allocation12 + $0xa34] sm:$0xff]
    %v3246 = vld [vmem:[#allocation12 + $0xa3c] sm:$0xff]
    %v3247 = vld [vmem:[#allocation12 + $0xa44] sm:$0xf]
    %v3248 = vld [vmem:[#allocation12 + $0xa48] sm:$0xff]
    %v3249 = vld [vmem:[#allocation12 + $0xa50] sm:$0xff]
    %v3250 = vld [vmem:[#allocation12 + $0xa58] sm:$0xff]
    %v3251 = vld [vmem:[#allocation12 + $0xa60] sm:$0xf]
    %v3252 = vld [vmem:[#allocation12 + $0xa64] sm:$0xff]
    %v3253 = vld [vmem:[#allocation12 + $0xa6c] sm:$0xff]
    %v3254 = vld [vmem:[#allocation12 + $0xa74] sm:$0xff]
    %v3255 = vld [vmem:[#allocation12 + $0xa7c] sm:$0xf]
    %v3256 = vld [vmem:[#allocation12 + $0xa80] sm:$0xff]
    %v3257 = vld [vmem:[#allocation12 + $0xa88] sm:$0xff]
    %v3258 = vld [vmem:[#allocation12 + $0xa90] sm:$0xff]
    %v3259 = vld [vmem:[#allocation12 + $0xa98] sm:$0xf]
    %v3260 = vld [vmem:[#allocation12 + $0xa9c] sm:$0xff]
    %v3261 = vld [vmem:[#allocation12 + $0xaa4] sm:$0xff]
    %v3262 = vld [vmem:[#allocation12 + $0xaac] sm:$0xff]
    %v3263 = vld [vmem:[#allocation12 + $0xab4] sm:$0xf]
    %v3264 = vld [vmem:[#allocation12 + $0xab8] sm:$0xff]
    %v3265 = vld [vmem:[#allocation12 + $0xac0] sm:$0xff]
    %v3266 = vld [vmem:[#allocation12 + $0xac8] sm:$0xff]
    %v3267 = vld [vmem:[#allocation12 + $0xad0] sm:$0xf]
    %v3268 = vld [vmem:[#allocation12 + $0xad4] sm:$0xff]
    %v3269 = vld [vmem:[#allocation12 + $0xadc] sm:$0xff]
    %v3270 = vld [vmem:[#allocation12 + $0xae4] sm:$0xff]
    %v3271 = vld [vmem:[#allocation12 + $0xaec] sm:$0xf]
    %v3272 = vld [vmem:[#allocation12 + $0xaf0] sm:$0xff]
    %v3273 = vld [vmem:[#allocation12 + $0xaf8] sm:$0xff]
    %v3274 = vld [vmem:[#allocation12 + $0xb00] sm:$0xff]
    %v3275 = vld [vmem:[#allocation12 + $0xb08] sm:$0xf]
    %v3276 = vld [vmem:[#allocation12 + $0xb0c] sm:$0xff]
    %v3277 = vld [vmem:[#allocation12 + $0xb14] sm:$0xff]
    %v3278 = vld [vmem:[#allocation12 + $0xb1c] sm:$0xff]
    %v3279 = vld [vmem:[#allocation12 + $0xb24] sm:$0xf]
    %v3280 = vld [vmem:[#allocation12 + $0xb28] sm:$0xff]
    %v3281 = vld [vmem:[#allocation12 + $0xb30] sm:$0xff]
    %v3282 = vld [vmem:[#allocation12 + $0xb38] sm:$0xff]
    %v3283 = vld [vmem:[#allocation12 + $0xb40] sm:$0xf]
    %v3284 = vld [vmem:[#allocation12 + $0xb44] sm:$0xff]
    %v3285 = vld [vmem:[#allocation12 + $0xb4c] sm:$0xff]
    %v3286 = vld [vmem:[#allocation12 + $0xb54] sm:$0xff]
    %v3287 = vld [vmem:[#allocation12 + $0xb5c] sm:$0xf]
    %v3288 = vld [vmem:[#allocation12 + $0xb60] sm:$0xff]
    %v3289 = vld [vmem:[#allocation12 + $0xb68] sm:$0xff]
    %v3290 = vld [vmem:[#allocation12 + $0xb70] sm:$0xff]
    %v3291 = vld [vmem:[#allocation12 + $0xb78] sm:$0xf]
    %v3292 = vld [vmem:[#allocation12 + $0xb7c] sm:$0xff]
    %v3293 = vld [vmem:[#allocation12 + $0xb84] sm:$0xff]
    %v3294 = vld [vmem:[#allocation12 + $0xb8c] sm:$0xff]
    %v3295 = vld [vmem:[#allocation12 + $0xb94] sm:$0xf]
    %v3296 = vld [vmem:[#allocation12 + $0xb98] sm:$0xff]
    %v3297 = vld [vmem:[#allocation12 + $0xba0] sm:$0xff]
    %v3298 = vld [vmem:[#allocation12 + $0xba8] sm:$0xff]
    %v3299 = vld [vmem:[#allocation12 + $0xbb0] sm:$0xf]
    %v3300 = vld [vmem:[#allocation12 + $0xbb4] sm:$0xff]
    %v3301 = vld [vmem:[#allocation12 + $0xbbc] sm:$0xff]
    %v3302 = vld [vmem:[#allocation12 + $0xbc4] sm:$0xff]
    %v3303 = vld [vmem:[#allocation12 + $0xbcc] sm:$0xf]
    %v3304 = vld [vmem:[#allocation12 + $0xbd0] sm:$0xff]
    %v3305 = vld [vmem:[#allocation12 + $0xbd8] sm:$0xff]
    %v3306 = vld [vmem:[#allocation12 + $0xbe0] sm:$0xff]
    %v3307 = vld [vmem:[#allocation12 + $0xbe8] sm:$0xf]
    %v3308 = vld [vmem:[#allocation12 + $0xbec] sm:$0xff]
    %v3309 = vld [vmem:[#allocation12 + $0xbf4] sm:$0xff]
    %v3310 = vld [vmem:[#allocation12 + $0xbfc] sm:$0xff]
    %v3311 = vld [vmem:[#allocation12 + $0xc04] sm:$0xf]
    %v3312 = vld [vmem:[#allocation12 + $0xc08] sm:$0xff]
    %v3313 = vld [vmem:[#allocation12 + $0xc10] sm:$0xff]
    %v3314 = vld [vmem:[#allocation12 + $0xc18] sm:$0xff]
    %v3315 = vld [vmem:[#allocation12 + $0xc20] sm:$0xf]
    %v3316 = vld [vmem:[#allocation12 + $0xc24] sm:$0xff]
    %v3317 = vld [vmem:[#allocation12 + $0xc2c] sm:$0xff]
    %v3318 = vld [vmem:[#allocation12 + $0xc34] sm:$0xff]
    %v3319 = vld [vmem:[#allocation12 + $0xc3c] sm:$0xf]
    %v3320 = vld [vmem:[#allocation12 + $0xc40] sm:$0xff]
    %v3321 = vld [vmem:[#allocation12 + $0xc48] sm:$0xff]
    %v3322 = vld [vmem:[#allocation12 + $0xc50] sm:$0xff]
    %v3323 = vld [vmem:[#allocation12 + $0xc58] sm:$0xf]
    %v3324 = vld [vmem:[#allocation12 + $0xc5c] sm:$0xff]
    %v3325 = vld [vmem:[#allocation12 + $0xc64] sm:$0xff]
    %v3326 = vld [vmem:[#allocation12 + $0xc6c] sm:$0xff]
    %v3327 = vld [vmem:[#allocation12 + $0xc74] sm:$0xf]
    %v3328 = vld [vmem:[#allocation12 + $0xc78] sm:$0xff]
    %v3329 = vld [vmem:[#allocation12 + $0xc80] sm:$0xff]
    %v3330 = vld [vmem:[#allocation12 + $0xc88] sm:$0xff]
    %v3331 = vld [vmem:[#allocation12 + $0xc90] sm:$0xf]
    %v3332 = vld [vmem:[#allocation12 + $0xc94] sm:$0xff]
    %v3333 = vld [vmem:[#allocation12 + $0xc9c] sm:$0xff]
    %v3334 = vld [vmem:[#allocation12 + $0xca4] sm:$0xff]
    %v3335 = vld [vmem:[#allocation12 + $0xcac] sm:$0xf]
    %v3336 = vld [vmem:[#allocation12 + $0xcb0] sm:$0xff]
    %v3337 = vld [vmem:[#allocation12 + $0xcb8] sm:$0xff]
    %v3338 = vld [vmem:[#allocation12 + $0xcc0] sm:$0xff]
    %v3339 = vld [vmem:[#allocation12 + $0xcc8] sm:$0xf]
    %v3340 = vld [vmem:[#allocation12 + $0xccc] sm:$0xff]
    %v3341 = vld [vmem:[#allocation12 + $0xcd4] sm:$0xff]
    %v3342 = vld [vmem:[#allocation12 + $0xcdc] sm:$0xff]
    %v3343 = vld [vmem:[#allocation12 + $0xce4] sm:$0xf]
    %v3344 = vld [vmem:[#allocation12 + $0xce8] sm:$0xff]
    %v3345 = vld [vmem:[#allocation12 + $0xcf0] sm:$0xff]
    %v3346 = vld [vmem:[#allocation12 + $0xcf8] sm:$0xff]
    %v3347 = vld [vmem:[#allocation12 + $0xd00] sm:$0xf]
    %v3348 = vld [vmem:[#allocation12 + $0xd04] sm:$0xff]
    %v3349 = vld [vmem:[#allocation12 + $0xd0c] sm:$0xff]
    %v3350 = vld [vmem:[#allocation12 + $0xd14] sm:$0xff]
    %v3351 = vld [vmem:[#allocation12 + $0xd1c] sm:$0xf]
    %v3352 = vld [vmem:[#allocation12 + $0xd20] sm:$0xff]
    %v3353 = vld [vmem:[#allocation12 + $0xd28] sm:$0xff]
    %v3354 = vld [vmem:[#allocation12 + $0xd30] sm:$0xff]
    %v3355 = vld [vmem:[#allocation12 + $0xd38] sm:$0xf]
    %v3356 = vld [vmem:[#allocation12 + $0xd3c] sm:$0xff]
    %v3357 = vld [vmem:[#allocation12 + $0xd44] sm:$0xff]
    %v3358 = vld [vmem:[#allocation12 + $0xd4c] sm:$0xff]
    %v3359 = vld [vmem:[#allocation12 + $0xd54] sm:$0xf]
    %v3360 = vld [vmem:[#allocation12 + $0xd58] sm:$0xff]
    %v3361 = vld [vmem:[#allocation12 + $0xd60] sm:$0xff]
    %v3362 = vld [vmem:[#allocation12 + $0xd68] sm:$0xff]
    %v3363 = vld [vmem:[#allocation12 + $0xd70] sm:$0xf]
    %v3364 = vld [vmem:[#allocation12 + $0xd74] sm:$0xff]
    %v3365 = vld [vmem:[#allocation12 + $0xd7c] sm:$0xff]
    %v3366 = vld [vmem:[#allocation12 + $0xd84] sm:$0xff]
    %v3367 = vld [vmem:[#allocation12 + $0xd8c] sm:$0xf]
    %v3368 = vld [vmem:[#allocation12 + $0xd90] sm:$0xff]
    %v3369 = vld [vmem:[#allocation12 + $0xd98] sm:$0xff]
    %v3370 = vld [vmem:[#allocation12 + $0xda0] sm:$0xff]
    %v3371 = vld [vmem:[#allocation12 + $0xda8] sm:$0xf]
    %v3372 = vld [vmem:[#allocation12 + $0xdac] sm:$0xff]
    %v3373 = vld [vmem:[#allocation12 + $0xdb4] sm:$0xff]
    %v3374 = vld [vmem:[#allocation12 + $0xdbc] sm:$0xff]
    %v3375 = vld [vmem:[#allocation12 + $0xdc4] sm:$0xf]
    %v3376 = vld [vmem:[#allocation12 + $0xdc8] sm:$0xff]
    %v3377 = vld [vmem:[#allocation12 + $0xdd0] sm:$0xff]
    %v3378 = vld [vmem:[#allocation12 + $0xdd8] sm:$0xff]
    %v3379 = vld [vmem:[#allocation12 + $0xde0] sm:$0xf]
    %v3380 = vld [vmem:[#allocation12 + $0xde4] sm:$0xff]
    %v3381 = vld [vmem:[#allocation12 + $0xdec] sm:$0xff]
    %v3382 = vld [vmem:[#allocation12 + $0xdf4] sm:$0xff]
    %v3383 = vld [vmem:[#allocation12 + $0xdfc] sm:$0xf]
    %v3384 = vld [vmem:[#allocation13] sm:$0xff]
    %v3386 = vlaneseq
    %v3387 = vshrl.u32 %v3386, 7
    %v3388 = vsub.s32 0, %v3387
    %v3389 = vrot.slane %v3384, %v3388
    %v3390 = vlaneseq
    %v3391 = vshrl.u32 %v3390, 7
    %v3392 = vsub.s32 1, %v3391
    %v3393 = vrot.slane %v3384, %v3392
    %v3394 = vlaneseq
    %v3395 = vshrl.u32 %v3394, 7
    %v3396 = vsub.s32 2, %v3395
    %v3397 = vrot.slane %v3384, %v3396
    %v3398 = vlaneseq
    %v3399 = vshrl.u32 %v3398, 7
    %v3400 = vsub.s32 3, %v3399
    %v3401 = vrot.slane %v3384, %v3400
    %v3402 = vlaneseq
    %v3403 = vshrl.u32 %v3402, 7
    %v3404 = vsub.s32 4, %v3403
    %v3405 = vrot.slane %v3384, %v3404
    %v3406 = vlaneseq
    %v3407 = vshrl.u32 %v3406, 7
    %v3408 = vsub.s32 5, %v3407
    %v3409 = vrot.slane %v3384, %v3408
    %v3410 = vlaneseq
    %v3411 = vshrl.u32 %v3410, 7
    %v3412 = vsub.s32 6, %v3411
    %v3413 = vrot.slane %v3384, %v3412
    %v3933 = vunpack.c.l.b16 %v2872
    %v3934 = vunpack.c.h.b16 %v2872
    %v3935 = vunpack.c.l.b16 %v2873
    %v3936 = vunpack.c.h.b16 %v2873
    %v3937 = vunpack.c.l.b16 %v2874
    %v3938 = vunpack.c.h.b16 %v2874
    %v3939 = vunpack.c.l.b16 %v2875
    %v3940 = vunpack.c.l.b16 %v2876
    %v3941 = vunpack.c.h.b16 %v2876
    %v3942 = vunpack.c.l.b16 %v2877
    %v3943 = vunpack.c.h.b16 %v2877
    %v3944 = vunpack.c.l.b16 %v2878
    %v3945 = vunpack.c.h.b16 %v2878
    %v3946 = vunpack.c.l.b16 %v2879
    %v3947 = vunpack.c.l.b16 %v2880
    %v3948 = vunpack.c.h.b16 %v2880
    %v3949 = vunpack.c.l.b16 %v2881
    %v3950 = vunpack.c.h.b16 %v2881
    %v3951 = vunpack.c.l.b16 %v2882
    %v3952 = vunpack.c.h.b16 %v2882
    %v3953 = vunpack.c.l.b16 %v2883
    %v3954 = vunpack.c.l.b16 %v2884
    %v3955 = vunpack.c.h.b16 %v2884
    %v3956 = vunpack.c.l.b16 %v2885
    %v3957 = vunpack.c.h.b16 %v2885
    %v3958 = vunpack.c.l.b16 %v2886
    %v3959 = vunpack.c.h.b16 %v2886
    %v3960 = vunpack.c.l.b16 %v2887
    %v3961 = vunpack.c.l.b16 %v2888
    %v3962 = vunpack.c.h.b16 %v2888
    %v3963 = vunpack.c.l.b16 %v2889
    %v3964 = vunpack.c.h.b16 %v2889
    %v3965 = vunpack.c.l.b16 %v2890
    %v3966 = vunpack.c.h.b16 %v2890
    %v3967 = vunpack.c.l.b16 %v2891
    %v3968 = vunpack.c.l.b16 %v2892
    %v3969 = vunpack.c.h.b16 %v2892
    %v3970 = vunpack.c.l.b16 %v2893
    %v3971 = vunpack.c.h.b16 %v2893
    %v3972 = vunpack.c.l.b16 %v2894
    %v3973 = vunpack.c.h.b16 %v2894
    %v3974 = vunpack.c.l.b16 %v2895
    %v3975 = vunpack.c.l.b16 %v2896
    %v3976 = vunpack.c.h.b16 %v2896
    %v3977 = vunpack.c.l.b16 %v2897
    %v3978 = vunpack.c.h.b16 %v2897
    %v3979 = vunpack.c.l.b16 %v2898
    %v3980 = vunpack.c.h.b16 %v2898
    %v3981 = vunpack.c.l.b16 %v2899
    %v3982 = vunpack.c.l.b16 %v2900
    %v3983 = vunpack.c.h.b16 %v2900
    %v3984 = vunpack.c.l.b16 %v2901
    %v3985 = vunpack.c.h.b16 %v2901
    %v3986 = vunpack.c.l.b16 %v2902
    %v3987 = vunpack.c.h.b16 %v2902
    %v3988 = vunpack.c.l.b16 %v2903
    %v3989 = vunpack.c.l.b16 %v2904
    %v3990 = vunpack.c.h.b16 %v2904
    %v3991 = vunpack.c.l.b16 %v2905
    %v3992 = vunpack.c.h.b16 %v2905
    %v3993 = vunpack.c.l.b16 %v2906
    %v3994 = vunpack.c.h.b16 %v2906
    %v3995 = vunpack.c.l.b16 %v2907
    %v3996 = vunpack.c.l.b16 %v2908
    %v3997 = vunpack.c.h.b16 %v2908
    %v3998 = vunpack.c.l.b16 %v2909
    %v3999 = vunpack.c.h.b16 %v2909
    %v4000 = vunpack.c.l.b16 %v2910
    %v4001 = vunpack.c.h.b16 %v2910
    %v4002 = vunpack.c.l.b16 %v2911
    %v4003 = vunpack.c.l.b16 %v2912
    %v4004 = vunpack.c.h.b16 %v2912
    %v4005 = vunpack.c.l.b16 %v2913
    %v4006 = vunpack.c.h.b16 %v2913
    %v4007 = vunpack.c.l.b16 %v2914
    %v4008 = vunpack.c.h.b16 %v2914
    %v4009 = vunpack.c.l.b16 %v2915
    %v4010 = vunpack.c.l.b16 %v2916
    %v4011 = vunpack.c.h.b16 %v2916
    %v4012 = vunpack.c.l.b16 %v2917
    %v4013 = vunpack.c.h.b16 %v2917
    %v4014 = vunpack.c.l.b16 %v2918
    %v4015 = vunpack.c.h.b16 %v2918
    %v4016 = vunpack.c.l.b16 %v2919
    %v4017 = vunpack.c.l.b16 %v2920
    %v4018 = vunpack.c.h.b16 %v2920
    %v4019 = vunpack.c.l.b16 %v2921
    %v4020 = vunpack.c.h.b16 %v2921
    %v4021 = vunpack.c.l.b16 %v2922
    %v4022 = vunpack.c.h.b16 %v2922
    %v4023 = vunpack.c.l.b16 %v2923
    %v4024 = vunpack.c.l.b16 %v2924
    %v4025 = vunpack.c.h.b16 %v2924
    %v4026 = vunpack.c.l.b16 %v2925
    %v4027 = vunpack.c.h.b16 %v2925
    %v4028 = vunpack.c.l.b16 %v2926
    %v4029 = vunpack.c.h.b16 %v2926
    %v4030 = vunpack.c.l.b16 %v2927
    %v4031 = vunpack.c.l.b16 %v2928
    %v4032 = vunpack.c.h.b16 %v2928
    %v4033 = vunpack.c.l.b16 %v2929
    %v4034 = vunpack.c.h.b16 %v2929
    %v4035 = vunpack.c.l.b16 %v2930
    %v4036 = vunpack.c.h.b16 %v2930
    %v4037 = vunpack.c.l.b16 %v2931
    %v4038 = vunpack.c.l.b16 %v2932
    %v4039 = vunpack.c.h.b16 %v2932
    %v4040 = vunpack.c.l.b16 %v2933
    %v4041 = vunpack.c.h.b16 %v2933
    %v4042 = vunpack.c.l.b16 %v2934
    %v4043 = vunpack.c.h.b16 %v2934
    %v4044 = vunpack.c.l.b16 %v2935
    %v4045 = vunpack.c.l.b16 %v2936
    %v4046 = vunpack.c.h.b16 %v2936
    %v4047 = vunpack.c.l.b16 %v2937
    %v4048 = vunpack.c.h.b16 %v2937
    %v4049 = vunpack.c.l.b16 %v2938
    %v4050 = vunpack.c.h.b16 %v2938
    %v4051 = vunpack.c.l.b16 %v2939
    %v4052 = vunpack.c.l.b16 %v2940
    %v4053 = vunpack.c.h.b16 %v2940
    %v4054 = vunpack.c.l.b16 %v2941
    %v4055 = vunpack.c.h.b16 %v2941
    %v4056 = vunpack.c.l.b16 %v2942
    %v4057 = vunpack.c.h.b16 %v2942
    %v4058 = vunpack.c.l.b16 %v2943
    %v4059 = vunpack.c.l.b16 %v2944
    %v4060 = vunpack.c.h.b16 %v2944
    %v4061 = vunpack.c.l.b16 %v2945
    %v4062 = vunpack.c.h.b16 %v2945
    %v4063 = vunpack.c.l.b16 %v2946
    %v4064 = vunpack.c.h.b16 %v2946
    %v4065 = vunpack.c.l.b16 %v2947
    %v4066 = vunpack.c.l.b16 %v2948
    %v4067 = vunpack.c.h.b16 %v2948
    %v4068 = vunpack.c.l.b16 %v2949
    %v4069 = vunpack.c.h.b16 %v2949
    %v4070 = vunpack.c.l.b16 %v2950
    %v4071 = vunpack.c.h.b16 %v2950
    %v4072 = vunpack.c.l.b16 %v2951
    %v4073 = vunpack.c.l.b16 %v2952
    %v4074 = vunpack.c.h.b16 %v2952
    %v4075 = vunpack.c.l.b16 %v2953
    %v4076 = vunpack.c.h.b16 %v2953
    %v4077 = vunpack.c.l.b16 %v2954
    %v4078 = vunpack.c.h.b16 %v2954
    %v4079 = vunpack.c.l.b16 %v2955
    %v4080 = vunpack.c.l.b16 %v2956
    %v4081 = vunpack.c.h.b16 %v2956
    %v4082 = vunpack.c.l.b16 %v2957
    %v4083 = vunpack.c.h.b16 %v2957
    %v4084 = vunpack.c.l.b16 %v2958
    %v4085 = vunpack.c.h.b16 %v2958
    %v4086 = vunpack.c.l.b16 %v2959
    %v4087 = vunpack.c.l.b16 %v2960
    %v4088 = vunpack.c.h.b16 %v2960
    %v4089 = vunpack.c.l.b16 %v2961
    %v4090 = vunpack.c.h.b16 %v2961
    %v4091 = vunpack.c.l.b16 %v2962
    %v4092 = vunpack.c.h.b16 %v2962
    %v4093 = vunpack.c.l.b16 %v2963
    %v4094 = vunpack.c.l.b16 %v2964
    %v4095 = vunpack.c.h.b16 %v2964
    %v4096 = vunpack.c.l.b16 %v2965
    %v4097 = vunpack.c.h.b16 %v2965
    %v4098 = vunpack.c.l.b16 %v2966
    %v4099 = vunpack.c.h.b16 %v2966
    %v4100 = vunpack.c.l.b16 %v2967
    %v4101 = vunpack.c.l.b16 %v2968
    %v4102 = vunpack.c.h.b16 %v2968
    %v4103 = vunpack.c.l.b16 %v2969
    %v4104 = vunpack.c.h.b16 %v2969
    %v4105 = vunpack.c.l.b16 %v2970
    %v4106 = vunpack.c.h.b16 %v2970
    %v4107 = vunpack.c.l.b16 %v2971
    %v4108 = vunpack.c.l.b16 %v2972
    %v4109 = vunpack.c.h.b16 %v2972
    %v4110 = vunpack.c.l.b16 %v2973
    %v4111 = vunpack.c.h.b16 %v2973
    %v4112 = vunpack.c.l.b16 %v2974
    %v4113 = vunpack.c.h.b16 %v2974
    %v4114 = vunpack.c.l.b16 %v2975
    %v4115 = vunpack.c.l.b16 %v2976
    %v4116 = vunpack.c.h.b16 %v2976
    %v4117 = vunpack.c.l.b16 %v2977
    %v4118 = vunpack.c.h.b16 %v2977
    %v4119 = vunpack.c.l.b16 %v2978
    %v4120 = vunpack.c.h.b16 %v2978
    %v4121 = vunpack.c.l.b16 %v2979
    %v4122 = vunpack.c.l.b16 %v2980
    %v4123 = vunpack.c.h.b16 %v2980
    %v4124 = vunpack.c.l.b16 %v2981
    %v4125 = vunpack.c.h.b16 %v2981
    %v4126 = vunpack.c.l.b16 %v2982
    %v4127 = vunpack.c.h.b16 %v2982
    %v4128 = vunpack.c.l.b16 %v2983
    %v4129 = vunpack.c.l.b16 %v2984
    %v4130 = vunpack.c.h.b16 %v2984
    %v4131 = vunpack.c.l.b16 %v2985
    %v4132 = vunpack.c.h.b16 %v2985
    %v4133 = vunpack.c.l.b16 %v2986
    %v4134 = vunpack.c.h.b16 %v2986
    %v4135 = vunpack.c.l.b16 %v2987
    %v4136 = vunpack.c.l.b16 %v2988
    %v4137 = vunpack.c.h.b16 %v2988
    %v4138 = vunpack.c.l.b16 %v2989
    %v4139 = vunpack.c.h.b16 %v2989
    %v4140 = vunpack.c.l.b16 %v2990
    %v4141 = vunpack.c.h.b16 %v2990
    %v4142 = vunpack.c.l.b16 %v2991
    %v4143 = vunpack.c.l.b16 %v2992
    %v4144 = vunpack.c.h.b16 %v2992
    %v4145 = vunpack.c.l.b16 %v2993
    %v4146 = vunpack.c.h.b16 %v2993
    %v4147 = vunpack.c.l.b16 %v2994
    %v4148 = vunpack.c.h.b16 %v2994
    %v4149 = vunpack.c.l.b16 %v2995
    %v4150 = vunpack.c.l.b16 %v2996
    %v4151 = vunpack.c.h.b16 %v2996
    %v4152 = vunpack.c.l.b16 %v2997
    %v4153 = vunpack.c.h.b16 %v2997
    %v4154 = vunpack.c.l.b16 %v2998
    %v4155 = vunpack.c.h.b16 %v2998
    %v4156 = vunpack.c.l.b16 %v2999
    %v4157 = vunpack.c.l.b16 %v3000
    %v4158 = vunpack.c.h.b16 %v3000
    %v4159 = vunpack.c.l.b16 %v3001
    %v4160 = vunpack.c.h.b16 %v3001
    %v4161 = vunpack.c.l.b16 %v3002
    %v4162 = vunpack.c.h.b16 %v3002
    %v4163 = vunpack.c.l.b16 %v3003
    %v4164 = vunpack.c.l.b16 %v3004
    %v4165 = vunpack.c.h.b16 %v3004
    %v4166 = vunpack.c.l.b16 %v3005
    %v4167 = vunpack.c.h.b16 %v3005
    %v4168 = vunpack.c.l.b16 %v3006
    %v4169 = vunpack.c.h.b16 %v3006
    %v4170 = vunpack.c.l.b16 %v3007
    %v4171 = vunpack.c.l.b16 %v3008
    %v4172 = vunpack.c.h.b16 %v3008
    %v4173 = vunpack.c.l.b16 %v3009
    %v4174 = vunpack.c.h.b16 %v3009
    %v4175 = vunpack.c.l.b16 %v3010
    %v4176 = vunpack.c.h.b16 %v3010
    %v4177 = vunpack.c.l.b16 %v3011
    %v4178 = vunpack.c.l.b16 %v3012
    %v4179 = vunpack.c.h.b16 %v3012
    %v4180 = vunpack.c.l.b16 %v3013
    %v4181 = vunpack.c.h.b16 %v3013
    %v4182 = vunpack.c.l.b16 %v3014
    %v4183 = vunpack.c.h.b16 %v3014
    %v4184 = vunpack.c.l.b16 %v3015
    %v4185 = vunpack.c.l.b16 %v3016
    %v4186 = vunpack.c.h.b16 %v3016
    %v4187 = vunpack.c.l.b16 %v3017
    %v4188 = vunpack.c.h.b16 %v3017
    %v4189 = vunpack.c.l.b16 %v3018
    %v4190 = vunpack.c.h.b16 %v3018
    %v4191 = vunpack.c.l.b16 %v3019
    %v4192 = vunpack.c.l.b16 %v3020
    %v4193 = vunpack.c.h.b16 %v3020
    %v4194 = vunpack.c.l.b16 %v3021
    %v4195 = vunpack.c.h.b16 %v3021
    %v4196 = vunpack.c.l.b16 %v3022
    %v4197 = vunpack.c.h.b16 %v3022
    %v4198 = vunpack.c.l.b16 %v3023
    %v4199 = vunpack.c.l.b16 %v3024
    %v4200 = vunpack.c.h.b16 %v3024
    %v4201 = vunpack.c.l.b16 %v3025
    %v4202 = vunpack.c.h.b16 %v3025
    %v4203 = vunpack.c.l.b16 %v3026
    %v4204 = vunpack.c.h.b16 %v3026
    %v4205 = vunpack.c.l.b16 %v3027
    %v4206 = vunpack.c.l.b16 %v3028
    %v4207 = vunpack.c.h.b16 %v3028
    %v4208 = vunpack.c.l.b16 %v3029
    %v4209 = vunpack.c.h.b16 %v3029
    %v4210 = vunpack.c.l.b16 %v3030
    %v4211 = vunpack.c.h.b16 %v3030
    %v4212 = vunpack.c.l.b16 %v3031
    %v4213 = vunpack.c.l.b16 %v3032
    %v4214 = vunpack.c.h.b16 %v3032
    %v4215 = vunpack.c.l.b16 %v3033
    %v4216 = vunpack.c.h.b16 %v3033
    %v4217 = vunpack.c.l.b16 %v3034
    %v4218 = vunpack.c.h.b16 %v3034
    %v4219 = vunpack.c.l.b16 %v3035
    %v4220 = vunpack.c.l.b16 %v3036
    %v4221 = vunpack.c.h.b16 %v3036
    %v4222 = vunpack.c.l.b16 %v3037
    %v4223 = vunpack.c.h.b16 %v3037
    %v4224 = vunpack.c.l.b16 %v3038
    %v4225 = vunpack.c.h.b16 %v3038
    %v4226 = vunpack.c.l.b16 %v3039
    %v4227 = vunpack.c.l.b16 %v3040
    %v4228 = vunpack.c.h.b16 %v3040
    %v4229 = vunpack.c.l.b16 %v3041
    %v4230 = vunpack.c.h.b16 %v3041
    %v4231 = vunpack.c.l.b16 %v3042
    %v4232 = vunpack.c.h.b16 %v3042
    %v4233 = vunpack.c.l.b16 %v3043
    %v4234 = vunpack.c.l.b16 %v3044
    %v4235 = vunpack.c.h.b16 %v3044
    %v4236 = vunpack.c.l.b16 %v3045
    %v4237 = vunpack.c.h.b16 %v3045
    %v4238 = vunpack.c.l.b16 %v3046
    %v4239 = vunpack.c.h.b16 %v3046
    %v4240 = vunpack.c.l.b16 %v3047
    %v4241 = vunpack.c.l.b16 %v3048
    %v4242 = vunpack.c.h.b16 %v3048
    %v4243 = vunpack.c.l.b16 %v3049
    %v4244 = vunpack.c.h.b16 %v3049
    %v4245 = vunpack.c.l.b16 %v3050
    %v4246 = vunpack.c.h.b16 %v3050
    %v4247 = vunpack.c.l.b16 %v3051
    %v4248 = vunpack.c.l.b16 %v3052
    %v4249 = vunpack.c.h.b16 %v3052
    %v4250 = vunpack.c.l.b16 %v3053
    %v4251 = vunpack.c.h.b16 %v3053
    %v4252 = vunpack.c.l.b16 %v3054
    %v4253 = vunpack.c.h.b16 %v3054
    %v4254 = vunpack.c.l.b16 %v3055
    %v4255 = vunpack.c.l.b16 %v3056
    %v4256 = vunpack.c.h.b16 %v3056
    %v4257 = vunpack.c.l.b16 %v3057
    %v4258 = vunpack.c.h.b16 %v3057
    %v4259 = vunpack.c.l.b16 %v3058
    %v4260 = vunpack.c.h.b16 %v3058
    %v4261 = vunpack.c.l.b16 %v3059
    %v4262 = vunpack.c.l.b16 %v3060
    %v4263 = vunpack.c.h.b16 %v3060
    %v4264 = vunpack.c.l.b16 %v3061
    %v4265 = vunpack.c.h.b16 %v3061
    %v4266 = vunpack.c.l.b16 %v3062
    %v4267 = vunpack.c.h.b16 %v3062
    %v4268 = vunpack.c.l.b16 %v3063
    %v4269 = vunpack.c.l.b16 %v3064
    %v4270 = vunpack.c.h.b16 %v3064
    %v4271 = vunpack.c.l.b16 %v3065
    %v4272 = vunpack.c.h.b16 %v3065
    %v4273 = vunpack.c.l.b16 %v3066
    %v4274 = vunpack.c.h.b16 %v3066
    %v4275 = vunpack.c.l.b16 %v3067
    %v4276 = vunpack.c.l.b16 %v3068
    %v4277 = vunpack.c.h.b16 %v3068
    %v4278 = vunpack.c.l.b16 %v3069
    %v4279 = vunpack.c.h.b16 %v3069
    %v4280 = vunpack.c.l.b16 %v3070
    %v4281 = vunpack.c.h.b16 %v3070
    %v4282 = vunpack.c.l.b16 %v3071
    %v4283 = vunpack.c.l.b16 %v3072
    %v4284 = vunpack.c.h.b16 %v3072
    %v4285 = vunpack.c.l.b16 %v3073
    %v4286 = vunpack.c.h.b16 %v3073
    %v4287 = vunpack.c.l.b16 %v3074
    %v4288 = vunpack.c.h.b16 %v3074
    %v4289 = vunpack.c.l.b16 %v3075
    %v4290 = vunpack.c.l.b16 %v3076
    %v4291 = vunpack.c.h.b16 %v3076
    %v4292 = vunpack.c.l.b16 %v3077
    %v4293 = vunpack.c.h.b16 %v3077
    %v4294 = vunpack.c.l.b16 %v3078
    %v4295 = vunpack.c.h.b16 %v3078
    %v4296 = vunpack.c.l.b16 %v3079
    %v4297 = vunpack.c.l.b16 %v3080
    %v4298 = vunpack.c.h.b16 %v3080
    %v4299 = vunpack.c.l.b16 %v3081
    %v4300 = vunpack.c.h.b16 %v3081
    %v4301 = vunpack.c.l.b16 %v3082
    %v4302 = vunpack.c.h.b16 %v3082
    %v4303 = vunpack.c.l.b16 %v3083
    %v4304 = vunpack.c.l.b16 %v3084
    %v4305 = vunpack.c.h.b16 %v3084
    %v4306 = vunpack.c.l.b16 %v3085
    %v4307 = vunpack.c.h.b16 %v3085
    %v4308 = vunpack.c.l.b16 %v3086
    %v4309 = vunpack.c.h.b16 %v3086
    %v4310 = vunpack.c.l.b16 %v3087
    %v4311 = vunpack.c.l.b16 %v3088
    %v4312 = vunpack.c.h.b16 %v3088
    %v4313 = vunpack.c.l.b16 %v3089
    %v4314 = vunpack.c.h.b16 %v3089
    %v4315 = vunpack.c.l.b16 %v3090
    %v4316 = vunpack.c.h.b16 %v3090
    %v4317 = vunpack.c.l.b16 %v3091
    %v4318 = vunpack.c.l.b16 %v3092
    %v4319 = vunpack.c.h.b16 %v3092
    %v4320 = vunpack.c.l.b16 %v3093
    %v4321 = vunpack.c.h.b16 %v3093
    %v4322 = vunpack.c.l.b16 %v3094
    %v4323 = vunpack.c.h.b16 %v3094
    %v4324 = vunpack.c.l.b16 %v3095
    %v4325 = vunpack.c.l.b16 %v3096
    %v4326 = vunpack.c.h.b16 %v3096
    %v4327 = vunpack.c.l.b16 %v3097
    %v4328 = vunpack.c.h.b16 %v3097
    %v4329 = vunpack.c.l.b16 %v3098
    %v4330 = vunpack.c.h.b16 %v3098
    %v4331 = vunpack.c.l.b16 %v3099
    %v4332 = vunpack.c.l.b16 %v3100
    %v4333 = vunpack.c.h.b16 %v3100
    %v4334 = vunpack.c.l.b16 %v3101
    %v4335 = vunpack.c.h.b16 %v3101
    %v4336 = vunpack.c.l.b16 %v3102
    %v4337 = vunpack.c.h.b16 %v3102
    %v4338 = vunpack.c.l.b16 %v3103
    %v4339 = vunpack.c.l.b16 %v3104
    %v4340 = vunpack.c.h.b16 %v3104
    %v4341 = vunpack.c.l.b16 %v3105
    %v4342 = vunpack.c.h.b16 %v3105
    %v4343 = vunpack.c.l.b16 %v3106
    %v4344 = vunpack.c.h.b16 %v3106
    %v4345 = vunpack.c.l.b16 %v3107
    %v4346 = vunpack.c.l.b16 %v3108
    %v4347 = vunpack.c.h.b16 %v3108
    %v4348 = vunpack.c.l.b16 %v3109
    %v4349 = vunpack.c.h.b16 %v3109
    %v4350 = vunpack.c.l.b16 %v3110
    %v4351 = vunpack.c.h.b16 %v3110
    %v4352 = vunpack.c.l.b16 %v3111
    %v4353 = vunpack.c.l.b16 %v3112
    %v4354 = vunpack.c.h.b16 %v3112
    %v4355 = vunpack.c.l.b16 %v3113
    %v4356 = vunpack.c.h.b16 %v3113
    %v4357 = vunpack.c.l.b16 %v3114
    %v4358 = vunpack.c.h.b16 %v3114
    %v4359 = vunpack.c.l.b16 %v3115
    %v4360 = vunpack.c.l.b16 %v3116
    %v4361 = vunpack.c.h.b16 %v3116
    %v4362 = vunpack.c.l.b16 %v3117
    %v4363 = vunpack.c.h.b16 %v3117
    %v4364 = vunpack.c.l.b16 %v3118
    %v4365 = vunpack.c.h.b16 %v3118
    %v4366 = vunpack.c.l.b16 %v3119
    %v4367 = vunpack.c.l.b16 %v3120
    %v4368 = vunpack.c.h.b16 %v3120
    %v4369 = vunpack.c.l.b16 %v3121
    %v4370 = vunpack.c.h.b16 %v3121
    %v4371 = vunpack.c.l.b16 %v3122
    %v4372 = vunpack.c.h.b16 %v3122
    %v4373 = vunpack.c.l.b16 %v3123
    %v4374 = vunpack.c.l.b16 %v3124
    %v4375 = vunpack.c.h.b16 %v3124
    %v4376 = vunpack.c.l.b16 %v3125
    %v4377 = vunpack.c.h.b16 %v3125
    %v4378 = vunpack.c.l.b16 %v3126
    %v4379 = vunpack.c.h.b16 %v3126
    %v4380 = vunpack.c.l.b16 %v3127
    %v4381 = vunpack.c.l.b16 %v3128
    %v4382 = vunpack.c.h.b16 %v3128
    %v4383 = vunpack.c.l.b16 %v3129
    %v4384 = vunpack.c.h.b16 %v3129
    %v4385 = vunpack.c.l.b16 %v3130
    %v4386 = vunpack.c.h.b16 %v3130
    %v4387 = vunpack.c.l.b16 %v3131
    %v4388 = vunpack.c.l.b16 %v3132
    %v4389 = vunpack.c.h.b16 %v3132
    %v4390 = vunpack.c.l.b16 %v3133
    %v4391 = vunpack.c.h.b16 %v3133
    %v4392 = vunpack.c.l.b16 %v3134
    %v4393 = vunpack.c.h.b16 %v3134
    %v4394 = vunpack.c.l.b16 %v3135
    %v4395 = vunpack.c.l.b16 %v3136
    %v4396 = vunpack.c.h.b16 %v3136
    %v4397 = vunpack.c.l.b16 %v3137
    %v4398 = vunpack.c.h.b16 %v3137
    %v4399 = vunpack.c.l.b16 %v3138
    %v4400 = vunpack.c.h.b16 %v3138
    %v4401 = vunpack.c.l.b16 %v3139
    %v4402 = vunpack.c.l.b16 %v3140
    %v4403 = vunpack.c.h.b16 %v3140
    %v4404 = vunpack.c.l.b16 %v3141
    %v4405 = vunpack.c.h.b16 %v3141
    %v4406 = vunpack.c.l.b16 %v3142
    %v4407 = vunpack.c.h.b16 %v3142
    %v4408 = vunpack.c.l.b16 %v3143
    %v4409 = vunpack.c.l.b16 %v3144
    %v4410 = vunpack.c.h.b16 %v3144
    %v4411 = vunpack.c.l.b16 %v3145
    %v4412 = vunpack.c.h.b16 %v3145
    %v4413 = vunpack.c.l.b16 %v3146
    %v4414 = vunpack.c.h.b16 %v3146
    %v4415 = vunpack.c.l.b16 %v3147
    %v4416 = vunpack.c.l.b16 %v3148
    %v4417 = vunpack.c.h.b16 %v3148
    %v4418 = vunpack.c.l.b16 %v3149
    %v4419 = vunpack.c.h.b16 %v3149
    %v4420 = vunpack.c.l.b16 %v3150
    %v4421 = vunpack.c.h.b16 %v3150
    %v4422 = vunpack.c.l.b16 %v3151
    %v4423 = vunpack.c.l.b16 %v3152
    %v4424 = vunpack.c.h.b16 %v3152
    %v4425 = vunpack.c.l.b16 %v3153
    %v4426 = vunpack.c.h.b16 %v3153
    %v4427 = vunpack.c.l.b16 %v3154
    %v4428 = vunpack.c.h.b16 %v3154
    %v4429 = vunpack.c.l.b16 %v3155
    %v4430 = vunpack.c.l.b16 %v3156
    %v4431 = vunpack.c.h.b16 %v3156
    %v4432 = vunpack.c.l.b16 %v3157
    %v4433 = vunpack.c.h.b16 %v3157
    %v4434 = vunpack.c.l.b16 %v3158
    %v4435 = vunpack.c.h.b16 %v3158
    %v4436 = vunpack.c.l.b16 %v3159
    %v4437 = vunpack.c.l.b16 %v3160
    %v4438 = vunpack.c.h.b16 %v3160
    %v4439 = vunpack.c.l.b16 %v3161
    %v4440 = vunpack.c.h.b16 %v3161
    %v4441 = vunpack.c.l.b16 %v3162
    %v4442 = vunpack.c.h.b16 %v3162
    %v4443 = vunpack.c.l.b16 %v3163
    %v4444 = vunpack.c.l.b16 %v3164
    %v4445 = vunpack.c.h.b16 %v3164
    %v4446 = vunpack.c.l.b16 %v3165
    %v4447 = vunpack.c.h.b16 %v3165
    %v4448 = vunpack.c.l.b16 %v3166
    %v4449 = vunpack.c.h.b16 %v3166
    %v4450 = vunpack.c.l.b16 %v3167
    %v4451 = vunpack.c.l.b16 %v3168
    %v4452 = vunpack.c.h.b16 %v3168
    %v4453 = vunpack.c.l.b16 %v3169
    %v4454 = vunpack.c.h.b16 %v3169
    %v4455 = vunpack.c.l.b16 %v3170
    %v4456 = vunpack.c.h.b16 %v3170
    %v4457 = vunpack.c.l.b16 %v3171
    %v4458 = vunpack.c.l.b16 %v3172
    %v4459 = vunpack.c.h.b16 %v3172
    %v4460 = vunpack.c.l.b16 %v3173
    %v4461 = vunpack.c.h.b16 %v3173
    %v4462 = vunpack.c.l.b16 %v3174
    %v4463 = vunpack.c.h.b16 %v3174
    %v4464 = vunpack.c.l.b16 %v3175
    %v4465 = vunpack.c.l.b16 %v3176
    %v4466 = vunpack.c.h.b16 %v3176
    %v4467 = vunpack.c.l.b16 %v3177
    %v4468 = vunpack.c.h.b16 %v3177
    %v4469 = vunpack.c.l.b16 %v3178
    %v4470 = vunpack.c.h.b16 %v3178
    %v4471 = vunpack.c.l.b16 %v3179
    %v4472 = vunpack.c.l.b16 %v3180
    %v4473 = vunpack.c.h.b16 %v3180
    %v4474 = vunpack.c.l.b16 %v3181
    %v4475 = vunpack.c.h.b16 %v3181
    %v4476 = vunpack.c.l.b16 %v3182
    %v4477 = vunpack.c.h.b16 %v3182
    %v4478 = vunpack.c.l.b16 %v3183
    %v4479 = vunpack.c.l.b16 %v3184
    %v4480 = vunpack.c.h.b16 %v3184
    %v4481 = vunpack.c.l.b16 %v3185
    %v4482 = vunpack.c.h.b16 %v3185
    %v4483 = vunpack.c.l.b16 %v3186
    %v4484 = vunpack.c.h.b16 %v3186
    %v4485 = vunpack.c.l.b16 %v3187
    %v4486 = vunpack.c.l.b16 %v3188
    %v4487 = vunpack.c.h.b16 %v3188
    %v4488 = vunpack.c.l.b16 %v3189
    %v4489 = vunpack.c.h.b16 %v3189
    %v4490 = vunpack.c.l.b16 %v3190
    %v4491 = vunpack.c.h.b16 %v3190
    %v4492 = vunpack.c.l.b16 %v3191
    %v4493 = vunpack.c.l.b16 %v3192
    %v4494 = vunpack.c.h.b16 %v3192
    %v4495 = vunpack.c.l.b16 %v3193
    %v4496 = vunpack.c.h.b16 %v3193
    %v4497 = vunpack.c.l.b16 %v3194
    %v4498 = vunpack.c.h.b16 %v3194
    %v4499 = vunpack.c.l.b16 %v3195
    %v4500 = vunpack.c.l.b16 %v3196
    %v4501 = vunpack.c.h.b16 %v3196
    %v4502 = vunpack.c.l.b16 %v3197
    %v4503 = vunpack.c.h.b16 %v3197
    %v4504 = vunpack.c.l.b16 %v3198
    %v4505 = vunpack.c.h.b16 %v3198
    %v4506 = vunpack.c.l.b16 %v3199
    %v4507 = vunpack.c.l.b16 %v3200
    %v4508 = vunpack.c.h.b16 %v3200
    %v4509 = vunpack.c.l.b16 %v3201
    %v4510 = vunpack.c.h.b16 %v3201
    %v4511 = vunpack.c.l.b16 %v3202
    %v4512 = vunpack.c.h.b16 %v3202
    %v4513 = vunpack.c.l.b16 %v3203
    %v4514 = vunpack.c.l.b16 %v3204
    %v4515 = vunpack.c.h.b16 %v3204
    %v4516 = vunpack.c.l.b16 %v3205
    %v4517 = vunpack.c.h.b16 %v3205
    %v4518 = vunpack.c.l.b16 %v3206
    %v4519 = vunpack.c.h.b16 %v3206
    %v4520 = vunpack.c.l.b16 %v3207
    %v4521 = vunpack.c.l.b16 %v3208
    %v4522 = vunpack.c.h.b16 %v3208
    %v4523 = vunpack.c.l.b16 %v3209
    %v4524 = vunpack.c.h.b16 %v3209
    %v4525 = vunpack.c.l.b16 %v3210
    %v4526 = vunpack.c.h.b16 %v3210
    %v4527 = vunpack.c.l.b16 %v3211
    %v4528 = vunpack.c.l.b16 %v3212
    %v4529 = vunpack.c.h.b16 %v3212
    %v4530 = vunpack.c.l.b16 %v3213
    %v4531 = vunpack.c.h.b16 %v3213
    %v4532 = vunpack.c.l.b16 %v3214
    %v4533 = vunpack.c.h.b16 %v3214
    %v4534 = vunpack.c.l.b16 %v3215
    %v4535 = vunpack.c.l.b16 %v3216
    %v4536 = vunpack.c.h.b16 %v3216
    %v4537 = vunpack.c.l.b16 %v3217
    %v4538 = vunpack.c.h.b16 %v3217
    %v4539 = vunpack.c.l.b16 %v3218
    %v4540 = vunpack.c.h.b16 %v3218
    %v4541 = vunpack.c.l.b16 %v3219
    %v4542 = vunpack.c.l.b16 %v3220
    %v4543 = vunpack.c.h.b16 %v3220
    %v4544 = vunpack.c.l.b16 %v3221
    %v4545 = vunpack.c.h.b16 %v3221
    %v4546 = vunpack.c.l.b16 %v3222
    %v4547 = vunpack.c.h.b16 %v3222
    %v4548 = vunpack.c.l.b16 %v3223
    %v4549 = vunpack.c.l.b16 %v3224
    %v4550 = vunpack.c.h.b16 %v3224
    %v4551 = vunpack.c.l.b16 %v3225
    %v4552 = vunpack.c.h.b16 %v3225
    %v4553 = vunpack.c.l.b16 %v3226
    %v4554 = vunpack.c.h.b16 %v3226
    %v4555 = vunpack.c.l.b16 %v3227
    %v4556 = vunpack.c.l.b16 %v3228
    %v4557 = vunpack.c.h.b16 %v3228
    %v4558 = vunpack.c.l.b16 %v3229
    %v4559 = vunpack.c.h.b16 %v3229
    %v4560 = vunpack.c.l.b16 %v3230
    %v4561 = vunpack.c.h.b16 %v3230
    %v4562 = vunpack.c.l.b16 %v3231
    %v4563 = vunpack.c.l.b16 %v3232
    %v4564 = vunpack.c.h.b16 %v3232
    %v4565 = vunpack.c.l.b16 %v3233
    %v4566 = vunpack.c.h.b16 %v3233
    %v4567 = vunpack.c.l.b16 %v3234
    %v4568 = vunpack.c.h.b16 %v3234
    %v4569 = vunpack.c.l.b16 %v3235
    %v4570 = vunpack.c.l.b16 %v3236
    %v4571 = vunpack.c.h.b16 %v3236
    %v4572 = vunpack.c.l.b16 %v3237
    %v4573 = vunpack.c.h.b16 %v3237
    %v4574 = vunpack.c.l.b16 %v3238
    %v4575 = vunpack.c.h.b16 %v3238
    %v4576 = vunpack.c.l.b16 %v3239
    %v4577 = vunpack.c.l.b16 %v3240
    %v4578 = vunpack.c.h.b16 %v3240
    %v4579 = vunpack.c.l.b16 %v3241
    %v4580 = vunpack.c.h.b16 %v3241
    %v4581 = vunpack.c.l.b16 %v3242
    %v4582 = vunpack.c.h.b16 %v3242
    %v4583 = vunpack.c.l.b16 %v3243
    %v4584 = vunpack.c.l.b16 %v3244
    %v4585 = vunpack.c.h.b16 %v3244
    %v4586 = vunpack.c.l.b16 %v3245
    %v4587 = vunpack.c.h.b16 %v3245
    %v4588 = vunpack.c.l.b16 %v3246
    %v4589 = vunpack.c.h.b16 %v3246
    %v4590 = vunpack.c.l.b16 %v3247
    %v4591 = vunpack.c.l.b16 %v3248
    %v4592 = vunpack.c.h.b16 %v3248
    %v4593 = vunpack.c.l.b16 %v3249
    %v4594 = vunpack.c.h.b16 %v3249
    %v4595 = vunpack.c.l.b16 %v3250
    %v4596 = vunpack.c.h.b16 %v3250
    %v4597 = vunpack.c.l.b16 %v3251
    %v4598 = vunpack.c.l.b16 %v3252
    %v4599 = vunpack.c.h.b16 %v3252
    %v4600 = vunpack.c.l.b16 %v3253
    %v4601 = vunpack.c.h.b16 %v3253
    %v4602 = vunpack.c.l.b16 %v3254
    %v4603 = vunpack.c.h.b16 %v3254
    %v4604 = vunpack.c.l.b16 %v3255
    %v4605 = vunpack.c.l.b16 %v3256
    %v4606 = vunpack.c.h.b16 %v3256
    %v4607 = vunpack.c.l.b16 %v3257
    %v4608 = vunpack.c.h.b16 %v3257
    %v4609 = vunpack.c.l.b16 %v3258
    %v4610 = vunpack.c.h.b16 %v3258
    %v4611 = vunpack.c.l.b16 %v3259
    %v4612 = vunpack.c.l.b16 %v3260
    %v4613 = vunpack.c.h.b16 %v3260
    %v4614 = vunpack.c.l.b16 %v3261
    %v4615 = vunpack.c.h.b16 %v3261
    %v4616 = vunpack.c.l.b16 %v3262
    %v4617 = vunpack.c.h.b16 %v3262
    %v4618 = vunpack.c.l.b16 %v3263
    %v4619 = vunpack.c.l.b16 %v3264
    %v4620 = vunpack.c.h.b16 %v3264
    %v4621 = vunpack.c.l.b16 %v3265
    %v4622 = vunpack.c.h.b16 %v3265
    %v4623 = vunpack.c.l.b16 %v3266
    %v4624 = vunpack.c.h.b16 %v3266
    %v4625 = vunpack.c.l.b16 %v3267
    %v4626 = vunpack.c.l.b16 %v3268
    %v4627 = vunpack.c.h.b16 %v3268
    %v4628 = vunpack.c.l.b16 %v3269
    %v4629 = vunpack.c.h.b16 %v3269
    %v4630 = vunpack.c.l.b16 %v3270
    %v4631 = vunpack.c.h.b16 %v3270
    %v4632 = vunpack.c.l.b16 %v3271
    %v4633 = vunpack.c.l.b16 %v3272
    %v4634 = vunpack.c.h.b16 %v3272
    %v4635 = vunpack.c.l.b16 %v3273
    %v4636 = vunpack.c.h.b16 %v3273
    %v4637 = vunpack.c.l.b16 %v3274
    %v4638 = vunpack.c.h.b16 %v3274
    %v4639 = vunpack.c.l.b16 %v3275
    %v4640 = vunpack.c.l.b16 %v3276
    %v4641 = vunpack.c.h.b16 %v3276
    %v4642 = vunpack.c.l.b16 %v3277
    %v4643 = vunpack.c.h.b16 %v3277
    %v4644 = vunpack.c.l.b16 %v3278
    %v4645 = vunpack.c.h.b16 %v3278
    %v4646 = vunpack.c.l.b16 %v3279
    %v4647 = vunpack.c.l.b16 %v3280
    %v4648 = vunpack.c.h.b16 %v3280
    %v4649 = vunpack.c.l.b16 %v3281
    %v4650 = vunpack.c.h.b16 %v3281
    %v4651 = vunpack.c.l.b16 %v3282
    %v4652 = vunpack.c.h.b16 %v3282
    %v4653 = vunpack.c.l.b16 %v3283
    %v4654 = vunpack.c.l.b16 %v3284
    %v4655 = vunpack.c.h.b16 %v3284
    %v4656 = vunpack.c.l.b16 %v3285
    %v4657 = vunpack.c.h.b16 %v3285
    %v4658 = vunpack.c.l.b16 %v3286
    %v4659 = vunpack.c.h.b16 %v3286
    %v4660 = vunpack.c.l.b16 %v3287
    %v4661 = vunpack.c.l.b16 %v3288
    %v4662 = vunpack.c.h.b16 %v3288
    %v4663 = vunpack.c.l.b16 %v3289
    %v4664 = vunpack.c.h.b16 %v3289
    %v4665 = vunpack.c.l.b16 %v3290
    %v4666 = vunpack.c.h.b16 %v3290
    %v4667 = vunpack.c.l.b16 %v3291
    %v4668 = vunpack.c.l.b16 %v3292
    %v4669 = vunpack.c.h.b16 %v3292
    %v4670 = vunpack.c.l.b16 %v3293
    %v4671 = vunpack.c.h.b16 %v3293
    %v4672 = vunpack.c.l.b16 %v3294
    %v4673 = vunpack.c.h.b16 %v3294
    %v4674 = vunpack.c.l.b16 %v3295
    %v4675 = vunpack.c.l.b16 %v3296
    %v4676 = vunpack.c.h.b16 %v3296
    %v4677 = vunpack.c.l.b16 %v3297
    %v4678 = vunpack.c.h.b16 %v3297
    %v4679 = vunpack.c.l.b16 %v3298
    %v4680 = vunpack.c.h.b16 %v3298
    %v4681 = vunpack.c.l.b16 %v3299
    %v4682 = vunpack.c.l.b16 %v3300
    %v4683 = vunpack.c.h.b16 %v3300
    %v4684 = vunpack.c.l.b16 %v3301
    %v4685 = vunpack.c.h.b16 %v3301
    %v4686 = vunpack.c.l.b16 %v3302
    %v4687 = vunpack.c.h.b16 %v3302
    %v4688 = vunpack.c.l.b16 %v3303
    %v4689 = vunpack.c.l.b16 %v3304
    %v4690 = vunpack.c.h.b16 %v3304
    %v4691 = vunpack.c.l.b16 %v3305
    %v4692 = vunpack.c.h.b16 %v3305
    %v4693 = vunpack.c.l.b16 %v3306
    %v4694 = vunpack.c.h.b16 %v3306
    %v4695 = vunpack.c.l.b16 %v3307
    %v4696 = vunpack.c.l.b16 %v3308
    %v4697 = vunpack.c.h.b16 %v3308
    %v4698 = vunpack.c.l.b16 %v3309
    %v4699 = vunpack.c.h.b16 %v3309
    %v4700 = vunpack.c.l.b16 %v3310
    %v4701 = vunpack.c.h.b16 %v3310
    %v4702 = vunpack.c.l.b16 %v3311
    %v4703 = vunpack.c.l.b16 %v3312
    %v4704 = vunpack.c.h.b16 %v3312
    %v4705 = vunpack.c.l.b16 %v3313
    %v4706 = vunpack.c.h.b16 %v3313
    %v4707 = vunpack.c.l.b16 %v3314
    %v4708 = vunpack.c.h.b16 %v3314
    %v4709 = vunpack.c.l.b16 %v3315
    %v4710 = vunpack.c.l.b16 %v3316
    %v4711 = vunpack.c.h.b16 %v3316
    %v4712 = vunpack.c.l.b16 %v3317
    %v4713 = vunpack.c.h.b16 %v3317
    %v4714 = vunpack.c.l.b16 %v3318
    %v4715 = vunpack.c.h.b16 %v3318
    %v4716 = vunpack.c.l.b16 %v3319
    %v4717 = vunpack.c.l.b16 %v3320
    %v4718 = vunpack.c.h.b16 %v3320
    %v4719 = vunpack.c.l.b16 %v3321
    %v4720 = vunpack.c.h.b16 %v3321
    %v4721 = vunpack.c.l.b16 %v3322
    %v4722 = vunpack.c.h.b16 %v3322
    %v4723 = vunpack.c.l.b16 %v3323
    %v4724 = vunpack.c.l.b16 %v3324
    %v4725 = vunpack.c.h.b16 %v3324
    %v4726 = vunpack.c.l.b16 %v3325
    %v4727 = vunpack.c.h.b16 %v3325
    %v4728 = vunpack.c.l.b16 %v3326
    %v4729 = vunpack.c.h.b16 %v3326
    %v4730 = vunpack.c.l.b16 %v3327
    %v4731 = vunpack.c.l.b16 %v3328
    %v4732 = vunpack.c.h.b16 %v3328
    %v4733 = vunpack.c.l.b16 %v3329
    %v4734 = vunpack.c.h.b16 %v3329
    %v4735 = vunpack.c.l.b16 %v3330
    %v4736 = vunpack.c.h.b16 %v3330
    %v4737 = vunpack.c.l.b16 %v3331
    %v4738 = vunpack.c.l.b16 %v3332
    %v4739 = vunpack.c.h.b16 %v3332
    %v4740 = vunpack.c.l.b16 %v3333
    %v4741 = vunpack.c.h.b16 %v3333
    %v4742 = vunpack.c.l.b16 %v3334
    %v4743 = vunpack.c.h.b16 %v3334
    %v4744 = vunpack.c.l.b16 %v3335
    %v4745 = vunpack.c.l.b16 %v3336
    %v4746 = vunpack.c.h.b16 %v3336
    %v4747 = vunpack.c.l.b16 %v3337
    %v4748 = vunpack.c.h.b16 %v3337
    %v4749 = vunpack.c.l.b16 %v3338
    %v4750 = vunpack.c.h.b16 %v3338
    %v4751 = vunpack.c.l.b16 %v3339
    %v4752 = vunpack.c.l.b16 %v3340
    %v4753 = vunpack.c.h.b16 %v3340
    %v4754 = vunpack.c.l.b16 %v3341
    %v4755 = vunpack.c.h.b16 %v3341
    %v4756 = vunpack.c.l.b16 %v3342
    %v4757 = vunpack.c.h.b16 %v3342
    %v4758 = vunpack.c.l.b16 %v3343
    %v4759 = vunpack.c.l.b16 %v3344
    %v4760 = vunpack.c.h.b16 %v3344
    %v4761 = vunpack.c.l.b16 %v3345
    %v4762 = vunpack.c.h.b16 %v3345
    %v4763 = vunpack.c.l.b16 %v3346
    %v4764 = vunpack.c.h.b16 %v3346
    %v4765 = vunpack.c.l.b16 %v3347
    %v4766 = vunpack.c.l.b16 %v3348
    %v4767 = vunpack.c.h.b16 %v3348
    %v4768 = vunpack.c.l.b16 %v3349
    %v4769 = vunpack.c.h.b16 %v3349
    %v4770 = vunpack.c.l.b16 %v3350
    %v4771 = vunpack.c.h.b16 %v3350
    %v4772 = vunpack.c.l.b16 %v3351
    %v4773 = vunpack.c.l.b16 %v3352
    %v4774 = vunpack.c.h.b16 %v3352
    %v4775 = vunpack.c.l.b16 %v3353
    %v4776 = vunpack.c.h.b16 %v3353
    %v4777 = vunpack.c.l.b16 %v3354
    %v4778 = vunpack.c.h.b16 %v3354
    %v4779 = vunpack.c.l.b16 %v3355
    %v4780 = vunpack.c.l.b16 %v3356
    %v4781 = vunpack.c.h.b16 %v3356
    %v4782 = vunpack.c.l.b16 %v3357
    %v4783 = vunpack.c.h.b16 %v3357
    %v4784 = vunpack.c.l.b16 %v3358
    %v4785 = vunpack.c.h.b16 %v3358
    %v4786 = vunpack.c.l.b16 %v3359
    %v4787 = vunpack.c.l.b16 %v3360
    %v4788 = vunpack.c.h.b16 %v3360
    %v4789 = vunpack.c.l.b16 %v3361
    %v4790 = vunpack.c.h.b16 %v3361
    %v4791 = vunpack.c.l.b16 %v3362
    %v4792 = vunpack.c.h.b16 %v3362
    %v4793 = vunpack.c.l.b16 %v3363
    %v4794 = vunpack.c.l.b16 %v3364
    %v4795 = vunpack.c.h.b16 %v3364
    %v4796 = vunpack.c.l.b16 %v3365
    %v4797 = vunpack.c.h.b16 %v3365
    %v4798 = vunpack.c.l.b16 %v3366
    %v4799 = vunpack.c.h.b16 %v3366
    %v4800 = vunpack.c.l.b16 %v3367
    %v4801 = vunpack.c.l.b16 %v3368
    %v4802 = vunpack.c.h.b16 %v3368
    %v4803 = vunpack.c.l.b16 %v3369
    %v4804 = vunpack.c.h.b16 %v3369
    %v4805 = vunpack.c.l.b16 %v3370
    %v4806 = vunpack.c.h.b16 %v3370
    %v4807 = vunpack.c.l.b16 %v3371
    %v4808 = vunpack.c.l.b16 %v3372
    %v4809 = vunpack.c.h.b16 %v3372
    %v4810 = vunpack.c.l.b16 %v3373
    %v4811 = vunpack.c.h.b16 %v3373
    %v4812 = vunpack.c.l.b16 %v3374
    %v4813 = vunpack.c.h.b16 %v3374
    %v4814 = vunpack.c.l.b16 %v3375
    %v4815 = vunpack.c.l.b16 %v3376
    %v4816 = vunpack.c.h.b16 %v3376
    %v4817 = vunpack.c.l.b16 %v3377
    %v4818 = vunpack.c.h.b16 %v3377
    %v4819 = vunpack.c.l.b16 %v3378
    %v4820 = vunpack.c.h.b16 %v3378
    %v4821 = vunpack.c.l.b16 %v3379
    %v4822 = vunpack.c.l.b16 %v3380
    %v4823 = vunpack.c.h.b16 %v3380
    %v4824 = vunpack.c.l.b16 %v3381
    %v4825 = vunpack.c.h.b16 %v3381
    %v4826 = vunpack.c.l.b16 %v3382
    %v4827 = vunpack.c.h.b16 %v3382
    %v4828 = vunpack.c.l.b16 %v3383
    %v4829 = vpack.c.b16 %v3940, %v3933
    %v4830 = vpack.c.b16 %v3941, %v3934
    %v4831 = vpack.c.b16 %v3942, %v3935
    %v4832 = vpack.c.b16 %v3943, %v3936
    %v4833 = vpack.c.b16 %v3944, %v3937
    %v4834 = vpack.c.b16 %v3945, %v3938
    %v4835 = vpack.c.b16 %v3946, %v3939
    %v4836 = vpack.c.b16 %v3954, %v3947
    %v4837 = vpack.c.b16 %v3955, %v3948
    %v4838 = vpack.c.b16 %v3956, %v3949
    %v4839 = vpack.c.b16 %v3957, %v3950
    %v4840 = vpack.c.b16 %v3958, %v3951
    %v4841 = vpack.c.b16 %v3959, %v3952
    %v4842 = vpack.c.b16 %v3960, %v3953
    %v4843 = vpack.c.b16 %v3968, %v3961
    %v4844 = vpack.c.b16 %v3969, %v3962
    %v4845 = vpack.c.b16 %v3970, %v3963
    %v4846 = vpack.c.b16 %v3971, %v3964
    %v4847 = vpack.c.b16 %v3972, %v3965
    %v4848 = vpack.c.b16 %v3973, %v3966
    %v4849 = vpack.c.b16 %v3974, %v3967
    %v4850 = vpack.c.b16 %v3982, %v3975
    %v4851 = vpack.c.b16 %v3983, %v3976
    %v4852 = vpack.c.b16 %v3984, %v3977
    %v4853 = vpack.c.b16 %v3985, %v3978
    %v4854 = vpack.c.b16 %v3986, %v3979
    %v4855 = vpack.c.b16 %v3987, %v3980
    %v4856 = vpack.c.b16 %v3988, %v3981
    %v4857 = vpack.c.b16 %v3996, %v3989
    %v4858 = vpack.c.b16 %v3997, %v3990
    %v4859 = vpack.c.b16 %v3998, %v3991
    %v4860 = vpack.c.b16 %v3999, %v3992
    %v4861 = vpack.c.b16 %v4000, %v3993
    %v4862 = vpack.c.b16 %v4001, %v3994
    %v4863 = vpack.c.b16 %v4002, %v3995
    %v4864 = vpack.c.b16 %v4010, %v4003
    %v4865 = vpack.c.b16 %v4011, %v4004
    %v4866 = vpack.c.b16 %v4012, %v4005
    %v4867 = vpack.c.b16 %v4013, %v4006
    %v4868 = vpack.c.b16 %v4014, %v4007
    %v4869 = vpack.c.b16 %v4015, %v4008
    %v4870 = vpack.c.b16 %v4016, %v4009
    %v4871 = vpack.c.b16 %v4024, %v4017
    %v4872 = vpack.c.b16 %v4025, %v4018
    %v4873 = vpack.c.b16 %v4026, %v4019
    %v4874 = vpack.c.b16 %v4027, %v4020
    %v4875 = vpack.c.b16 %v4028, %v4021
    %v4876 = vpack.c.b16 %v4029, %v4022
    %v4877 = vpack.c.b16 %v4030, %v4023
    %v4878 = vpack.c.b16 %v4038, %v4031
    %v4879 = vpack.c.b16 %v4039, %v4032
    %v4880 = vpack.c.b16 %v4040, %v4033
    %v4881 = vpack.c.b16 %v4041, %v4034
    %v4882 = vpack.c.b16 %v4042, %v4035
    %v4883 = vpack.c.b16 %v4043, %v4036
    %v4884 = vpack.c.b16 %v4044, %v4037
    %v4885 = vpack.c.b16 %v4052, %v4045
    %v4886 = vpack.c.b16 %v4053, %v4046
    %v4887 = vpack.c.b16 %v4054, %v4047
    %v4888 = vpack.c.b16 %v4055, %v4048
    %v4889 = vpack.c.b16 %v4056, %v4049
    %v4890 = vpack.c.b16 %v4057, %v4050
    %v4891 = vpack.c.b16 %v4058, %v4051
    %v4892 = vpack.c.b16 %v4066, %v4059
    %v4893 = vpack.c.b16 %v4067, %v4060
    %v4894 = vpack.c.b16 %v4068, %v4061
    %v4895 = vpack.c.b16 %v4069, %v4062
    %v4896 = vpack.c.b16 %v4070, %v4063
    %v4897 = vpack.c.b16 %v4071, %v4064
    %v4898 = vpack.c.b16 %v4072, %v4065
    %v4899 = vpack.c.b16 %v4080, %v4073
    %v4900 = vpack.c.b16 %v4081, %v4074
    %v4901 = vpack.c.b16 %v4082, %v4075
    %v4902 = vpack.c.b16 %v4083, %v4076
    %v4903 = vpack.c.b16 %v4084, %v4077
    %v4904 = vpack.c.b16 %v4085, %v4078
    %v4905 = vpack.c.b16 %v4086, %v4079
    %v4906 = vpack.c.b16 %v4094, %v4087
    %v4907 = vpack.c.b16 %v4095, %v4088
    %v4908 = vpack.c.b16 %v4096, %v4089
    %v4909 = vpack.c.b16 %v4097, %v4090
    %v4910 = vpack.c.b16 %v4098, %v4091
    %v4911 = vpack.c.b16 %v4099, %v4092
    %v4912 = vpack.c.b16 %v4100, %v4093
    %v4913 = vpack.c.b16 %v4108, %v4101
    %v4914 = vpack.c.b16 %v4109, %v4102
    %v4915 = vpack.c.b16 %v4110, %v4103
    %v4916 = vpack.c.b16 %v4111, %v4104
    %v4917 = vpack.c.b16 %v4112, %v4105
    %v4918 = vpack.c.b16 %v4113, %v4106
    %v4919 = vpack.c.b16 %v4114, %v4107
    %v4920 = vpack.c.b16 %v4122, %v4115
    %v4921 = vpack.c.b16 %v4123, %v4116
    %v4922 = vpack.c.b16 %v4124, %v4117
    %v4923 = vpack.c.b16 %v4125, %v4118
    %v4924 = vpack.c.b16 %v4126, %v4119
    %v4925 = vpack.c.b16 %v4127, %v4120
    %v4926 = vpack.c.b16 %v4128, %v4121
    %v4927 = vpack.c.b16 %v4136, %v4129
    %v4928 = vpack.c.b16 %v4137, %v4130
    %v4929 = vpack.c.b16 %v4138, %v4131
    %v4930 = vpack.c.b16 %v4139, %v4132
    %v4931 = vpack.c.b16 %v4140, %v4133
    %v4932 = vpack.c.b16 %v4141, %v4134
    %v4933 = vpack.c.b16 %v4142, %v4135
    %v4934 = vpack.c.b16 %v4150, %v4143
    %v4935 = vpack.c.b16 %v4151, %v4144
    %v4936 = vpack.c.b16 %v4152, %v4145
    %v4937 = vpack.c.b16 %v4153, %v4146
    %v4938 = vpack.c.b16 %v4154, %v4147
    %v4939 = vpack.c.b16 %v4155, %v4148
    %v4940 = vpack.c.b16 %v4156, %v4149
    %v4941 = vpack.c.b16 %v4164, %v4157
    %v4942 = vpack.c.b16 %v4165, %v4158
    %v4943 = vpack.c.b16 %v4166, %v4159
    %v4944 = vpack.c.b16 %v4167, %v4160
    %v4945 = vpack.c.b16 %v4168, %v4161
    %v4946 = vpack.c.b16 %v4169, %v4162
    %v4947 = vpack.c.b16 %v4170, %v4163
    %v4948 = vpack.c.b16 %v4178, %v4171
    %v4949 = vpack.c.b16 %v4179, %v4172
    %v4950 = vpack.c.b16 %v4180, %v4173
    %v4951 = vpack.c.b16 %v4181, %v4174
    %v4952 = vpack.c.b16 %v4182, %v4175
    %v4953 = vpack.c.b16 %v4183, %v4176
    %v4954 = vpack.c.b16 %v4184, %v4177
    %v4955 = vpack.c.b16 %v4192, %v4185
    %v4956 = vpack.c.b16 %v4193, %v4186
    %v4957 = vpack.c.b16 %v4194, %v4187
    %v4958 = vpack.c.b16 %v4195, %v4188
    %v4959 = vpack.c.b16 %v4196, %v4189
    %v4960 = vpack.c.b16 %v4197, %v4190
    %v4961 = vpack.c.b16 %v4198, %v4191
    %v4962 = vpack.c.b16 %v4206, %v4199
    %v4963 = vpack.c.b16 %v4207, %v4200
    %v4964 = vpack.c.b16 %v4208, %v4201
    %v4965 = vpack.c.b16 %v4209, %v4202
    %v4966 = vpack.c.b16 %v4210, %v4203
    %v4967 = vpack.c.b16 %v4211, %v4204
    %v4968 = vpack.c.b16 %v4212, %v4205
    %v4969 = vpack.c.b16 %v4220, %v4213
    %v4970 = vpack.c.b16 %v4221, %v4214
    %v4971 = vpack.c.b16 %v4222, %v4215
    %v4972 = vpack.c.b16 %v4223, %v4216
    %v4973 = vpack.c.b16 %v4224, %v4217
    %v4974 = vpack.c.b16 %v4225, %v4218
    %v4975 = vpack.c.b16 %v4226, %v4219
    %v4976 = vpack.c.b16 %v4234, %v4227
    %v4977 = vpack.c.b16 %v4235, %v4228
    %v4978 = vpack.c.b16 %v4236, %v4229
    %v4979 = vpack.c.b16 %v4237, %v4230
    %v4980 = vpack.c.b16 %v4238, %v4231
    %v4981 = vpack.c.b16 %v4239, %v4232
    %v4982 = vpack.c.b16 %v4240, %v4233
    %v4983 = vpack.c.b16 %v4248, %v4241
    %v4984 = vpack.c.b16 %v4249, %v4242
    %v4985 = vpack.c.b16 %v4250, %v4243
    %v4986 = vpack.c.b16 %v4251, %v4244
    %v4987 = vpack.c.b16 %v4252, %v4245
    %v4988 = vpack.c.b16 %v4253, %v4246
    %v4989 = vpack.c.b16 %v4254, %v4247
    %v4990 = vpack.c.b16 %v4262, %v4255
    %v4991 = vpack.c.b16 %v4263, %v4256
    %v4992 = vpack.c.b16 %v4264, %v4257
    %v4993 = vpack.c.b16 %v4265, %v4258
    %v4994 = vpack.c.b16 %v4266, %v4259
    %v4995 = vpack.c.b16 %v4267, %v4260
    %v4996 = vpack.c.b16 %v4268, %v4261
    %v4997 = vpack.c.b16 %v4276, %v4269
    %v4998 = vpack.c.b16 %v4277, %v4270
    %v4999 = vpack.c.b16 %v4278, %v4271
    %v5000 = vpack.c.b16 %v4279, %v4272
    %v5001 = vpack.c.b16 %v4280, %v4273
    %v5002 = vpack.c.b16 %v4281, %v4274
    %v5003 = vpack.c.b16 %v4282, %v4275
    %v5004 = vpack.c.b16 %v4290, %v4283
    %v5005 = vpack.c.b16 %v4291, %v4284
    %v5006 = vpack.c.b16 %v4292, %v4285
    %v5007 = vpack.c.b16 %v4293, %v4286
    %v5008 = vpack.c.b16 %v4294, %v4287
    %v5009 = vpack.c.b16 %v4295, %v4288
    %v5010 = vpack.c.b16 %v4296, %v4289
    %v5011 = vpack.c.b16 %v4304, %v4297
    %v5012 = vpack.c.b16 %v4305, %v4298
    %v5013 = vpack.c.b16 %v4306, %v4299
    %v5014 = vpack.c.b16 %v4307, %v4300
    %v5015 = vpack.c.b16 %v4308, %v4301
    %v5016 = vpack.c.b16 %v4309, %v4302
    %v5017 = vpack.c.b16 %v4310, %v4303
    %v5018 = vpack.c.b16 %v4318, %v4311
    %v5019 = vpack.c.b16 %v4319, %v4312
    %v5020 = vpack.c.b16 %v4320, %v4313
    %v5021 = vpack.c.b16 %v4321, %v4314
    %v5022 = vpack.c.b16 %v4322, %v4315
    %v5023 = vpack.c.b16 %v4323, %v4316
    %v5024 = vpack.c.b16 %v4324, %v4317
    %v5025 = vpack.c.b16 %v4332, %v4325
    %v5026 = vpack.c.b16 %v4333, %v4326
    %v5027 = vpack.c.b16 %v4334, %v4327
    %v5028 = vpack.c.b16 %v4335, %v4328
    %v5029 = vpack.c.b16 %v4336, %v4329
    %v5030 = vpack.c.b16 %v4337, %v4330
    %v5031 = vpack.c.b16 %v4338, %v4331
    %v5032 = vpack.c.b16 %v4346, %v4339
    %v5033 = vpack.c.b16 %v4347, %v4340
    %v5034 = vpack.c.b16 %v4348, %v4341
    %v5035 = vpack.c.b16 %v4349, %v4342
    %v5036 = vpack.c.b16 %v4350, %v4343
    %v5037 = vpack.c.b16 %v4351, %v4344
    %v5038 = vpack.c.b16 %v4352, %v4345
    %v5039 = vpack.c.b16 %v4360, %v4353
    %v5040 = vpack.c.b16 %v4361, %v4354
    %v5041 = vpack.c.b16 %v4362, %v4355
    %v5042 = vpack.c.b16 %v4363, %v4356
    %v5043 = vpack.c.b16 %v4364, %v4357
    %v5044 = vpack.c.b16 %v4365, %v4358
    %v5045 = vpack.c.b16 %v4366, %v4359
    %v5046 = vpack.c.b16 %v4374, %v4367
    %v5047 = vpack.c.b16 %v4375, %v4368
    %v5048 = vpack.c.b16 %v4376, %v4369
    %v5049 = vpack.c.b16 %v4377, %v4370
    %v5050 = vpack.c.b16 %v4378, %v4371
    %v5051 = vpack.c.b16 %v4379, %v4372
    %v5052 = vpack.c.b16 %v4380, %v4373
    %v5053 = vpack.c.b16 %v4388, %v4381
    %v5054 = vpack.c.b16 %v4389, %v4382
    %v5055 = vpack.c.b16 %v4390, %v4383
    %v5056 = vpack.c.b16 %v4391, %v4384
    %v5057 = vpack.c.b16 %v4392, %v4385
    %v5058 = vpack.c.b16 %v4393, %v4386
    %v5059 = vpack.c.b16 %v4394, %v4387
    %v5060 = vpack.c.b16 %v4402, %v4395
    %v5061 = vpack.c.b16 %v4403, %v4396
    %v5062 = vpack.c.b16 %v4404, %v4397
    %v5063 = vpack.c.b16 %v4405, %v4398
    %v5064 = vpack.c.b16 %v4406, %v4399
    %v5065 = vpack.c.b16 %v4407, %v4400
    %v5066 = vpack.c.b16 %v4408, %v4401
    %v5067 = vpack.c.b16 %v4416, %v4409
    %v5068 = vpack.c.b16 %v4417, %v4410
    %v5069 = vpack.c.b16 %v4418, %v4411
    %v5070 = vpack.c.b16 %v4419, %v4412
    %v5071 = vpack.c.b16 %v4420, %v4413
    %v5072 = vpack.c.b16 %v4421, %v4414
    %v5073 = vpack.c.b16 %v4422, %v4415
    %v5074 = vpack.c.b16 %v4430, %v4423
    %v5075 = vpack.c.b16 %v4431, %v4424
    %v5076 = vpack.c.b16 %v4432, %v4425
    %v5077 = vpack.c.b16 %v4433, %v4426
    %v5078 = vpack.c.b16 %v4434, %v4427
    %v5079 = vpack.c.b16 %v4435, %v4428
    %v5080 = vpack.c.b16 %v4436, %v4429
    %v5081 = vpack.c.b16 %v4444, %v4437
    %v5082 = vpack.c.b16 %v4445, %v4438
    %v5083 = vpack.c.b16 %v4446, %v4439
    %v5084 = vpack.c.b16 %v4447, %v4440
    %v5085 = vpack.c.b16 %v4448, %v4441
    %v5086 = vpack.c.b16 %v4449, %v4442
    %v5087 = vpack.c.b16 %v4450, %v4443
    %v5088 = vpack.c.b16 %v4458, %v4451
    %v5089 = vpack.c.b16 %v4459, %v4452
    %v5090 = vpack.c.b16 %v4460, %v4453
    %v5091 = vpack.c.b16 %v4461, %v4454
    %v5092 = vpack.c.b16 %v4462, %v4455
    %v5093 = vpack.c.b16 %v4463, %v4456
    %v5094 = vpack.c.b16 %v4464, %v4457
    %v5095 = vpack.c.b16 %v4472, %v4465
    %v5096 = vpack.c.b16 %v4473, %v4466
    %v5097 = vpack.c.b16 %v4474, %v4467
    %v5098 = vpack.c.b16 %v4475, %v4468
    %v5099 = vpack.c.b16 %v4476, %v4469
    %v5100 = vpack.c.b16 %v4477, %v4470
    %v5101 = vpack.c.b16 %v4478, %v4471
    %v5102 = vpack.c.b16 %v4486, %v4479
    %v5103 = vpack.c.b16 %v4487, %v4480
    %v5104 = vpack.c.b16 %v4488, %v4481
    %v5105 = vpack.c.b16 %v4489, %v4482
    %v5106 = vpack.c.b16 %v4490, %v4483
    %v5107 = vpack.c.b16 %v4491, %v4484
    %v5108 = vpack.c.b16 %v4492, %v4485
    %v5109 = vpack.c.b16 %v4500, %v4493
    %v5110 = vpack.c.b16 %v4501, %v4494
    %v5111 = vpack.c.b16 %v4502, %v4495
    %v5112 = vpack.c.b16 %v4503, %v4496
    %v5113 = vpack.c.b16 %v4504, %v4497
    %v5114 = vpack.c.b16 %v4505, %v4498
    %v5115 = vpack.c.b16 %v4506, %v4499
    %v5116 = vpack.c.b16 %v4514, %v4507
    %v5117 = vpack.c.b16 %v4515, %v4508
    %v5118 = vpack.c.b16 %v4516, %v4509
    %v5119 = vpack.c.b16 %v4517, %v4510
    %v5120 = vpack.c.b16 %v4518, %v4511
    %v5121 = vpack.c.b16 %v4519, %v4512
    %v5122 = vpack.c.b16 %v4520, %v4513
    %v5123 = vpack.c.b16 %v4528, %v4521
    %v5124 = vpack.c.b16 %v4529, %v4522
    %v5125 = vpack.c.b16 %v4530, %v4523
    %v5126 = vpack.c.b16 %v4531, %v4524
    %v5127 = vpack.c.b16 %v4532, %v4525
    %v5128 = vpack.c.b16 %v4533, %v4526
    %v5129 = vpack.c.b16 %v4534, %v4527
    %v5130 = vpack.c.b16 %v4542, %v4535
    %v5131 = vpack.c.b16 %v4543, %v4536
    %v5132 = vpack.c.b16 %v4544, %v4537
    %v5133 = vpack.c.b16 %v4545, %v4538
    %v5134 = vpack.c.b16 %v4546, %v4539
    %v5135 = vpack.c.b16 %v4547, %v4540
    %v5136 = vpack.c.b16 %v4548, %v4541
    %v5137 = vpack.c.b16 %v4556, %v4549
    %v5138 = vpack.c.b16 %v4557, %v4550
    %v5139 = vpack.c.b16 %v4558, %v4551
    %v5140 = vpack.c.b16 %v4559, %v4552
    %v5141 = vpack.c.b16 %v4560, %v4553
    %v5142 = vpack.c.b16 %v4561, %v4554
    %v5143 = vpack.c.b16 %v4562, %v4555
    %v5144 = vpack.c.b16 %v4570, %v4563
    %v5145 = vpack.c.b16 %v4571, %v4564
    %v5146 = vpack.c.b16 %v4572, %v4565
    %v5147 = vpack.c.b16 %v4573, %v4566
    %v5148 = vpack.c.b16 %v4574, %v4567
    %v5149 = vpack.c.b16 %v4575, %v4568
    %v5150 = vpack.c.b16 %v4576, %v4569
    %v5151 = vpack.c.b16 %v4584, %v4577
    %v5152 = vpack.c.b16 %v4585, %v4578
    %v5153 = vpack.c.b16 %v4586, %v4579
    %v5154 = vpack.c.b16 %v4587, %v4580
    %v5155 = vpack.c.b16 %v4588, %v4581
    %v5156 = vpack.c.b16 %v4589, %v4582
    %v5157 = vpack.c.b16 %v4590, %v4583
    %v5158 = vpack.c.b16 %v4598, %v4591
    %v5159 = vpack.c.b16 %v4599, %v4592
    %v5160 = vpack.c.b16 %v4600, %v4593
    %v5161 = vpack.c.b16 %v4601, %v4594
    %v5162 = vpack.c.b16 %v4602, %v4595
    %v5163 = vpack.c.b16 %v4603, %v4596
    %v5164 = vpack.c.b16 %v4604, %v4597
    %v5165 = vpack.c.b16 %v4612, %v4605
    %v5166 = vpack.c.b16 %v4613, %v4606
    %v5167 = vpack.c.b16 %v4614, %v4607
    %v5168 = vpack.c.b16 %v4615, %v4608
    %v5169 = vpack.c.b16 %v4616, %v4609
    %v5170 = vpack.c.b16 %v4617, %v4610
    %v5171 = vpack.c.b16 %v4618, %v4611
    %v5172 = vpack.c.b16 %v4626, %v4619
    %v5173 = vpack.c.b16 %v4627, %v4620
    %v5174 = vpack.c.b16 %v4628, %v4621
    %v5175 = vpack.c.b16 %v4629, %v4622
    %v5176 = vpack.c.b16 %v4630, %v4623
    %v5177 = vpack.c.b16 %v4631, %v4624
    %v5178 = vpack.c.b16 %v4632, %v4625
    %v5179 = vpack.c.b16 %v4640, %v4633
    %v5180 = vpack.c.b16 %v4641, %v4634
    %v5181 = vpack.c.b16 %v4642, %v4635
    %v5182 = vpack.c.b16 %v4643, %v4636
    %v5183 = vpack.c.b16 %v4644, %v4637
    %v5184 = vpack.c.b16 %v4645, %v4638
    %v5185 = vpack.c.b16 %v4646, %v4639
    %v5186 = vpack.c.b16 %v4654, %v4647
    %v5187 = vpack.c.b16 %v4655, %v4648
    %v5188 = vpack.c.b16 %v4656, %v4649
    %v5189 = vpack.c.b16 %v4657, %v4650
    %v5190 = vpack.c.b16 %v4658, %v4651
    %v5191 = vpack.c.b16 %v4659, %v4652
    %v5192 = vpack.c.b16 %v4660, %v4653
    %v5193 = vpack.c.b16 %v4668, %v4661
    %v5194 = vpack.c.b16 %v4669, %v4662
    %v5195 = vpack.c.b16 %v4670, %v4663
    %v5196 = vpack.c.b16 %v4671, %v4664
    %v5197 = vpack.c.b16 %v4672, %v4665
    %v5198 = vpack.c.b16 %v4673, %v4666
    %v5199 = vpack.c.b16 %v4674, %v4667
    %v5200 = vpack.c.b16 %v4682, %v4675
    %v5201 = vpack.c.b16 %v4683, %v4676
    %v5202 = vpack.c.b16 %v4684, %v4677
    %v5203 = vpack.c.b16 %v4685, %v4678
    %v5204 = vpack.c.b16 %v4686, %v4679
    %v5205 = vpack.c.b16 %v4687, %v4680
    %v5206 = vpack.c.b16 %v4688, %v4681
    %v5207 = vpack.c.b16 %v4696, %v4689
    %v5208 = vpack.c.b16 %v4697, %v4690
    %v5209 = vpack.c.b16 %v4698, %v4691
    %v5210 = vpack.c.b16 %v4699, %v4692
    %v5211 = vpack.c.b16 %v4700, %v4693
    %v5212 = vpack.c.b16 %v4701, %v4694
    %v5213 = vpack.c.b16 %v4702, %v4695
    %v5214 = vpack.c.b16 %v4710, %v4703
    %v5215 = vpack.c.b16 %v4711, %v4704
    %v5216 = vpack.c.b16 %v4712, %v4705
    %v5217 = vpack.c.b16 %v4713, %v4706
    %v5218 = vpack.c.b16 %v4714, %v4707
    %v5219 = vpack.c.b16 %v4715, %v4708
    %v5220 = vpack.c.b16 %v4716, %v4709
    %v5221 = vpack.c.b16 %v4724, %v4717
    %v5222 = vpack.c.b16 %v4725, %v4718
    %v5223 = vpack.c.b16 %v4726, %v4719
    %v5224 = vpack.c.b16 %v4727, %v4720
    %v5225 = vpack.c.b16 %v4728, %v4721
    %v5226 = vpack.c.b16 %v4729, %v4722
    %v5227 = vpack.c.b16 %v4730, %v4723
    %v5228 = vpack.c.b16 %v4738, %v4731
    %v5229 = vpack.c.b16 %v4739, %v4732
    %v5230 = vpack.c.b16 %v4740, %v4733
    %v5231 = vpack.c.b16 %v4741, %v4734
    %v5232 = vpack.c.b16 %v4742, %v4735
    %v5233 = vpack.c.b16 %v4743, %v4736
    %v5234 = vpack.c.b16 %v4744, %v4737
    %v5235 = vpack.c.b16 %v4752, %v4745
    %v5236 = vpack.c.b16 %v4753, %v4746
    %v5237 = vpack.c.b16 %v4754, %v4747
    %v5238 = vpack.c.b16 %v4755, %v4748
    %v5239 = vpack.c.b16 %v4756, %v4749
    %v5240 = vpack.c.b16 %v4757, %v4750
    %v5241 = vpack.c.b16 %v4758, %v4751
    %v5242 = vpack.c.b16 %v4766, %v4759
    %v5243 = vpack.c.b16 %v4767, %v4760
    %v5244 = vpack.c.b16 %v4768, %v4761
    %v5245 = vpack.c.b16 %v4769, %v4762
    %v5246 = vpack.c.b16 %v4770, %v4763
    %v5247 = vpack.c.b16 %v4771, %v4764
    %v5248 = vpack.c.b16 %v4772, %v4765
    %v5249 = vpack.c.b16 %v4780, %v4773
    %v5250 = vpack.c.b16 %v4781, %v4774
    %v5251 = vpack.c.b16 %v4782, %v4775
    %v5252 = vpack.c.b16 %v4783, %v4776
    %v5253 = vpack.c.b16 %v4784, %v4777
    %v5254 = vpack.c.b16 %v4785, %v4778
    %v5255 = vpack.c.b16 %v4786, %v4779
    %v5256 = vpack.c.b16 %v4794, %v4787
    %v5257 = vpack.c.b16 %v4795, %v4788
    %v5258 = vpack.c.b16 %v4796, %v4789
    %v5259 = vpack.c.b16 %v4797, %v4790
    %v5260 = vpack.c.b16 %v4798, %v4791
    %v5261 = vpack.c.b16 %v4799, %v4792
    %v5262 = vpack.c.b16 %v4800, %v4793
    %v5263 = vpack.c.b16 %v4808, %v4801
    %v5264 = vpack.c.b16 %v4809, %v4802
    %v5265 = vpack.c.b16 %v4810, %v4803
    %v5266 = vpack.c.b16 %v4811, %v4804
    %v5267 = vpack.c.b16 %v4812, %v4805
    %v5268 = vpack.c.b16 %v4813, %v4806
    %v5269 = vpack.c.b16 %v4814, %v4807
    %v5270 = vpack.c.b16 %v4822, %v4815
    %v5271 = vpack.c.b16 %v4823, %v4816
    %v5272 = vpack.c.b16 %v4824, %v4817
    %v5273 = vpack.c.b16 %v4825, %v4818
    %v5274 = vpack.c.b16 %v4826, %v4819
    %v5275 = vpack.c.b16 %v4827, %v4820
    %v5276 = vpack.c.b16 %v4828, %v4821
    %5725 = vmatprep.subr.bf16.mxu0 %v4830
    %5726 = vmatpush1.bf16.msra.mxu0 %v4829
    %5727 = vmatprep.subr.bf16.mxu0 %v4837
    %5728 = vmatpush1.bf16.msra.mxu0 %v4836
    %5729 = vmatprep.subr.bf16.mxu0 %v4844
    %5730 = vmatpush1.bf16.msra.mxu0 %v4843
    %5731 = vmatprep.subr.bf16.mxu0 %v4851
    %5732 = vmatpush1.bf16.msra.mxu0 %v4850
    %5733 = vmatprep.subr.bf16.mxu0 %v4858
    %5734 = vmatpush1.bf16.msra.mxu0 %v4857
    %5735 = vmatprep.subr.bf16.mxu0 %v4865
    %5736 = vmatpush1.bf16.msra.mxu0 %v4864
    %5737 = vmatprep.subr.bf16.mxu0 %v4872
    %5738 = vmatpush1.bf16.msra.mxu0 %v4871
    %5739 = vmatprep.subr.bf16.mxu0 %v4879
    %5740 = vmatpush1.bf16.msra.mxu0 %v4878
    %5741 = vmatprep.subr.bf16.mxu0 %v4886
    %5742 = vmatpush1.bf16.msra.mxu0 %v4885
    %5743 = vmatprep.subr.bf16.mxu0 %v4893
    %5744 = vmatpush1.bf16.msra.mxu0 %v4892
    %5745 = vmatprep.subr.bf16.mxu0 %v4900
    %5746 = vmatpush1.bf16.msra.mxu0 %v4899
    %5747 = vmatprep.subr.bf16.mxu0 %v4907
    %5748 = vmatpush1.bf16.msra.mxu0 %v4906
    %5749 = vmatprep.subr.bf16.mxu0 %v4914
    %5750 = vmatpush1.bf16.msra.mxu0 %v4913
    %5751 = vmatprep.subr.bf16.mxu0 %v4921
    %5752 = vmatpush1.bf16.msra.mxu0 %v4920
    %5753 = vmatprep.subr.bf16.mxu0 %v4928
    %5754 = vmatpush1.bf16.msra.mxu0 %v4927
    %5755 = vmatprep.subr.bf16.mxu0 %v4935
    %5756 = vmatpush1.bf16.msra.mxu0 %v4934
    %5757 = vmatprep.mubr.bf16.mxu0 %v2865
    %5758 = vmatmul.mubr.bf16.gmra.mrb[0].mxu0 %v2864
    %v5759 = vpop.f32.mrb[0].mxu0
    %v5760 = vadd.f32 %v3389, %v5759
    %v5761 = vpop.f32.mrb[0].mxu0
    %v5762 = vadd.f32 %v3393, %v5761
    %v5763 = vpop.f32.mrb[0].mxu0
    %v5764 = vadd.f32 %v3389, %v5763
    %v5765 = vpop.f32.mrb[0].mxu0
    %v5766 = vadd.f32 %v3393, %v5765
    %5767 = vdwg.mxu0
    %5768 = vmatprep.subr.bf16.mxu0 %v4942
    %5769 = vmatpush1.bf16.msra.mxu0 %v4941
    %5770 = vmatprep.subr.bf16.mxu0 %v4949
    %5771 = vmatpush1.bf16.msra.mxu0 %v4948
    %5772 = vmatprep.subr.bf16.mxu0 %v4956
    %5773 = vmatpush1.bf16.msra.mxu0 %v4955
    %5774 = vmatprep.subr.bf16.mxu0 %v4963
    %5775 = vmatpush1.bf16.msra.mxu0 %v4962
    %5776 = vmatprep.subr.bf16.mxu0 %v4970
    %5777 = vmatpush1.bf16.msra.mxu0 %v4969
    %5778 = vmatprep.subr.bf16.mxu0 %v4977
    %5779 = vmatpush1.bf16.msra.mxu0 %v4976
    %5780 = vmatprep.subr.bf16.mxu0 %v4984
    %5781 = vmatpush1.bf16.msra.mxu0 %v4983
    %5782 = vmatprep.subr.bf16.mxu0 %v4991
    %5783 = vmatpush1.bf16.msra.mxu0 %v4990
    %5784 = vmatprep.subr.bf16.mxu0 %v4998
    %5785 = vmatpush1.bf16.msra.mxu0 %v4997
    %5786 = vmatprep.subr.bf16.mxu0 %v5005
    %5787 = vmatpush1.bf16.msra.mxu0 %v5004
    %5788 = vmatprep.subr.bf16.mxu0 %v5012
    %5789 = vmatpush1.bf16.msra.mxu0 %v5011
    %5790 = vmatprep.subr.bf16.mxu0 %v5019
    %5791 = vmatpush1.bf16.msra.mxu0 %v5018
    %5792 = vmatprep.subr.bf16.mxu0 %v5026
    %5793 = vmatpush1.bf16.msra.mxu0 %v5025
    %5794 = vmatprep.subr.bf16.mxu0 %v5033
    %5795 = vmatpush1.bf16.msra.mxu0 %v5032
    %5796 = vmatprep.subr.bf16.mxu0 %v5040
    %5797 = vmatpush1.bf16.msra.mxu0 %v5039
    %5798 = vmatprep.subr.bf16.mxu0 %v5047
    %5799 = vmatpush1.bf16.msra.mxu0 %v5046
    %5800 = vmatprep.mubr.bf16.mxu0 %v2867
    %5801 = vmatmul.mubr.bf16.gmra.mrb[0].mxu0 %v2866
    %v5802 = vpop.f32.mrb[0].mxu0
    %v5803 = vadd.f32 %v5760, %v5802
    %v5804 = vpop.f32.mrb[0].mxu0
    %v5805 = vadd.f32 %v5762, %v5804
    %v5806 = vpop.f32.mrb[0].mxu0
    %v5807 = vadd.f32 %v5764, %v5806
    %v5808 = vpop.f32.mrb[0].mxu0
    %v5809 = vadd.f32 %v5766, %v5808
    %5810 = vdwg.mxu0
    %5811 = vmatprep.subr.bf16.mxu0 %v5054
    %5812 = vmatpush1.bf16.msra.mxu0 %v5053
    %5813 = vmatprep.subr.bf16.mxu0 %v5061
    %5814 = vmatpush1.bf16.msra.mxu0 %v5060
    %5815 = vmatprep.subr.bf16.mxu0 %v5068
    %5816 = vmatpush1.bf16.msra.mxu0 %v5067
    %5817 = vmatprep.subr.bf16.mxu0 %v5075
    %5818 = vmatpush1.bf16.msra.mxu0 %v5074
    %5819 = vmatprep.subr.bf16.mxu0 %v5082
    %5820 = vmatpush1.bf16.msra.mxu0 %v5081
    %5821 = vmatprep.subr.bf16.mxu0 %v5089
    %5822 = vmatpush1.bf16.msra.mxu0 %v5088
    %5823 = vmatprep.subr.bf16.mxu0 %v5096
    %5824 = vmatpush1.bf16.msra.mxu0 %v5095
    %5825 = vmatprep.subr.bf16.mxu0 %v5103
    %5826 = vmatpush1.bf16.msra.mxu0 %v5102
    %5827 = vmatprep.subr.bf16.mxu0 %v5110
    %5828 = vmatpush1.bf16.msra.mxu0 %v5109
    %5829 = vmatprep.subr.bf16.mxu0 %v5117
    %5830 = vmatpush1.bf16.msra.mxu0 %v5116
    %5831 = vmatprep.subr.bf16.mxu0 %v5124
    %5832 = vmatpush1.bf16.msra.mxu0 %v5123
    %5833 = vmatprep.subr.bf16.mxu0 %v5131
    %5834 = vmatpush1.bf16.msra.mxu0 %v5130
    %5835 = vmatprep.subr.bf16.mxu0 %v5138
    %5836 = vmatpush1.bf16.msra.mxu0 %v5137
    %5837 = vmatprep.subr.bf16.mxu0 %v5145
    %5838 = vmatpush1.bf16.msra.mxu0 %v5144
    %5839 = vmatprep.subr.bf16.mxu0 %v5152
    %5840 = vmatpush1.bf16.msra.mxu0 %v5151
    %5841 = vmatprep.subr.bf16.mxu0 %v5159
    %5842 = vmatpush1.bf16.msra.mxu0 %v5158
    %5843 = vmatprep.mubr.bf16.mxu0 %v2869
    %5844 = vmatmul.mubr.bf16.gmra.mrb[0].mxu0 %v2868
    %v5845 = vpop.f32.mrb[0].mxu0
    %v5846 = vadd.f32 %v5803, %v5845
    %v5847 = vpop.f32.mrb[0].mxu0
    %v5848 = vadd.f32 %v5805, %v5847
    %v5849 = vpop.f32.mrb[0].mxu0
    %v5850 = vadd.f32 %v5807, %v5849
    %v5851 = vpop.f32.mrb[0].mxu0
    %v5852 = vadd.f32 %v5809, %v5851
    %5853 = vdwg.mxu0
    %5854 = vmatprep.subr.bf16.mxu0 %v5166
    %5855 = vmatpush1.bf16.msra.mxu0 %v5165
    %5856 = vmatprep.subr.bf16.mxu0 %v5173
    %5857 = vmatpush1.bf16.msra.mxu0 %v5172
    %5858 = vmatprep.subr.bf16.mxu0 %v5180
    %5859 = vmatpush1.bf16.msra.mxu0 %v5179
    %5860 = vmatprep.subr.bf16.mxu0 %v5187
    %5861 = vmatpush1.bf16.msra.mxu0 %v5186
    %5862 = vmatprep.subr.bf16.mxu0 %v5194
    %5863 = vmatpush1.bf16.msra.mxu0 %v5193
    %5864 = vmatprep.subr.bf16.mxu0 %v5201
    %5865 = vmatpush1.bf16.msra.mxu0 %v5200
    %5866 = vmatprep.subr.bf16.mxu0 %v5208
    %5867 = vmatpush1.bf16.msra.mxu0 %v5207
    %5868 = vmatprep.subr.bf16.mxu0 %v5215
    %5869 = vmatpush1.bf16.msra.mxu0 %v5214
    %5870 = vmatprep.subr.bf16.mxu0 %v5222
    %5871 = vmatpush1.bf16.msra.mxu0 %v5221
    %5872 = vmatprep.subr.bf16.mxu0 %v5229
    %5873 = vmatpush1.bf16.msra.mxu0 %v5228
    %5874 = vmatprep.subr.bf16.mxu0 %v5236
    %5875 = vmatpush1.bf16.msra.mxu0 %v5235
    %5876 = vmatprep.subr.bf16.mxu0 %v5243
    %5877 = vmatpush1.bf16.msra.mxu0 %v5242
    %5878 = vmatprep.subr.bf16.mxu0 %v5250
    %5879 = vmatpush1.bf16.msra.mxu0 %v5249
    %5880 = vmatprep.subr.bf16.mxu0 %v5257
    %5881 = vmatpush1.bf16.msra.mxu0 %v5256
    %5882 = vmatprep.subr.bf16.mxu0 %v5264
    %5883 = vmatpush1.bf16.msra.mxu0 %v5263
    %5884 = vmatprep.subr.bf16.mxu0 %v5271
    %5885 = vmatpush1.bf16.msra.mxu0 %v5270
    %5886 = vmatprep.mubr.bf16.mxu0 %v2871
    %5887 = vmatmul.mubr.bf16.gmra.mrb[0].mxu0 %v2870
    %v5888 = vpop.f32.mrb[0].mxu0
    %v5889 = vadd.f32 %v5846, %v5888
    %v5890 = vpop.f32.mrb[0].mxu0
    %v5891 = vadd.f32 %v5848, %v5890
    %v5892 = vpop.f32.mrb[0].mxu0
    %v5893 = vadd.f32 %v5850, %v5892
    %v5894 = vpop.f32.mrb[0].mxu0
    %v5895 = vadd.f32 %v5852, %v5894
    %5896 = vdwg.mxu0
    %5897 = vmatprep.subr.bf16.mxu0 %v4832
    %5898 = vmatpush1.bf16.msra.mxu0 %v4831
    %5899 = vmatprep.subr.bf16.mxu0 %v4839
    %5900 = vmatpush1.bf16.msra.mxu0 %v4838
    %5901 = vmatprep.subr.bf16.mxu0 %v4846
    %5902 = vmatpush1.bf16.msra.mxu0 %v4845
    %5903 = vmatprep.subr.bf16.mxu0 %v4853
    %5904 = vmatpush1.bf16.msra.mxu0 %v4852
    %5905 = vmatprep.subr.bf16.mxu0 %v4860
    %5906 = vmatpush1.bf16.msra.mxu0 %v4859
    %5907 = vmatprep.subr.bf16.mxu0 %v4867
    %5908 = vmatpush1.bf16.msra.mxu0 %v4866
    %5909 = vmatprep.subr.bf16.mxu0 %v4874
    %5910 = vmatpush1.bf16.msra.mxu0 %v4873
    %5911 = vmatprep.subr.bf16.mxu0 %v4881
    %5912 = vmatpush1.bf16.msra.mxu0 %v4880
    %5913 = vmatprep.subr.bf16.mxu0 %v4888
    %5914 = vmatpush1.bf16.msra.mxu0 %v4887
    %5915 = vmatprep.subr.bf16.mxu0 %v4895
    %5916 = vmatpush1.bf16.msra.mxu0 %v4894
    %5917 = vmatprep.subr.bf16.mxu0 %v4902
    %5918 = vmatpush1.bf16.msra.mxu0 %v4901
    %5919 = vmatprep.subr.bf16.mxu0 %v4909
    %5920 = vmatpush1.bf16.msra.mxu0 %v4908
    %5921 = vmatprep.subr.bf16.mxu0 %v4916
    %5922 = vmatpush1.bf16.msra.mxu0 %v4915
    %5923 = vmatprep.subr.bf16.mxu0 %v4923
    %5924 = vmatpush1.bf16.msra.mxu0 %v4922
    %5925 = vmatprep.subr.bf16.mxu0 %v4930
    %5926 = vmatpush1.bf16.msra.mxu0 %v4929
    %5927 = vmatprep.subr.bf16.mxu0 %v4937
    %5928 = vmatpush1.bf16.msra.mxu0 %v4936
    %5929 = vmatprep.mubr.bf16.mxu0 %v2865
    %5930 = vmatmul.mubr.bf16.gmra.mrb[0].mxu0 %v2864
    %v5931 = vpop.f32.mrb[0].mxu0
    %v5932 = vadd.f32 %v3397, %v5931
    %v5933 = vpop.f32.mrb[0].mxu0
    %v5934 = vadd.f32 %v3401, %v5933
    %v5935 = vpop.f32.mrb[0].mxu0
    %v5936 = vadd.f32 %v3397, %v5935
    %v5937 = vpop.f32.mrb[0].mxu0
    %v5938 = vadd.f32 %v3401, %v5937
    %5939 = vdwg.mxu0
    %5940 = vmatprep.subr.bf16.mxu0 %v4944
    %5941 = vmatpush1.bf16.msra.mxu0 %v4943
    %5942 = vmatprep.subr.bf16.mxu0 %v4951
    %5943 = vmatpush1.bf16.msra.mxu0 %v4950
    %5944 = vmatprep.subr.bf16.mxu0 %v4958
    %5945 = vmatpush1.bf16.msra.mxu0 %v4957
    %5946 = vmatprep.subr.bf16.mxu0 %v4965
    %5947 = vmatpush1.bf16.msra.mxu0 %v4964
    %5948 = vmatprep.subr.bf16.mxu0 %v4972
    %5949 = vmatpush1.bf16.msra.mxu0 %v4971
    %5950 = vmatprep.subr.bf16.mxu0 %v4979
    %5951 = vmatpush1.bf16.msra.mxu0 %v4978
    %5952 = vmatprep.subr.bf16.mxu0 %v4986
    %5953 = vmatpush1.bf16.msra.mxu0 %v4985
    %5954 = vmatprep.subr.bf16.mxu0 %v4993
    %5955 = vmatpush1.bf16.msra.mxu0 %v4992
    %5956 = vmatprep.subr.bf16.mxu0 %v5000
    %5957 = vmatpush1.bf16.msra.mxu0 %v4999
    %5958 = vmatprep.subr.bf16.mxu0 %v5007
    %5959 = vmatpush1.bf16.msra.mxu0 %v5006
    %5960 = vmatprep.subr.bf16.mxu0 %v5014
    %5961 = vmatpush1.bf16.msra.mxu0 %v5013
    %5962 = vmatprep.subr.bf16.mxu0 %v5021
    %5963 = vmatpush1.bf16.msra.mxu0 %v5020
    %5964 = vmatprep.subr.bf16.mxu0 %v5028
    %5965 = vmatpush1.bf16.msra.mxu0 %v5027
    %5966 = vmatprep.subr.bf16.mxu0 %v5035
    %5967 = vmatpush1.bf16.msra.mxu0 %v5034
    %5968 = vmatprep.subr.bf16.mxu0 %v5042
    %5969 = vmatpush1.bf16.msra.mxu0 %v5041
    %5970 = vmatprep.subr.bf16.mxu0 %v5049
    %5971 = vmatpush1.bf16.msra.mxu0 %v5048
    %5972 = vmatprep.mubr.bf16.mxu0 %v2867
    %5973 = vmatmul.mubr.bf16.gmra.mrb[0].mxu0 %v2866
    %v5974 = vpop.f32.mrb[0].mxu0
    %v5975 = vadd.f32 %v5932, %v5974
    %v5976 = vpop.f32.mrb[0].mxu0
    %v5977 = vadd.f32 %v5934, %v5976
    %v5978 = vpop.f32.mrb[0].mxu0
    %v5979 = vadd.f32 %v5936, %v5978
    %v5980 = vpop.f32.mrb[0].mxu0
    %v5981 = vadd.f32 %v5938, %v5980
    %5982 = vdwg.mxu0
    %5983 = vmatprep.subr.bf16.mxu0 %v5056
    %5984 = vmatpush1.bf16.msra.mxu0 %v5055
    %5985 = vmatprep.subr.bf16.mxu0 %v5063
    %5986 = vmatpush1.bf16.msra.mxu0 %v5062
    %5987 = vmatprep.subr.bf16.mxu0 %v5070
    %5988 = vmatpush1.bf16.msra.mxu0 %v5069
    %5989 = vmatprep.subr.bf16.mxu0 %v5077
    %5990 = vmatpush1.bf16.msra.mxu0 %v5076
    %5991 = vmatprep.subr.bf16.mxu0 %v5084
    %5992 = vmatpush1.bf16.msra.mxu0 %v5083
    %5993 = vmatprep.subr.bf16.mxu0 %v5091
    %5994 = vmatpush1.bf16.msra.mxu0 %v5090
    %5995 = vmatprep.subr.bf16.mxu0 %v5098
    %5996 = vmatpush1.bf16.msra.mxu0 %v5097
    %5997 = vmatprep.subr.bf16.mxu0 %v5105
    %5998 = vmatpush1.bf16.msra.mxu0 %v5104
    %5999 = vmatprep.subr.bf16.mxu0 %v5112
    %6000 = vmatpush1.bf16.msra.mxu0 %v5111
    %6001 = vmatprep.subr.bf16.mxu0 %v5119
    %6002 = vmatpush1.bf16.msra.mxu0 %v5118
    %6003 = vmatprep.subr.bf16.mxu0 %v5126
    %6004 = vmatpush1.bf16.msra.mxu0 %v5125
    %6005 = vmatprep.subr.bf16.mxu0 %v5133
    %6006 = vmatpush1.bf16.msra.mxu0 %v5132
    %6007 = vmatprep.subr.bf16.mxu0 %v5140
    %6008 = vmatpush1.bf16.msra.mxu0 %v5139
    %6009 = vmatprep.subr.bf16.mxu0 %v5147
    %6010 = vmatpush1.bf16.msra.mxu0 %v5146
    %6011 = vmatprep.subr.bf16.mxu0 %v5154
    %6012 = vmatpush1.bf16.msra.mxu0 %v5153
    %6013 = vmatprep.subr.bf16.mxu0 %v5161
    %6014 = vmatpush1.bf16.msra.mxu0 %v5160
    %6015 = vmatprep.mubr.bf16.mxu0 %v2869
    %6016 = vmatmul.mubr.bf16.gmra.mrb[0].mxu0 %v2868
    %v6017 = vpop.f32.mrb[0].mxu0
    %v6018 = vadd.f32 %v5975, %v6017
    %v6019 = vpop.f32.mrb[0].mxu0
    %v6020 = vadd.f32 %v5977, %v6019
    %v6021 = vpop.f32.mrb[0].mxu0
    %v6022 = vadd.f32 %v5979, %v6021
    %v6023 = vpop.f32.mrb[0].mxu0
    %v6024 = vadd.f32 %v5981, %v6023
    %6025 = vdwg.mxu0
    %6026 = vmatprep.subr.bf16.mxu0 %v5168
    %6027 = vmatpush1.bf16.msra.mxu0 %v5167
    %6028 = vmatprep.subr.bf16.mxu0 %v5175
    %6029 = vmatpush1.bf16.msra.mxu0 %v5174
    %6030 = vmatprep.subr.bf16.mxu0 %v5182
    %6031 = vmatpush1.bf16.msra.mxu0 %v5181
    %6032 = vmatprep.subr.bf16.mxu0 %v5189
    %6033 = vmatpush1.bf16.msra.mxu0 %v5188
    %6034 = vmatprep.subr.bf16.mxu0 %v5196
    %6035 = vmatpush1.bf16.msra.mxu0 %v5195
    %6036 = vmatprep.subr.bf16.mxu0 %v5203
    %6037 = vmatpush1.bf16.msra.mxu0 %v5202
    %6038 = vmatprep.subr.bf16.mxu0 %v5210
    %6039 = vmatpush1.bf16.msra.mxu0 %v5209
    %6040 = vmatprep.subr.bf16.mxu0 %v5217
    %6041 = vmatpush1.bf16.msra.mxu0 %v5216
    %6042 = vmatprep.subr.bf16.mxu0 %v5224
    %6043 = vmatpush1.bf16.msra.mxu0 %v5223
    %6044 = vmatprep.subr.bf16.mxu0 %v5231
    %6045 = vmatpush1.bf16.msra.mxu0 %v5230
    %6046 = vmatprep.subr.bf16.mxu0 %v5238
    %6047 = vmatpush1.bf16.msra.mxu0 %v5237
    %6048 = vmatprep.subr.bf16.mxu0 %v5245
    %6049 = vmatpush1.bf16.msra.mxu0 %v5244
    %6050 = vmatprep.subr.bf16.mxu0 %v5252
    %6051 = vmatpush1.bf16.msra.mxu0 %v5251
    %6052 = vmatprep.subr.bf16.mxu0 %v5259
    %6053 = vmatpush1.bf16.msra.mxu0 %v5258
    %6054 = vmatprep.subr.bf16.mxu0 %v5266
    %6055 = vmatpush1.bf16.msra.mxu0 %v5265
    %6056 = vmatprep.subr.bf16.mxu0 %v5273
    %6057 = vmatpush1.bf16.msra.mxu0 %v5272
    %6058 = vmatprep.mubr.bf16.mxu0 %v2871
    %6059 = vmatmul.mubr.bf16.gmra.mrb[0].mxu0 %v2870
    %v6060 = vpop.f32.mrb[0].mxu0
    %v6061 = vadd.f32 %v6018, %v6060
    %v6062 = vpop.f32.mrb[0].mxu0
    %v6063 = vadd.f32 %v6020, %v6062
    %v6064 = vpop.f32.mrb[0].mxu0
    %v6065 = vadd.f32 %v6022, %v6064
    %v6066 = vpop.f32.mrb[0].mxu0
    %v6067 = vadd.f32 %v6024, %v6066
    %6068 = vdwg.mxu0
    %6069 = vmatprep.subr.bf16.mxu0 %v4834
    %6070 = vmatpush1.bf16.msra.mxu0 %v4833
    %6071 = vmatprep.subr.bf16.mxu0 %v4841
    %6072 = vmatpush1.bf16.msra.mxu0 %v4840
    %6073 = vmatprep.subr.bf16.mxu0 %v4848
    %6074 = vmatpush1.bf16.msra.mxu0 %v4847
    %6075 = vmatprep.subr.bf16.mxu0 %v4855
    %6076 = vmatpush1.bf16.msra.mxu0 %v4854
    %6077 = vmatprep.subr.bf16.mxu0 %v4862
    %6078 = vmatpush1.bf16.msra.mxu0 %v4861
    %6079 = vmatprep.subr.bf16.mxu0 %v4869
    %6080 = vmatpush1.bf16.msra.mxu0 %v4868
    %6081 = vmatprep.subr.bf16.mxu0 %v4876
    %6082 = vmatpush1.bf16.msra.mxu0 %v4875
    %6083 = vmatprep.subr.bf16.mxu0 %v4883
    %6084 = vmatpush1.bf16.msra.mxu0 %v4882
    %6085 = vmatprep.subr.bf16.mxu0 %v4890
    %6086 = vmatpush1.bf16.msra.mxu0 %v4889
    %6087 = vmatprep.subr.bf16.mxu0 %v4897
    %6088 = vmatpush1.bf16.msra.mxu0 %v4896
    %6089 = vmatprep.subr.bf16.mxu0 %v4904
    %6090 = vmatpush1.bf16.msra.mxu0 %v4903
    %6091 = vmatprep.subr.bf16.mxu0 %v4911
    %6092 = vmatpush1.bf16.msra.mxu0 %v4910
    %6093 = vmatprep.subr.bf16.mxu0 %v4918
    %6094 = vmatpush1.bf16.msra.mxu0 %v4917
    %6095 = vmatprep.subr.bf16.mxu0 %v4925
    %6096 = vmatpush1.bf16.msra.mxu0 %v4924
    %6097 = vmatprep.subr.bf16.mxu0 %v4932
    %6098 = vmatpush1.bf16.msra.mxu0 %v4931
    %6099 = vmatprep.subr.bf16.mxu0 %v4939
    %6100 = vmatpush1.bf16.msra.mxu0 %v4938
    %6101 = vmatprep.mubr.bf16.mxu0 %v2865
    %6102 = vmatmul.mubr.bf16.gmra.mrb[0].mxu0 %v2864
    %v6103 = vpop.f32.mrb[0].mxu0
    %v6104 = vadd.f32 %v3405, %v6103
    %v6105 = vpop.f32.mrb[0].mxu0
    %v6106 = vadd.f32 %v3409, %v6105
    %v6107 = vpop.f32.mrb[0].mxu0
    %v6108 = vadd.f32 %v3405, %v6107
    %v6109 = vpop.f32.mrb[0].mxu0
    %v6110 = vadd.f32 %v3409, %v6109
    %6111 = vdwg.mxu0
    %6112 = vmatprep.subr.bf16.mxu0 %v4946
    %6113 = vmatpush1.bf16.msra.mxu0 %v4945
    %6114 = vmatprep.subr.bf16.mxu0 %v4953
    %6115 = vmatpush1.bf16.msra.mxu0 %v4952
    %6116 = vmatprep.subr.bf16.mxu0 %v4960
    %6117 = vmatpush1.bf16.msra.mxu0 %v4959
    %6118 = vmatprep.subr.bf16.mxu0 %v4967
    %6119 = vmatpush1.bf16.msra.mxu0 %v4966
    %6120 = vmatprep.subr.bf16.mxu0 %v4974
    %6121 = vmatpush1.bf16.msra.mxu0 %v4973
    %6122 = vmatprep.subr.bf16.mxu0 %v4981
    %6123 = vmatpush1.bf16.msra.mxu0 %v4980
    %6124 = vmatprep.subr.bf16.mxu0 %v4988
    %6125 = vmatpush1.bf16.msra.mxu0 %v4987
    %6126 = vmatprep.subr.bf16.mxu0 %v4995
    %6127 = vmatpush1.bf16.msra.mxu0 %v4994
    %6128 = vmatprep.subr.bf16.mxu0 %v5002
    %6129 = vmatpush1.bf16.msra.mxu0 %v5001
    %6130 = vmatprep.subr.bf16.mxu0 %v5009
    %6131 = vmatpush1.bf16.msra.mxu0 %v5008
    %6132 = vmatprep.subr.bf16.mxu0 %v5016
    %6133 = vmatpush1.bf16.msra.mxu0 %v5015
    %6134 = vmatprep.subr.bf16.mxu0 %v5023
    %6135 = vmatpush1.bf16.msra.mxu0 %v5022
    %6136 = vmatprep.subr.bf16.mxu0 %v5030
    %6137 = vmatpush1.bf16.msra.mxu0 %v5029
    %6138 = vmatprep.subr.bf16.mxu0 %v5037
    %6139 = vmatpush1.bf16.msra.mxu0 %v5036
    %6140 = vmatprep.subr.bf16.mxu0 %v5044
    %6141 = vmatpush1.bf16.msra.mxu0 %v5043
    %6142 = vmatprep.subr.bf16.mxu0 %v5051
    %6143 = vmatpush1.bf16.msra.mxu0 %v5050
    %6144 = vmatprep.mubr.bf16.mxu0 %v2867
    %6145 = vmatmul.mubr.bf16.gmra.mrb[0].mxu0 %v2866
    %v6146 = vpop.f32.mrb[0].mxu0
    %v6147 = vadd.f32 %v6104, %v6146
    %v6148 = vpop.f32.mrb[0].mxu0
    %v6149 = vadd.f32 %v6106, %v6148
    %v6150 = vpop.f32.mrb[0].mxu0
    %v6151 = vadd.f32 %v6108, %v6150
    %v6152 = vpop.f32.mrb[0].mxu0
    %v6153 = vadd.f32 %v6110, %v6152
    %6154 = vdwg.mxu0
    %6155 = vmatprep.subr.bf16.mxu0 %v5058
    %6156 = vmatpush1.bf16.msra.mxu0 %v5057
    %6157 = vmatprep.subr.bf16.mxu0 %v5065
    %6158 = vmatpush1.bf16.msra.mxu0 %v5064
    %6159 = vmatprep.subr.bf16.mxu0 %v5072
    %6160 = vmatpush1.bf16.msra.mxu0 %v5071
    %6161 = vmatprep.subr.bf16.mxu0 %v5079
    %6162 = vmatpush1.bf16.msra.mxu0 %v5078
    %6163 = vmatprep.subr.bf16.mxu0 %v5086
    %6164 = vmatpush1.bf16.msra.mxu0 %v5085
    %6165 = vmatprep.subr.bf16.mxu0 %v5093
    %6166 = vmatpush1.bf16.msra.mxu0 %v5092
    %6167 = vmatprep.subr.bf16.mxu0 %v5100
    %6168 = vmatpush1.bf16.msra.mxu0 %v5099
    %6169 = vmatprep.subr.bf16.mxu0 %v5107
    %6170 = vmatpush1.bf16.msra.mxu0 %v5106
    %6171 = vmatprep.subr.bf16.mxu0 %v5114
    %6172 = vmatpush1.bf16.msra.mxu0 %v5113
    %6173 = vmatprep.subr.bf16.mxu0 %v5121
    %6174 = vmatpush1.bf16.msra.mxu0 %v5120
    %6175 = vmatprep.subr.bf16.mxu0 %v5128
    %6176 = vmatpush1.bf16.msra.mxu0 %v5127
    %6177 = vmatprep.subr.bf16.mxu0 %v5135
    %6178 = vmatpush1.bf16.msra.mxu0 %v5134
    %6179 = vmatprep.subr.bf16.mxu0 %v5142
    %6180 = vmatpush1.bf16.msra.mxu0 %v5141
    %6181 = vmatprep.subr.bf16.mxu0 %v5149
    %6182 = vmatpush1.bf16.msra.mxu0 %v5148
    %6183 = vmatprep.subr.bf16.mxu0 %v5156
    %6184 = vmatpush1.bf16.msra.mxu0 %v5155
    %6185 = vmatprep.subr.bf16.mxu0 %v5163
    %6186 = vmatpush1.bf16.msra.mxu0 %v5162
    %6187 = vmatprep.mubr.bf16.mxu0 %v2869
    %6188 = vmatmul.mubr.bf16.gmra.mrb[0].mxu0 %v2868
    %v6189 = vpop.f32.mrb[0].mxu0
    %v6190 = vadd.f32 %v6147, %v6189
    %v6191 = vpop.f32.mrb[0].mxu0
    %v6192 = vadd.f32 %v6149, %v6191
    %v6193 = vpop.f32.mrb[0].mxu0
    %v6194 = vadd.f32 %v6151, %v6193
    %v6195 = vpop.f32.mrb[0].mxu0
    %v6196 = vadd.f32 %v6153, %v6195
    %6197 = vdwg.mxu0
    %6198 = vmatprep.subr.bf16.mxu0 %v5170
    %6199 = vmatpush1.bf16.msra.mxu0 %v5169
    %6200 = vmatprep.subr.bf16.mxu0 %v5177
    %6201 = vmatpush1.bf16.msra.mxu0 %v5176
    %6202 = vmatprep.subr.bf16.mxu0 %v5184
    %6203 = vmatpush1.bf16.msra.mxu0 %v5183
    %6204 = vmatprep.subr.bf16.mxu0 %v5191
    %6205 = vmatpush1.bf16.msra.mxu0 %v5190
    %6206 = vmatprep.subr.bf16.mxu0 %v5198
    %6207 = vmatpush1.bf16.msra.mxu0 %v5197
    %6208 = vmatprep.subr.bf16.mxu0 %v5205
    %6209 = vmatpush1.bf16.msra.mxu0 %v5204
    %6210 = vmatprep.subr.bf16.mxu0 %v5212
    %6211 = vmatpush1.bf16.msra.mxu0 %v5211
    %6212 = vmatprep.subr.bf16.mxu0 %v5219
    %6213 = vmatpush1.bf16.msra.mxu0 %v5218
    %6214 = vmatprep.subr.bf16.mxu0 %v5226
    %6215 = vmatpush1.bf16.msra.mxu0 %v5225
    %6216 = vmatprep.subr.bf16.mxu0 %v5233
    %6217 = vmatpush1.bf16.msra.mxu0 %v5232
    %6218 = vmatprep.subr.bf16.mxu0 %v5240
    %6219 = vmatpush1.bf16.msra.mxu0 %v5239
    %6220 = vmatprep.subr.bf16.mxu0 %v5247
    %6221 = vmatpush1.bf16.msra.mxu0 %v5246
    %6222 = vmatprep.subr.bf16.mxu0 %v5254
    %6223 = vmatpush1.bf16.msra.mxu0 %v5253
    %6224 = vmatprep.subr.bf16.mxu0 %v5261
    %6225 = vmatpush1.bf16.msra.mxu0 %v5260
    %6226 = vmatprep.subr.bf16.mxu0 %v5268
    %6227 = vmatpush1.bf16.msra.mxu0 %v5267
    %6228 = vmatprep.subr.bf16.mxu0 %v5275
    %6229 = vmatpush1.bf16.msra.mxu0 %v5274
    %6230 = vmatprep.mubr.bf16.mxu0 %v2871
    %6231 = vmatmul.mubr.bf16.gmra.mrb[0].mxu0 %v2870
    %v6232 = vpop.f32.mrb[0].mxu0
    %v6233 = vadd.f32 %v6190, %v6232
    %v6234 = vpop.f32.mrb[0].mxu0
    %v6235 = vadd.f32 %v6192, %v6234
    %v6236 = vpop.f32.mrb[0].mxu0
    %v6237 = vadd.f32 %v6194, %v6236
    %v6238 = vpop.f32.mrb[0].mxu0
    %v6239 = vadd.f32 %v6196, %v6238
    %6240 = vdwg.mxu0
    %6241 = vmatprep.subr.bf16.mxu0 0
    %6242 = vmatpush1.bf16.msra.mxu0 %v4835
    %6243 = vmatprep.subr.bf16.mxu0 0
    %6244 = vmatpush1.bf16.msra.mxu0 %v4842
    %6245 = vmatprep.subr.bf16.mxu0 0
    %6246 = vmatpush1.bf16.msra.mxu0 %v4849
    %6247 = vmatprep.subr.bf16.mxu0 0
    %6248 = vmatpush1.bf16.msra.mxu0 %v4856
    %6249 = vmatprep.subr.bf16.mxu0 0
    %6250 = vmatpush1.bf16.msra.mxu0 %v4863
    %6251 = vmatprep.subr.bf16.mxu0 0
    %6252 = vmatpush1.bf16.msra.mxu0 %v4870
    %6253 = vmatprep.subr.bf16.mxu0 0
    %6254 = vmatpush1.bf16.msra.mxu0 %v4877
    %6255 = vmatprep.subr.bf16.mxu0 0
    %6256 = vmatpush1.bf16.msra.mxu0 %v4884
    %6257 = vmatprep.subr.bf16.mxu0 0
    %6258 = vmatpush1.bf16.msra.mxu0 %v4891
    %6259 = vmatprep.subr.bf16.mxu0 0
    %6260 = vmatpush1.bf16.msra.mxu0 %v4898
    %6261 = vmatprep.subr.bf16.mxu0 0
    %6262 = vmatpush1.bf16.msra.mxu0 %v4905
    %6263 = vmatprep.subr.bf16.mxu0 0
    %6264 = vmatpush1.bf16.msra.mxu0 %v4912
    %6265 = vmatprep.subr.bf16.mxu0 0
    %6266 = vmatpush1.bf16.msra.mxu0 %v4919
    %6267 = vmatprep.subr.bf16.mxu0 0
    %6268 = vmatpush1.bf16.msra.mxu0 %v4926
    %6269 = vmatprep.subr.bf16.mxu0 0
    %6270 = vmatpush1.bf16.msra.mxu0 %v4933
    %6271 = vmatprep.subr.bf16.mxu0 0
    %6272 = vmatpush1.bf16.msra.mxu0 %v4940
    %6273 = vmatprep.mubr.bf16.mxu0 %v2865
    %6274 = vmatmul.mubr.bf16.gmra.mrb[0].mxu0 %v2864
    %v6275 = vpop.f32.mrb[0].mxu0
    %v6276 = vadd.f32 %v3413, %v6275
    %v6277 = vpop.f32.mrb[0].mxu0
    %v6278 = vpop.f32.mrb[0].mxu0
    %v6279 = vadd.f32 %v3413, %v6278
    %v6280 = vpop.f32.mrb[0].mxu0
    %6281 = vdwg.mxu0
    %6282 = vmatprep.subr.bf16.mxu0 0
    %6283 = vmatpush1.bf16.msra.mxu0 %v4947
    %6284 = vmatprep.subr.bf16.mxu0 0
    %6285 = vmatpush1.bf16.msra.mxu0 %v4954
    %6286 = vmatprep.subr.bf16.mxu0 0
    %6287 = vmatpush1.bf16.msra.mxu0 %v4961
    %6288 = vmatprep.subr.bf16.mxu0 0
    %6289 = vmatpush1.bf16.msra.mxu0 %v4968
    %6290 = vmatprep.subr.bf16.mxu0 0
    %6291 = vmatpush1.bf16.msra.mxu0 %v4975
    %6292 = vmatprep.subr.bf16.mxu0 0
    %6293 = vmatpush1.bf16.msra.mxu0 %v4982
    %6294 = vmatprep.subr.bf16.mxu0 0
    %6295 = vmatpush1.bf16.msra.mxu0 %v4989
    %6296 = vmatprep.subr.bf16.mxu0 0
    %6297 = vmatpush1.bf16.msra.mxu0 %v4996
    %6298 = vmatprep.subr.bf16.mxu0 0
    %6299 = vmatpush1.bf16.msra.mxu0 %v5003
    %6300 = vmatprep.subr.bf16.mxu0 0
    %6301 = vmatpush1.bf16.msra.mxu0 %v5010
    %6302 = vmatprep.subr.bf16.mxu0 0
    %6303 = vmatpush1.bf16.msra.mxu0 %v5017
    %6304 = vmatprep.subr.bf16.mxu0 0
    %6305 = vmatpush1.bf16.msra.mxu0 %v5024
    %6306 = vmatprep.subr.bf16.mxu0 0
    %6307 = vmatpush1.bf16.msra.mxu0 %v5031
    %6308 = vmatprep.subr.bf16.mxu0 0
    %6309 = vmatpush1.bf16.msra.mxu0 %v5038
    %6310 = vmatprep.subr.bf16.mxu0 0
    %6311 = vmatpush1.bf16.msra.mxu0 %v5045
    %6312 = vmatprep.subr.bf16.mxu0 0
    %6313 = vmatpush1.bf16.msra.mxu0 %v5052
    %6314 = vmatprep.mubr.bf16.mxu0 %v2867
    %6315 = vmatmul.mubr.bf16.gmra.mrb[0].mxu0 %v2866
    %v6316 = vpop.f32.mrb[0].mxu0
    %v6317 = vadd.f32 %v6276, %v6316
    %v6318 = vpop.f32.mrb[0].mxu0
    %v6319 = vpop.f32.mrb[0].mxu0
    %v6320 = vadd.f32 %v6279, %v6319
    %v6321 = vpop.f32.mrb[0].mxu0
    %6322 = vdwg.mxu0
    %6323 = vmatprep.subr.bf16.mxu0 0
    %6324 = vmatpush1.bf16.msra.mxu0 %v5059
    %6325 = vmatprep.subr.bf16.mxu0 0
    %6326 = vmatpush1.bf16.msra.mxu0 %v5066
    %6327 = vmatprep.subr.bf16.mxu0 0
    %6328 = vmatpush1.bf16.msra.mxu0 %v5073
    %6329 = vmatprep.subr.bf16.mxu0 0
    %6330 = vmatpush1.bf16.msra.mxu0 %v5080
    %6331 = vmatprep.subr.bf16.mxu0 0
    %6332 = vmatpush1.bf16.msra.mxu0 %v5087
    %6333 = vmatprep.subr.bf16.mxu0 0
    %6334 = vmatpush1.bf16.msra.mxu0 %v5094
    %6335 = vmatprep.subr.bf16.mxu0 0
    %6336 = vmatpush1.bf16.msra.mxu0 %v5101
    %6337 = vmatprep.subr.bf16.mxu0 0
    %6338 = vmatpush1.bf16.msra.mxu0 %v5108
    %6339 = vmatprep.subr.bf16.mxu0 0
    %6340 = vmatpush1.bf16.msra.mxu0 %v5115
    %6341 = vmatprep.subr.bf16.mxu0 0
    %6342 = vmatpush1.bf16.msra.mxu0 %v5122
    %6343 = vmatprep.subr.bf16.mxu0 0
    %6344 = vmatpush1.bf16.msra.mxu0 %v5129
    %6345 = vmatprep.subr.bf16.mxu0 0
    %6346 = vmatpush1.bf16.msra.mxu0 %v5136
    %6347 = vmatprep.subr.bf16.mxu0 0
    %6348 = vmatpush1.bf16.msra.mxu0 %v5143
    %6349 = vmatprep.subr.bf16.mxu0 0
    %6350 = vmatpush1.bf16.msra.mxu0 %v5150
    %6351 = vmatprep.subr.bf16.mxu0 0
    %6352 = vmatpush1.bf16.msra.mxu0 %v5157
    %6353 = vmatprep.subr.bf16.mxu0 0
    %6354 = vmatpush1.bf16.msra.mxu0 %v5164
    %6355 = vmatprep.mubr.bf16.mxu0 %v2869
    %6356 = vmatmul.mubr.bf16.gmra.mrb[0].mxu0 %v2868
    %v6357 = vpop.f32.mrb[0].mxu0
    %v6358 = vadd.f32 %v6317, %v6357
    %v6359 = vpop.f32.mrb[0].mxu0
    %v6360 = vpop.f32.mrb[0].mxu0
    %v6361 = vadd.f32 %v6320, %v6360
    %v6362 = vpop.f32.mrb[0].mxu0
    %6363 = vdwg.mxu0
    %6364 = vmatprep.subr.bf16.mxu0 0
    %6365 = vmatpush1.bf16.msra.mxu0 %v5171
    %6366 = vmatprep.subr.bf16.mxu0 0
    %6367 = vmatpush1.bf16.msra.mxu0 %v5178
    %6368 = vmatprep.subr.bf16.mxu0 0
    %6369 = vmatpush1.bf16.msra.mxu0 %v5185
    %6370 = vmatprep.subr.bf16.mxu0 0
    %6371 = vmatpush1.bf16.msra.mxu0 %v5192
    %6372 = vmatprep.subr.bf16.mxu0 0
    %6373 = vmatpush1.bf16.msra.mxu0 %v5199
    %6374 = vmatprep.subr.bf16.mxu0 0
    %6375 = vmatpush1.bf16.msra.mxu0 %v5206
    %6376 = vmatprep.subr.bf16.mxu0 0
    %6377 = vmatpush1.bf16.msra.mxu0 %v5213
    %6378 = vmatprep.subr.bf16.mxu0 0
    %6379 = vmatpush1.bf16.msra.mxu0 %v5220
    %6380 = vmatprep.subr.bf16.mxu0 0
    %6381 = vmatpush1.bf16.msra.mxu0 %v5227
    %6382 = vmatprep.subr.bf16.mxu0 0
    %6383 = vmatpush1.bf16.msra.mxu0 %v5234
    %6384 = vmatprep.subr.bf16.mxu0 0
    %6385 = vmatpush1.bf16.msra.mxu0 %v5241
    %6386 = vmatprep.subr.bf16.mxu0 0
    %6387 = vmatpush1.bf16.msra.mxu0 %v5248
    %6388 = vmatprep.subr.bf16.mxu0 0
    %6389 = vmatpush1.bf16.msra.mxu0 %v5255
    %6390 = vmatprep.subr.bf16.mxu0 0
    %6391 = vmatpush1.bf16.msra.mxu0 %v5262
    %6392 = vmatprep.subr.bf16.mxu0 0
    %6393 = vmatpush1.bf16.msra.mxu0 %v5269
    %6394 = vmatprep.subr.bf16.mxu0 0
    %6395 = vmatpush1.bf16.msra.mxu0 %v5276
    %6396 = vmatprep.mubr.bf16.mxu0 %v2871
    %6397 = vmatmul.mubr.bf16.gmra.mrb[0].mxu0 %v2870
    %v6398 = vpop.f32.mrb[0].mxu0
    %v6399 = vadd.f32 %v6358, %v6398
    %v6400 = vpop.f32.mrb[0].mxu0
    %v6401 = vpop.f32.mrb[0].mxu0
    %v6402 = vadd.f32 %v6361, %v6401
    %v6403 = vpop.f32.mrb[0].mxu0
    %6404 = vdwg.mxu0
    %v6405 = vtanh.pop %v5889
    %v6406 = vtanh.pop %v5891
    %v6407 = vtanh.pop %v6061
    %v6408 = vtanh.pop %v6063
    %v6409 = vtanh.pop %v6233
    %v6410 = vtanh.pop %v6235
    %v6411 = vtanh.pop %v6399
    %v6412 = vtanh.pop %v5893
    %v6413 = vtanh.pop %v5895
    %v6414 = vtanh.pop %v6065
    %v6415 = vtanh.pop %v6067
    %v6416 = vtanh.pop %v6237
    %v6417 = vtanh.pop %v6239
    %v6418 = vtanh.pop %v6402
    %v6419 = vpack.c.bf16 %v6412, %v6405
    %v6420 = vpack.c.bf16 %v6413, %v6406
    %v6421 = vpack.c.bf16 %v6414, %v6407
    %v6422 = vpack.c.bf16 %v6415, %v6408
    %v6423 = vpack.c.bf16 %v6416, %v6409
    %v6424 = vpack.c.bf16 %v6417, %v6410
    %v6425 = vpack.c.bf16 %v6418, %v6411
    %v6433 = vunpack.c.l.b16 %v6419
    %v6434 = vunpack.c.l.b16 %v6420
    %v6435 = vunpack.c.l.b16 %v6421
    %v6436 = vunpack.c.l.b16 %v6422
    %v6437 = vunpack.c.l.b16 %v6423
    %v6438 = vunpack.c.l.b16 %v6424
    %v6439 = vunpack.c.l.b16 %v6425
    %v6440 = vunpack.c.h.b16 %v6419
    %v6441 = vunpack.c.h.b16 %v6420
    %v6442 = vunpack.c.h.b16 %v6421
    %v6443 = vunpack.c.h.b16 %v6422
    %v6444 = vunpack.c.h.b16 %v6423
    %v6445 = vunpack.c.h.b16 %v6424
    %v6446 = vunpack.c.h.b16 %v6425
    %v6447 = vpack.c.b16 %v6434, %v6433
    %v6448 = vpack.c.b16 %v6436, %v6435
    %v6449 = vpack.c.b16 %v6438, %v6437
    %v6450 = vpack.c.b16 %v6439, %v6439
    %v6451 = vpack.c.b16 %v6441, %v6440
    %v6452 = vpack.c.b16 %v6443, %v6442
    %v6453 = vpack.c.b16 %v6445, %v6444
    %v6454 = vpack.c.b16 %v6446, %v6446
    %6463 = vst [vmem:[%s9] sm:$0xff] %v6447
    %6464 = vst [vmem:[%s9 + $0x8] sm:$0xff] %v6448
    %6465 = vst [vmem:[%s9 + $0x10] sm:$0xff] %v6449
    %6466 = vst [vmem:[%s9 + $0x18] sm:$0xf] %v6450
    %6467 = vst [vmem:[%s9 + $0x1c] sm:$0xff] %v6451
    %6468 = vst [vmem:[%s9 + $0x24] sm:$0xff] %v6452
    %6469 = vst [vmem:[%s9 + $0x2c] sm:$0xff] %v6453
    %6470 = vst [vmem:[%s9 + $0x34] sm:$0xf] %v6454
    // Predicated region
    $region70: #{_generator_forward_impl.1} parent=1 // pred_check
      _
    $region71: #{_generator_forward_impl.1} parent=1 // pred_check_branch
      %6472 = sbr.rel (0) target = $region73
    $region72: #{_generator_forward_impl.1} parent=1 // pred_region
      _
    $region73: #{_generator_forward_impl.1} parent=1 // pred_fallthru
      _
    // Predicated region
    $region74: #{_generator_forward_impl.1} parent=1 // pred_check
      _
    $region75: #{_generator_forward_impl.1} parent=1 // pred_check_branch
      %6474 = sbr.rel (0) target = $region77
    $region76: #{_generator_forward_impl.1} parent=1 // pred_region
      _
    $region77: #{_generator_forward_impl.1} parent=1 // pred_fallthru
      _
    %6475 = vsyncpa [#allocation3], 1
    %6476 = vsyncpa [#allocation5], 1
    %6477 = vsyncpa [#allocation8], 1
    %6478 = vsyncpa [#allocation11], 1
    %6479 = vsyncpa [#allocation14], 1

</llo_original>
